<compile_context>
chip_gen: v5e
topology: v5e:2x2
jax: 0.10.0
libtpu: 0.0.40
codegen_flags: <defaults>
</compile_context>

<pallas_src>
import functools

import jax
import jax.numpy as jnp
from jax import lax
from jax.experimental import pallas as pl
from jax.experimental.pallas import tpu as pltpu


# ----------------------------------------------------------------------------
# Tiling helpers
# ----------------------------------------------------------------------------
def _pick_cout_tile(cout):
    """Cout (lane / GEMM-N) tile: full extent, or a 128-multiple.

    Capped at 128 on v5e (128-wide MXU, 16 MiB scoped-VMEM default) and 256 otherwise
    so weight/accumulator/output blocks stay small on every generation (incl. v7x's
    64 MiB physical VMEM).
    """
    cap = 256
    try:
        kind = jax.devices()[0].device_kind.lower()
        if "v5" in kind:
            cap = 128
    except Exception:
        pass
    if cout <= cap:
        return cout
    for tn in (cap, 128):
        if cout % tn == 0:
            return tn
    return cout


def _pick_batch_tile(b, cout, tn, m_total):
    """Batch tile > 1 only when there are multiple Cout tiles, so one weight DMA
    serves several images (the weight block is the dominant redundant transfer)."""
    if cout <= tn:
        return 1
    for bt in (4, 2):
        if b % bt == 0 and bt * m_total <= 2048:
            return bt
    return 1


def _chunk_rows(ho, wo, tn):
    """Split GEMM-M (ho*wo) into output-row chunks so the live f32 accumulator stays
    <= ~128 KiB (bounded accumulator -> no vreg-spill storm at real WRN sizes)."""
    mt = max(1, min(ho, (32768 // max(tn, 1)) // max(wo, 1)))
    chunks, r0 = [], 0
    while r0 < ho:
        rows = min(mt, ho - r0)
        chunks.append((r0, rows))
        r0 += rows
    return tuple(chunks)


def _phase_split(x_nhwc, stride):
    """(B,H,W,C) -> (B, stride*stride*(H//stride), W//stride, C) stride phases,
    phases folded into the row dim.

    stride == 1 is a free (contiguous) reshape -- no extra HBM pass; stride > 1 is a
    single XLA pass over the raw input (bn / pad / phase no longer need own passes).
    """
    b, h, w, c = x_nhwc.shape
    if stride == 1:
        return x_nhwc.reshape(b, h, w, c)
    assert h % stride == 0 and w % stride == 0, "stride-2 path expects even H/W"
    hx, wx = h // stride, w // stride
    xp = x_nhwc.reshape(b, hx, stride, wx, stride, c)
    xp = jnp.transpose(xp, (0, 2, 4, 1, 3, 5))        # (B, ph, pw, hx, wx, C)
    return xp.reshape(b, stride * stride * hx, wx, c)


# ----------------------------------------------------------------------------
# Fused 3x3-conv kernel body (shared by conv1 and conv2)
# ----------------------------------------------------------------------------
def _make_conv_kernel(*, stride, hx, wx, cin, wo, tn, bt, chunks,
                      bn_in, bn_out, sc_out, res_in):
    """Per grid cell (batch tile, Cout tile):
      prologue : optional bn+relu on the raw tile, written (stride-phase-decomposed)
                 into a zeroed VMEM scratch  ->  halo is exactly 0 in post-BN space.
      main     : per M row-chunk, nine shifted MXU matmuls accumulated in f32.
      epilogue : optional bn+relu, optional residual add, optional fused 1x1
                 projection-shortcut GEMM from the centre-tap patch (second output).
    """
    S = stride
    taps = tuple((kh, kw) for kh in range(3) for kw in range(3))

    def kernel(*refs):
        it = iter(refs)
        x_ref = next(it)
        s1_ref = next(it) if bn_in else None
        b1_ref = next(it) if bn_in else None
        w_ref = next(it)
        s2_ref = next(it) if bn_out else None
        b2_ref = next(it) if bn_out else None
        wsc_ref = next(it) if sc_out else None
        res_ref = next(it) if res_in else None
        o_ref = next(it)
        osc_ref = next(it) if sc_out else None
        pad_ref = next(it)

        # Halo (and never-written phase edges) must stay zero in post-BN space.
        pad_ref[...] = jnp.zeros_like(pad_ref)

        for k in range(bt):
            # ---- prologue: (bn1 + relu1) + zero-pad, phase-decomposed, in VMEM ----
            for u in range(S):
                for v in range(S):
                    p = u * S + v
                    xi = x_ref[k, p * hx:(p + 1) * hx]               # (hx, wx, cin)
                    if bn_in:
                        xi = jnp.maximum(
                            xi.astype(jnp.float32) * s1_ref[...] + b1_ref[...], 0.0)
                    ph = ((u + 1) % S) * S + ((v + 1) % S)
                    ro = 1 if u == S - 1 else 0
                    co = 1 if v == S - 1 else 0
                    pad_ref[ph, ro:ro + hx, co:co + wx, :] = xi.astype(pad_ref.dtype)

            # ---- nine-tap conv GEMM, streamed over bounded M row-chunks ----
            for r0, rows in chunks:
                m = rows * wo
                acc = jnp.zeros((m, tn), jnp.float32)
                sc = None
                for kh, kw in taps:
                    ph = (kh % S) * S + (kw % S)
                    rr = r0 + kh // S
                    cc = kw // S
                    patch = pad_ref[ph, rr:rr + rows, cc:cc + wo, :]  # (rows, wo, cin)
                    a2 = patch.reshape(m, cin)
                    acc = acc + jnp.dot(a2, w_ref[kh, kw],
                                        preferred_element_type=jnp.float32)
                    if sc_out and kh == 1 and kw == 1:
                        # centre tap == the stride-s 1x1 projection-shortcut input
                        sc = jnp.dot(a2, wsc_ref[...],
                                     preferred_element_type=jnp.float32)
                if bn_out:
                    acc = jnp.maximum(acc * s2_ref[...] + b2_ref[...], 0.0)
                if res_in:
                    acc = acc + res_ref[k, r0 * wo:r0 * wo + m, :].astype(jnp.float32)
                o_ref[k, r0 * wo:r0 * wo + m, :] = acc.astype(o_ref.dtype)
                if sc_out:
                    osc_ref[k, r0 * wo:r0 * wo + m, :] = sc

    return kernel


# ----------------------------------------------------------------------------
# Fused conv wrapper (one pallas_call)
# ----------------------------------------------------------------------------
def fused_conv3x3(x_nhwc, w_hwio, *, stride=1, bn_in=None, bn_out=None,
                  wsc=None, residual=None, out_dtype=jnp.float32):
    """y = [relu(bn_out(] conv3x3([relu(bn_in(] x [))], w, stride, pad=1) [))] [+ res]
    and, if wsc is given, a second output sc = conv1x1(relu(bn_in(x)), wsc, stride).

    Returns lane-dense flat-NHWC (B, Ho*Wo, Cout) arrays.
    """
    b, h, w, cin = x_nhwc.shape
    cout = w_hwio.shape[-1]
    S = stride
    assert h % S == 0 and w % S == 0
    hx, wx = h // S, w // S
    ho, wo = hx, wx
    hq, wq = (h + 2) // S, (w + 2) // S
    m_total = ho * wo

    tn = _pick_cout_tile(cout)
    bt = _pick_batch_tile(b, cout, tn, m_total)
    chunks = _chunk_rows(ho, wo, tn)

    # TODO(synk): for cin < 128 the activation block's lane dim (cin) is padded by the
    # DMA; only the narrow first-stage convs are affected (wide stages are lane-dense).
    x_ph = _phase_split(x_nhwc, S)                 # (B, S*S*hx, wx, cin)

    inputs = [x_ph]
    in_specs = [pl.BlockSpec((bt, S * S * hx, wx, cin),
                             lambda bi, ni: (bi, 0, 0, 0))]

    if bn_in is not None:
        s1, b1 = bn_in
        inputs += [s1.reshape(1, 1, cin).astype(jnp.float32),
                   b1.reshape(1, 1, cin).astype(jnp.float32)]
        in_specs += [pl.BlockSpec((1, 1, cin), lambda bi, ni: (0, 0, 0))] * 2

    inputs.append(w_hwio.astype(jnp.bfloat16))
    in_specs.append(pl.BlockSpec((3, 3, cin, tn), lambda bi, ni: (0, 0, 0, ni)))

    if bn_out is not None:
        s2, b2 = bn_out
        inputs += [s2.reshape(1, cout).astype(jnp.float32),
                   b2.reshape(1, cout).astype(jnp.float32)]
        in_specs += [pl.BlockSpec((1, tn), lambda bi, ni: (0, ni))] * 2

    if wsc is not None:
        inputs.append(wsc.astype(jnp.bfloat16))
        in_specs.append(pl.BlockSpec((cin, tn), lambda bi, ni: (0, ni)))

    if residual is not None:
        inputs.append(residual)                                   # (B, m, Cout) f32
        in_specs.append(pl.BlockSpec((bt, m_total, tn), lambda bi, ni: (bi, 0, ni)))

    out_shapes = [jax.ShapeDtypeStruct((b, m_total, cout), out_dtype)]
    out_specs = [pl.BlockSpec((bt, m_total, tn), lambda bi, ni: (bi, 0, ni))]
    if wsc is not None:
        out_shapes.append(jax.ShapeDtypeStruct((b, m_total, cout), jnp.float32))
        out_specs.append(pl.BlockSpec((bt, m_total, tn), lambda bi, ni: (bi, 0, ni)))

    kernel = _make_conv_kernel(
        stride=S, hx=hx, wx=wx, cin=cin, wo=wo, tn=tn, bt=bt, chunks=chunks,
        bn_in=bn_in is not None, bn_out=bn_out is not None,
        sc_out=wsc is not None, res_in=residual is not None)

    return pl.pallas_call(
        kernel,
        out_shape=tuple(out_shapes) if len(out_shapes) > 1 else out_shapes[0],
        grid=(b // bt, cout // tn),
        in_specs=in_specs,
        out_specs=tuple(out_specs) if len(out_specs) > 1 else out_specs[0],
        scratch_shapes=[pltpu.VMEM((S * S, hq, wq, cin), jnp.bfloat16)],
        compiler_params=pltpu.CompilerParams(
            dimension_semantics=("parallel", "parallel")),
    )(*inputs)


# ----------------------------------------------------------------------------
# BasicBlock forward
# ----------------------------------------------------------------------------
def basic_block_forward(x_nchw, params, *, stride, equal_in_out, drop_rate=0.0):
    # TODO(synk): dropout (dropRate > 0) not implemented; module default dropRate=0.0.
    assert drop_rate == 0.0
    if equal_in_out:
        # identity shortcut only type-checks in PyTorch for stride == 1
        assert stride == 1

    # TODO(synk): boundary NCHW<->NHWC transposes remain plain XLA copies; a full
    # network would keep activations NHWC end-to-end and drop them.
    x = jnp.transpose(x_nchw, (0, 2, 3, 1)).astype(jnp.float32)      # (B, H, W, Cin)
    b, h, w, cin = x.shape
    ho, wo = h // stride, w // stride

    w1 = jnp.transpose(params["conv1_w"], (2, 3, 1, 0)).astype(jnp.bfloat16)  # (3,3,Ci,Co)
    w2 = jnp.transpose(params["conv2_w"], (2, 3, 1, 0)).astype(jnp.bfloat16)
    cout = w1.shape[-1]

    bn1 = (params["bn1_scale"], params["bn1_shift"])
    bn2 = (params["bn2_scale"], params["bn2_shift"])

    if equal_in_out:
        # kernel A: bn1+relu1 -> conv1 -> bn2+relu2
        out1 = fused_conv3x3(x, w1, stride=stride, bn_in=bn1, bn_out=bn2,
                             out_dtype=jnp.bfloat16)
        residual = x.reshape(b, h * w, cin)            # identity shortcut (free view)
    else:
        # kernel A additionally emits the fused 1x1 projection shortcut
        wsc = jnp.transpose(params["convsc_w"][:, :, 0, 0], (1, 0)).astype(jnp.bfloat16)
        out1, residual = fused_conv3x3(x, w1, stride=stride, bn_in=bn1, bn_out=bn2,
                                       wsc=wsc, out_dtype=jnp.bfloat16)

    # kernel B: conv2 + residual add
    y = fused_conv3x3(out1.reshape(b, ho, wo, cout), w2, stride=1,
                      residual=residual, out_dtype=jnp.float32)

    return jnp.transpose(y.reshape(b, ho, wo, cout), (0, 3, 1, 2))   # back to NCHW


# ----------------------------------------------------------------------------
# Pure-JAX reference (same bf16-input / f32-accumulate precision policy)
# ----------------------------------------------------------------------------
def _ref_forward(x_nchw, params, *, stride, equal_in_out):
    def bn_relu(x, scale, shift):
        return jnp.maximum(x * scale.reshape(1, -1, 1, 1) + shift.reshape(1, -1, 1, 1), 0.0)

    def conv(x_bf16, w, s, pad):
        return lax.conv_general_dilated(
            x_bf16, w.astype(jnp.bfloat16), (s, s), [(pad, pad), (pad, pad)],
            dimension_numbers=("NCHW", "OIHW", "NCHW"),
            preferred_element_type=jnp.float32)

    x = x_nchw.astype(jnp.float32)
    act = bn_relu(x, params["bn1_scale"], params["bn1_shift"]).astype(jnp.bfloat16)
    out = conv(act, params["conv1_w"], stride, 1)
    out = bn_relu(out, params["bn2_scale"], params["bn2_shift"]).astype(jnp.bfloat16)
    out = conv(out, params["conv2_w"], 1, 1)
    if equal_in_out:
        shortcut = x
    else:
        shortcut = conv(act, params["convsc_w"], stride, 0)
    return shortcut + out


# ----------------------------------------------------------------------------
# Deterministic parameter construction
# ----------------------------------------------------------------------------
def make_params(key, in_planes, out_planes, equal_in_out):
    ks = jax.random.split(key, 12)
    eps = 1e-5

    def bn_params(kg, kb, km, kv, c):
        gamma = 1.0 + 0.1 * jax.random.normal(kg, (c,), jnp.float32)
        beta = 0.1 * jax.random.normal(kb, (c,), jnp.float32)
        mean = 0.1 * jax.random.normal(km, (c,), jnp.float32)
        var = jnp.abs(jax.random.normal(kv, (c,), jnp.float32)) + 0.5
        scale = gamma / jnp.sqrt(var + eps)
        shift = beta - mean * scale
        return scale, shift

    bn1_scale, bn1_shift = bn_params(ks[0], ks[1], ks[2], ks[3], in_planes)
    bn2_scale, bn2_shift = bn_params(ks[4], ks[5], ks[6], ks[7], out_planes)

    p = {
        "bn1_scale": bn1_scale,
        "bn1_shift": bn1_shift,
        "bn2_scale": bn2_scale,
        "bn2_shift": bn2_shift,
        "conv1_w": 0.1 * jax.random.normal(ks[8], (out_planes, in_planes, 3, 3), jnp.float32),
        "conv2_w": 0.1 * jax.random.normal(ks[9], (out_planes, out_planes, 3, 3), jnp.float32),
    }
    if not equal_in_out:
        p["convsc_w"] = 0.1 * jax.random.normal(
            ks[10], (out_planes, in_planes, 1, 1), jnp.float32
        )
    return p


# ----------------------------------------------------------------------------
if __name__ == "__main__":
    key = jax.random.PRNGKey(0)

    configs = [
        # (in_planes, out_planes, stride, batch, spatial)
        (4, 8, 2, 2, 16),      # projection shortcut + stride-2 (phase) path
        (8, 8, 1, 2, 16),      # equalInOut path (identity shortcut, stride 1)
        (16, 512, 1, 4, 8),    # wide stage: multiple Cout tiles + batch tiling
        (16, 128, 1, 2, 32),   # larger spatial: exercises M-chunked accumulator
    ]

    for idx, (cin, cout, stride, batch, hw) in enumerate(configs):
        equal = cin == cout
        kx, kp = jax.random.split(jax.random.fold_in(key, idx))
        x = jax.random.normal(kx, (batch, cin, hw, hw), jnp.float32)   # NCHW, like PyTorch
        params = make_params(kp, cin, cout, equal)

        fwd = functools.partial(basic_block_forward, stride=stride, equal_in_out=equal)
        y = jax.block_until_ready(jax.jit(fwd)(x, params))

        y_ref = _ref_forward(x, params, stride=stride, equal_in_out=equal)
        assert y.shape == y_ref.shape, (y.shape, y_ref.shape)
        assert jnp.allclose(y, y_ref, atol=1e-2, rtol=1e-2), (
            "mismatch", idx, float(jnp.max(jnp.abs(y - y_ref)))
        )

    print("KERNEL_OK")
</pallas_src>

<mosaic_0001>
module attributes {stable_mosaic.version = 11 : i64} {
  func.func @kernel(%arg0: i32, %arg1: i32, %arg2: memref<1x32x8x4xf32, #tpu.memory_space<vmem>>, %arg3: memref<1x1x4xf32, #tpu.memory_space<vmem>>, %arg4: memref<1x1x4xf32, #tpu.memory_space<vmem>>, %arg5: memref<3x3x4x8xbf16, #tpu.memory_space<vmem>>, %arg6: memref<1x8xf32, #tpu.memory_space<vmem>>, %arg7: memref<1x8xf32, #tpu.memory_space<vmem>>, %arg8: memref<4x8xbf16, #tpu.memory_space<vmem>>, %arg9: memref<1x64x8xbf16, #tpu.memory_space<vmem>>, %arg10: memref<1x64x8xf32, #tpu.memory_space<vmem>>, %arg11: memref<4x9x9x4xbf16, #tpu.memory_space<vmem>>) attributes {dimension_semantics = [#tpu.dimension_semantics<parallel>, #tpu.dimension_semantics<parallel>], iteration_bounds = array<i64: 2, 1>, scalar_prefetch = 0 : i64, scratch_operands = 1 : i64, tpu.core_type = #tpu.core_type<tc>, window_params = [{transform_indices = @transform_0, window_bounds = array<i64: 1, 32, 8, 4>}, {pipeline_mode = #tpu.pipeline_mode<synchronous>, transform_indices = @transform_1, window_bounds = array<i64: 1, 1, 4>}, {pipeline_mode = #tpu.pipeline_mode<synchronous>, transform_indices = @transform_2, window_bounds = array<i64: 1, 1, 4>}, {transform_indices = @transform_3, window_bounds = array<i64: 3, 3, 4, 8>}, {transform_indices = @transform_4, window_bounds = array<i64: 1, 8>}, {transform_indices = @transform_5, window_bounds = array<i64: 1, 8>}, {transform_indices = @transform_6, window_bounds = array<i64: 4, 8>}, {transform_indices = @transform_7, window_bounds = array<i64: 1, 64, 8>}, {transform_indices = @transform_8, window_bounds = array<i64: 1, 64, 8>}]} {
    %cst = arith.constant 0.000000e+00 : bf16
    %0 = vector.broadcast %cst : bf16 to vector<4x9x9x4xbf16>
    %c0 = arith.constant 0 : index
    %c0_0 = arith.constant 0 : index
    %c0_1 = arith.constant 0 : index
    %c0_2 = arith.constant 0 : index
    %1 = vector.load %arg11[%c0, %c0_0, %c0_1, %c0_2] : memref<4x9x9x4xbf16, #tpu.memory_space<vmem>>, vector<4x9x9x4xbf16>
    tpu.vector_store %arg11[%c0, %c0_0, %c0_1, %c0_2], %0 {strides = array<i32>} : memref<4x9x9x4xbf16, #tpu.memory_space<vmem>>, vector<4x9x9x4xbf16>,
    %c0_3 = arith.constant 0 : index
    %c0_4 = arith.constant 0 : index
    %c0_5 = arith.constant 0 : index
    %c0_6 = arith.constant 0 : index
    %2 = vector.load %arg2[%c0_3, %c0_4, %c0_5, %c0_6] : memref<1x32x8x4xf32, #tpu.memory_space<vmem>>, vector<1x8x8x4xf32>
    %3 = vector.shape_cast %2 : vector<1x8x8x4xf32> to vector<8x8x4xf32>
    %c0_7 = arith.constant 0 : index
    %c0_8 = arith.constant 0 : index
    %c0_9 = arith.constant 0 : index
    %4 = vector.load %arg3[%c0_7, %c0_8, %c0_9] : memref<1x1x4xf32, #tpu.memory_space<vmem>>, vector<1x1x4xf32>
    %5 = vector.broadcast %4 : vector<1x1x4xf32> to vector<8x8x4xf32>
    %6 = arith.mulf %3, %5 : vector<8x8x4xf32>
    %c0_10 = arith.constant 0 : index
    %c0_11 = arith.constant 0 : index
    %c0_12 = arith.constant 0 : index
    %7 = vector.load %arg4[%c0_10, %c0_11, %c0_12] : memref<1x1x4xf32, #tpu.memory_space<vmem>>, vector<1x1x4xf32>
    %8 = vector.broadcast %7 : vector<1x1x4xf32> to vector<8x8x4xf32>
    %9 = arith.addf %6, %8 : vector<8x8x4xf32>
    %cst_13 = arith.constant 0.000000e+00 : f32
    %10 = vector.broadcast %cst_13 : f32 to vector<8x8x4xf32>
    %11 = arith.maximumf %9, %10 : vector<8x8x4xf32>
    %12 = arith.truncf %11 : vector<8x8x4xf32> to vector<8x8x4xbf16>
    %c3 = arith.constant 3 : index
    %c0_14 = arith.constant 0 : index
    %c0_15 = arith.constant 0 : index
    %c0_16 = arith.constant 0 : index
    %13 = vector.load %arg11[%c3, %c0_14, %c0_15, %c0_16] : memref<4x9x9x4xbf16, #tpu.memory_space<vmem>>, vector<1x8x8x4xbf16>
    %14 = vector.shape_cast %13 : vector<1x8x8x4xbf16> to vector<8x8x4xbf16>
    %15 = vector.shape_cast %12 : vector<8x8x4xbf16> to vector<1x8x8x4xbf16>
    tpu.vector_store %arg11[%c3, %c0_14, %c0_15, %c0_16], %15 {strides = array<i32>} : memref<4x9x9x4xbf16, #tpu.memory_space<vmem>>, vector<1x8x8x4xbf16>,
    %c0_17 = arith.constant 0 : index
    %c8 = arith.constant 8 : index
    %c0_18 = arith.constant 0 : index
    %c0_19 = arith.constant 0 : index
    %16 = vector.load %arg2[%c0_17, %c8, %c0_18, %c0_19] : memref<1x32x8x4xf32, #tpu.memory_space<vmem>>, vector<1x8x8x4xf32>
    %17 = vector.shape_cast %16 : vector<1x8x8x4xf32> to vector<8x8x4xf32>
    %c0_20 = arith.constant 0 : index
    %c0_21 = arith.constant 0 : index
    %c0_22 = arith.constant 0 : index
    %18 = vector.load %arg3[%c0_20, %c0_21, %c0_22] : memref<1x1x4xf32, #tpu.memory_space<vmem>>, vector<1x1x4xf32>
    %19 = vector.broadcast %18 : vector<1x1x4xf32> to vector<8x8x4xf32>
    %20 = arith.mulf %17, %19 : vector<8x8x4xf32>
    %c0_23 = arith.constant 0 : index
    %c0_24 = arith.constant 0 : index
    %c0_25 = arith.constant 0 : index
    %21 = vector.load %arg4[%c0_23, %c0_24, %c0_25] : memref<1x1x4xf32, #tpu.memory_space<vmem>>, vector<1x1x4xf32>
    %22 = vector.broadcast %21 : vector<1x1x4xf32> to vector<8x8x4xf32>
    %23 = arith.addf %20, %22 : vector<8x8x4xf32>
    %cst_26 = arith.constant 0.000000e+00 : f32
    %24 = vector.broadcast %cst_26 : f32 to vector<8x8x4xf32>
    %25 = arith.maximumf %23, %24 : vector<8x8x4xf32>
    %26 = arith.truncf %25 : vector<8x8x4xf32> to vector<8x8x4xbf16>
    %c2 = arith.constant 2 : index
    %c0_27 = arith.constant 0 : index
    %c1 = arith.constant 1 : index
    %c0_28 = arith.constant 0 : index
    %27 = vector.load %arg11[%c2, %c0_27, %c1, %c0_28] : memref<4x9x9x4xbf16, #tpu.memory_space<vmem>>, vector<1x8x8x4xbf16>
    %28 = vector.shape_cast %27 : vector<1x8x8x4xbf16> to vector<8x8x4xbf16>
    %29 = vector.shape_cast %26 : vector<8x8x4xbf16> to vector<1x8x8x4xbf16>
    tpu.vector_store %arg11[%c2, %c0_27, %c1, %c0_28], %29 {strides = array<i32>} : memref<4x9x9x4xbf16, #tpu.memory_space<vmem>>, vector<1x8x8x4xbf16>,
    %c0_29 = arith.constant 0 : index
    %c16 = arith.constant 16 : index
    %c0_30 = arith.constant 0 : index
    %c0_31 = arith.constant 0 : index
    %30 = vector.load %arg2[%c0_29, %c16, %c0_30, %c0_31] : memref<1x32x8x4xf32, #tpu.memory_space<vmem>>, vector<1x8x8x4xf32>
    %31 = vector.shape_cast %30 : vector<1x8x8x4xf32> to vector<8x8x4xf32>
    %c0_32 = arith.constant 0 : index
    %c0_33 = arith.constant 0 : index
    %c0_34 = arith.constant 0 : index
    %32 = vector.load %arg3[%c0_32, %c0_33, %c0_34] : memref<1x1x4xf32, #tpu.memory_space<vmem>>, vector<1x1x4xf32>
    %33 = vector.broadcast %32 : vector<1x1x4xf32> to vector<8x8x4xf32>
    %34 = arith.mulf %31, %33 : vector<8x8x4xf32>
    %c0_35 = arith.constant 0 : index
    %c0_36 = arith.constant 0 : index
    %c0_37 = arith.constant 0 : index
    %35 = vector.load %arg4[%c0_35, %c0_36, %c0_37] : memref<1x1x4xf32, #tpu.memory_space<vmem>>, vector<1x1x4xf32>
    %36 = vector.broadcast %35 : vector<1x1x4xf32> to vector<8x8x4xf32>
    %37 = arith.addf %34, %36 : vector<8x8x4xf32>
    %cst_38 = arith.constant 0.000000e+00 : f32
    %38 = vector.broadcast %cst_38 : f32 to vector<8x8x4xf32>
    %39 = arith.maximumf %37, %38 : vector<8x8x4xf32>
    %40 = arith.truncf %39 : vector<8x8x4xf32> to vector<8x8x4xbf16>
    %c1_39 = arith.constant 1 : index
    %c1_40 = arith.constant 1 : index
    %c0_41 = arith.constant 0 : index
    %c0_42 = arith.constant 0 : index
    %41 = vector.load %arg11[%c1_39, %c1_40, %c0_41, %c0_42] : memref<4x9x9x4xbf16, #tpu.memory_space<vmem>>, vector<1x8x8x4xbf16>
    %42 = vector.shape_cast %41 : vector<1x8x8x4xbf16> to vector<8x8x4xbf16>
    %43 = vector.shape_cast %40 : vector<8x8x4xbf16> to vector<1x8x8x4xbf16>
    tpu.vector_store %arg11[%c1_39, %c1_40, %c0_41, %c0_42], %43 {strides = array<i32>} : memref<4x9x9x4xbf16, #tpu.memory_space<vmem>>, vector<1x8x8x4xbf16>,
    %c0_43 = arith.constant 0 : index
    %c24 = arith.constant 24 : index
    %c0_44 = arith.constant 0 : index
    %c0_45 = arith.constant 0 : index
    %44 = vector.load %arg2[%c0_43, %c24, %c0_44, %c0_45] : memref<1x32x8x4xf32, #tpu.memory_space<vmem>>, vector<1x8x8x4xf32>
    %45 = vector.shape_cast %44 : vector<1x8x8x4xf32> to vector<8x8x4xf32>
    %c0_46 = arith.constant 0 : index
    %c0_47 = arith.constant 0 : index
    %c0_48 = arith.constant 0 : index
    %46 = vector.load %arg3[%c0_46, %c0_47, %c0_48] : memref<1x1x4xf32, #tpu.memory_space<vmem>>, vector<1x1x4xf32>
    %47 = vector.broadcast %46 : vector<1x1x4xf32> to vector<8x8x4xf32>
    %48 = arith.mulf %45, %47 : vector<8x8x4xf32>
    %c0_49 = arith.constant 0 : index
    %c0_50 = arith.constant 0 : index
    %c0_51 = arith.constant 0 : index
    %49 = vector.load %arg4[%c0_49, %c0_50, %c0_51] : memref<1x1x4xf32, #tpu.memory_space<vmem>>, vector<1x1x4xf32>
    %50 = vector.broadcast %49 : vector<1x1x4xf32> to vector<8x8x4xf32>
    %51 = arith.addf %48, %50 : vector<8x8x4xf32>
    %cst_52 = arith.constant 0.000000e+00 : f32
    %52 = vector.broadcast %cst_52 : f32 to vector<8x8x4xf32>
    %53 = arith.maximumf %51, %52 : vector<8x8x4xf32>
    %54 = arith.truncf %53 : vector<8x8x4xf32> to vector<8x8x4xbf16>
    %c0_53 = arith.constant 0 : index
    %c1_54 = arith.constant 1 : index
    %c1_55 = arith.constant 1 : index
    %c0_56 = arith.constant 0 : index
    %55 = vector.load %arg11[%c0_53, %c1_54, %c1_55, %c0_56] : memref<4x9x9x4xbf16, #tpu.memory_space<vmem>>, vector<1x8x8x4xbf16>
    %56 = vector.shape_cast %55 : vector<1x8x8x4xbf16> to vector<8x8x4xbf16>
    %57 = vector.shape_cast %54 : vector<8x8x4xbf16> to vector<1x8x8x4xbf16>
    tpu.vector_store %arg11[%c0_53, %c1_54, %c1_55, %c0_56], %57 {strides = array<i32>} : memref<4x9x9x4xbf16, #tpu.memory_space<vmem>>, vector<1x8x8x4xbf16>,
    %cst_57 = arith.constant 0.000000e+00 : f32
    %58 = vector.broadcast %cst_57 : f32 to vector<64x8xf32>
    %c0_58 = arith.constant 0 : index
    %c0_59 = arith.constant 0 : index
    %c0_60 = arith.constant 0 : index
    %c0_61 = arith.constant 0 : index
    %59 = vector.load %arg11[%c0_58, %c0_59, %c0_60, %c0_61] : memref<4x9x9x4xbf16, #tpu.memory_space<vmem>>, vector<1x8x8x4xbf16>
    %60 = vector.shape_cast %59 : vector<1x8x8x4xbf16> to vector<8x8x4xbf16>
    %61 = vector.shape_cast %60 : vector<8x8x4xbf16> to vector<64x4xbf16>
    %c0_62 = arith.constant 0 : index
    %c0_63 = arith.constant 0 : index
    %c0_64 = arith.constant 0 : index
    %c0_65 = arith.constant 0 : index
    %62 = vector.load %arg5[%c0_62, %c0_63, %c0_64, %c0_65] : memref<3x3x4x8xbf16, #tpu.memory_space<vmem>>, vector<1x1x4x8xbf16>
    %63 = vector.shape_cast %62 : vector<1x1x4x8xbf16> to vector<4x8xbf16>
    %cst_66 = arith.constant dense<0.000000e+00> : vector<64x8xf32>
    %64 = tpu.matmul %61, %63, %cst_66 {dimension_numbers = #tpu.dot_dimension_numbers<[1], [0], [0], [1], [0, 0, 1, 1], [], []>} : vector<64x4xbf16>, vector<4x8xbf16>, vector<64x8xf32> -> vector<64x8xf32>
    %65 = arith.addf %58, %64 : vector<64x8xf32>
    %c1_67 = arith.constant 1 : index
    %c0_68 = arith.constant 0 : index
    %c0_69 = arith.constant 0 : index
    %c0_70 = arith.constant 0 : index
    %66 = vector.load %arg11[%c1_67, %c0_68, %c0_69, %c0_70] : memref<4x9x9x4xbf16, #tpu.memory_space<vmem>>, vector<1x8x8x4xbf16>
    %67 = vector.shape_cast %66 : vector<1x8x8x4xbf16> to vector<8x8x4xbf16>
    %68 = vector.shape_cast %67 : vector<8x8x4xbf16> to vector<64x4xbf16>
    %c0_71 = arith.constant 0 : index
    %c1_72 = arith.constant 1 : index
    %c0_73 = arith.constant 0 : index
    %c0_74 = arith.constant 0 : index
    %69 = vector.load %arg5[%c0_71, %c1_72, %c0_73, %c0_74] : memref<3x3x4x8xbf16, #tpu.memory_space<vmem>>, vector<1x1x4x8xbf16>
    %70 = vector.shape_cast %69 : vector<1x1x4x8xbf16> to vector<4x8xbf16>
    %cst_75 = arith.constant dense<0.000000e+00> : vector<64x8xf32>
    %71 = tpu.matmul %68, %70, %cst_75 {dimension_numbers = #tpu.dot_dimension_numbers<[1], [0], [0], [1], [0, 0, 1, 1], [], []>} : vector<64x4xbf16>, vector<4x8xbf16>, vector<64x8xf32> -> vector<64x8xf32>
    %72 = arith.addf %65, %71 : vector<64x8xf32>
    %c0_76 = arith.constant 0 : index
    %c0_77 = arith.constant 0 : index
    %c1_78 = arith.constant 1 : index
    %c0_79 = arith.constant 0 : index
    %73 = vector.load %arg11[%c0_76, %c0_77, %c1_78, %c0_79] : memref<4x9x9x4xbf16, #tpu.memory_space<vmem>>, vector<1x8x8x4xbf16>
    %74 = vector.shape_cast %73 : vector<1x8x8x4xbf16> to vector<8x8x4xbf16>
    %75 = vector.shape_cast %74 : vector<8x8x4xbf16> to vector<64x4xbf16>
    %c0_80 = arith.constant 0 : index
    %c2_81 = arith.constant 2 : index
    %c0_82 = arith.constant 0 : index
    %c0_83 = arith.constant 0 : index
    %76 = vector.load %arg5[%c0_80, %c2_81, %c0_82, %c0_83] : memref<3x3x4x8xbf16, #tpu.memory_space<vmem>>, vector<1x1x4x8xbf16>
    %77 = vector.shape_cast %76 : vector<1x1x4x8xbf16> to vector<4x8xbf16>
    %cst_84 = arith.constant dense<0.000000e+00> : vector<64x8xf32>
    %78 = tpu.matmul %75, %77, %cst_84 {dimension_numbers = #tpu.dot_dimension_numbers<[1], [0], [0], [1], [0, 0, 1, 1], [], []>} : vector<64x4xbf16>, vector<4x8xbf16>, vector<64x8xf32> -> vector<64x8xf32>
    %79 = arith.addf %72, %78 : vector<64x8xf32>
    %c2_85 = arith.constant 2 : index
    %c0_86 = arith.constant 0 : index
    %c0_87 = arith.constant 0 : index
    %c0_88 = arith.constant 0 : index
    %80 = vector.load %arg11[%c2_85, %c0_86, %c0_87, %c0_88] : memref<4x9x9x4xbf16, #tpu.memory_space<vmem>>, vector<1x8x8x4xbf16>
    %81 = vector.shape_cast %80 : vector<1x8x8x4xbf16> to vector<8x8x4xbf16>
    %82 = vector.shape_cast %81 : vector<8x8x4xbf16> to vector<64x4xbf16>
    %c1_89 = arith.constant 1 : index
    %c0_90 = arith.constant 0 : index
    %c0_91 = arith.constant 0 : index
    %c0_92 = arith.constant 0 : index
    %83 = vector.load %arg5[%c1_89, %c0_90, %c0_91, %c0_92] : memref<3x3x4x8xbf16, #tpu.memory_space<vmem>>, vector<1x1x4x8xbf16>
    %84 = vector.shape_cast %83 : vector<1x1x4x8xbf16> to vector<4x8xbf16>
    %cst_93 = arith.constant dense<0.000000e+00> : vector<64x8xf32>
    %85 = tpu.matmul %82, %84, %cst_93 {dimension_numbers = #tpu.dot_dimension_numbers<[1], [0], [0], [1], [0, 0, 1, 1], [], []>} : vector<64x4xbf16>, vector<4x8xbf16>, vector<64x8xf32> -> vector<64x8xf32>
    %86 = arith.addf %79, %85 : vector<64x8xf32>
    %c3_94 = arith.constant 3 : index
    %c0_95 = arith.constant 0 : index
    %c0_96 = arith.constant 0 : index
    %c0_97 = arith.constant 0 : index
    %87 = vector.load %arg11[%c3_94, %c0_95, %c0_96, %c0_97] : memref<4x9x9x4xbf16, #tpu.memory_space<vmem>>, vector<1x8x8x4xbf16>
    %88 = vector.shape_cast %87 : vector<1x8x8x4xbf16> to vector<8x8x4xbf16>
    %89 = vector.shape_cast %88 : vector<8x8x4xbf16> to vector<64x4xbf16>
    %c1_98 = arith.constant 1 : index
    %c1_99 = arith.constant 1 : index
    %c0_100 = arith.constant 0 : index
    %c0_101 = arith.constant 0 : index
    %90 = vector.load %arg5[%c1_98, %c1_99, %c0_100, %c0_101] : memref<3x3x4x8xbf16, #tpu.memory_space<vmem>>, vector<1x1x4x8xbf16>
    %91 = vector.shape_cast %90 : vector<1x1x4x8xbf16> to vector<4x8xbf16>
    %cst_102 = arith.constant dense<0.000000e+00> : vector<64x8xf32>
    %92 = tpu.matmul %89, %91, %cst_102 {dimension_numbers = #tpu.dot_dimension_numbers<[1], [0], [0], [1], [0, 0, 1, 1], [], []>} : vector<64x4xbf16>, vector<4x8xbf16>, vector<64x8xf32> -> vector<64x8xf32>
    %93 = arith.addf %86, %92 : vector<64x8xf32>
    %c0_103 = arith.constant 0 : index
    %c0_104 = arith.constant 0 : index
    %94 = vector.load %arg8[%c0_103, %c0_104] : memref<4x8xbf16, #tpu.memory_space<vmem>>, vector<4x8xbf16>
    %cst_105 = arith.constant dense<0.000000e+00> : vector<64x8xf32>
    %95 = tpu.matmul %89, %94, %cst_105 {dimension_numbers = #tpu.dot_dimension_numbers<[1], [0], [0], [1], [0, 0, 1, 1], [], []>} : vector<64x4xbf16>, vector<4x8xbf16>, vector<64x8xf32> -> vector<64x8xf32>
    %c2_106 = arith.constant 2 : index
    %c0_107 = arith.constant 0 : index
    %c1_108 = arith.constant 1 : index
    %c0_109 = arith.constant 0 : index
    %96 = vector.load %arg11[%c2_106, %c0_107, %c1_108, %c0_109] : memref<4x9x9x4xbf16, #tpu.memory_space<vmem>>, vector<1x8x8x4xbf16>
    %97 = vector.shape_cast %96 : vector<1x8x8x4xbf16> to vector<8x8x4xbf16>
    %98 = vector.shape_cast %97 : vector<8x8x4xbf16> to vector<64x4xbf16>
    %c1_110 = arith.constant 1 : index
    %c2_111 = arith.constant 2 : index
    %c0_112 = arith.constant 0 : index
    %c0_113 = arith.constant 0 : index
    %99 = vector.load %arg5[%c1_110, %c2_111, %c0_112, %c0_113] : memref<3x3x4x8xbf16, #tpu.memory_space<vmem>>, vector<1x1x4x8xbf16>
    %100 = vector.shape_cast %99 : vector<1x1x4x8xbf16> to vector<4x8xbf16>
    %cst_114 = arith.constant dense<0.000000e+00> : vector<64x8xf32>
    %101 = tpu.matmul %98, %100, %cst_114 {dimension_numbers = #tpu.dot_dimension_numbers<[1], [0], [0], [1], [0, 0, 1, 1], [], []>} : vector<64x4xbf16>, vector<4x8xbf16>, vector<64x8xf32> -> vector<64x8xf32>
    %102 = arith.addf %93, %101 : vector<64x8xf32>
    %c0_115 = arith.constant 0 : index
    %c1_116 = arith.constant 1 : index
    %c0_117 = arith.constant 0 : index
    %c0_118 = arith.constant 0 : index
    %103 = vector.load %arg11[%c0_115, %c1_116, %c0_117, %c0_118] : memref<4x9x9x4xbf16, #tpu.memory_space<vmem>>, vector<1x8x8x4xbf16>
    %104 = vector.shape_cast %103 : vector<1x8x8x4xbf16> to vector<8x8x4xbf16>
    %105 = vector.shape_cast %104 : vector<8x8x4xbf16> to vector<64x4xbf16>
    %c2_119 = arith.constant 2 : index
    %c0_120 = arith.constant 0 : index
    %c0_121 = arith.constant 0 : index
    %c0_122 = arith.constant 0 : index
    %106 = vector.load %arg5[%c2_119, %c0_120, %c0_121, %c0_122] : memref<3x3x4x8xbf16, #tpu.memory_space<vmem>>, vector<1x1x4x8xbf16>
    %107 = vector.shape_cast %106 : vector<1x1x4x8xbf16> to vector<4x8xbf16>
    %cst_123 = arith.constant dense<0.000000e+00> : vector<64x8xf32>
    %108 = tpu.matmul %105, %107, %cst_123 {dimension_numbers = #tpu.dot_dimension_numbers<[1], [0], [0], [1], [0, 0, 1, 1], [], []>} : vector<64x4xbf16>, vector<4x8xbf16>, vector<64x8xf32> -> vector<64x8xf32>
    %109 = arith.addf %102, %108 : vector<64x8xf32>
    %c1_124 = arith.constant 1 : index
    %c1_125 = arith.constant 1 : index
    %c0_126 = arith.constant 0 : index
    %c0_127 = arith.constant 0 : index
    %110 = vector.load %arg11[%c1_124, %c1_125, %c0_126, %c0_127] : memref<4x9x9x4xbf16, #tpu.memory_space<vmem>>, vector<1x8x8x4xbf16>
    %111 = vector.shape_cast %110 : vector<1x8x8x4xbf16> to vector<8x8x4xbf16>
    %112 = vector.shape_cast %111 : vector<8x8x4xbf16> to vector<64x4xbf16>
    %c2_128 = arith.constant 2 : index
    %c1_129 = arith.constant 1 : index
    %c0_130 = arith.constant 0 : index
    %c0_131 = arith.constant 0 : index
    %113 = vector.load %arg5[%c2_128, %c1_129, %c0_130, %c0_131] : memref<3x3x4x8xbf16, #tpu.memory_space<vmem>>, vector<1x1x4x8xbf16>
    %114 = vector.shape_cast %113 : vector<1x1x4x8xbf16> to vector<4x8xbf16>
    %cst_132 = arith.constant dense<0.000000e+00> : vector<64x8xf32>
    %115 = tpu.matmul %112, %114, %cst_132 {dimension_numbers = #tpu.dot_dimension_numbers<[1], [0], [0], [1], [0, 0, 1, 1], [], []>} : vector<64x4xbf16>, vector<4x8xbf16>, vector<64x8xf32> -> vector<64x8xf32>
    %116 = arith.addf %109, %115 : vector<64x8xf32>
    %c0_133 = arith.constant 0 : index
    %c1_134 = arith.constant 1 : index
    %c1_135 = arith.constant 1 : index
    %c0_136 = arith.constant 0 : index
    %117 = vector.load %arg11[%c0_133, %c1_134, %c1_135, %c0_136] : memref<4x9x9x4xbf16, #tpu.memory_space<vmem>>, vector<1x8x8x4xbf16>
    %118 = vector.shape_cast %117 : vector<1x8x8x4xbf16> to vector<8x8x4xbf16>
    %119 = vector.shape_cast %118 : vector<8x8x4xbf16> to vector<64x4xbf16>
    %c2_137 = arith.constant 2 : index
    %c2_138 = arith.constant 2 : index
    %c0_139 = arith.constant 0 : index
    %c0_140 = arith.constant 0 : index
    %120 = vector.load %arg5[%c2_137, %c2_138, %c0_139, %c0_140] : memref<3x3x4x8xbf16, #tpu.memory_space<vmem>>, vector<1x1x4x8xbf16>
    %121 = vector.shape_cast %120 : vector<1x1x4x8xbf16> to vector<4x8xbf16>
    %cst_141 = arith.constant dense<0.000000e+00> : vector<64x8xf32>
    %122 = tpu.matmul %119, %121, %cst_141 {dimension_numbers = #tpu.dot_dimension_numbers<[1], [0], [0], [1], [0, 0, 1, 1], [], []>} : vector<64x4xbf16>, vector<4x8xbf16>, vector<64x8xf32> -> vector<64x8xf32>
    %123 = arith.addf %116, %122 : vector<64x8xf32>
    %c0_142 = arith.constant 0 : index
    %c0_143 = arith.constant 0 : index
    %124 = vector.load %arg6[%c0_142, %c0_143] : memref<1x8xf32, #tpu.memory_space<vmem>>, vector<1x8xf32>
    %125 = vector.broadcast %124 : vector<1x8xf32> to vector<64x8xf32>
    %126 = arith.mulf %123, %125 : vector<64x8xf32>
    %c0_144 = arith.constant 0 : index
    %c0_145 = arith.constant 0 : index
    %127 = vector.load %arg7[%c0_144, %c0_145] : memref<1x8xf32, #tpu.memory_space<vmem>>, vector<1x8xf32>
    %128 = vector.broadcast %127 : vector<1x8xf32> to vector<64x8xf32>
    %129 = arith.addf %126, %128 : vector<64x8xf32>
    %cst_146 = arith.constant 0.000000e+00 : f32
    %130 = vector.broadcast %cst_146 : f32 to vector<64x8xf32>
    %131 = arith.maximumf %129, %130 : vector<64x8xf32>
    %132 = arith.truncf %131 : vector<64x8xf32> to vector<64x8xbf16>
    %c0_147 = arith.constant 0 : index
    %c0_148 = arith.constant 0 : index
    %c0_149 = arith.constant 0 : index
    %133 = vector.load %arg9[%c0_147, %c0_148, %c0_149] : memref<1x64x8xbf16, #tpu.memory_space<vmem>>, vector<1x64x8xbf16>
    %134 = vector.shape_cast %133 : vector<1x64x8xbf16> to vector<64x8xbf16>
    %135 = vector.shape_cast %132 : vector<64x8xbf16> to vector<1x64x8xbf16>
    tpu.vector_store %arg9[%c0_147, %c0_148, %c0_149], %135 {strides = array<i32>} : memref<1x64x8xbf16, #tpu.memory_space<vmem>>, vector<1x64x8xbf16>,
    %c0_150 = arith.constant 0 : index
    %c0_151 = arith.constant 0 : index
    %c0_152 = arith.constant 0 : index
    %136 = vector.load %arg10[%c0_150, %c0_151, %c0_152] : memref<1x64x8xf32, #tpu.memory_space<vmem>>, vector<1x64x8xf32>
    %137 = vector.shape_cast %136 : vector<1x64x8xf32> to vector<64x8xf32>
    %138 = vector.shape_cast %95 : vector<64x8xf32> to vector<1x64x8xf32>
    tpu.vector_store %arg10[%c0_150, %c0_151, %c0_152], %138 {strides = array<i32>} : memref<1x64x8xf32, #tpu.memory_space<vmem>>, vector<1x64x8xf32>,
    return
  }
  func.func @transform_0(%arg0: i32, %arg1: i32) -> (i32, i32, i32, i32) {
    %c0_i32 = arith.constant 0 : i32
    %c0_i32_0 = arith.constant 0 : i32
    %c0_i32_1 = arith.constant 0 : i32
    %c0_i32_2 = arith.constant 0 : i32
    return %arg0, %c0_i32, %c0_i32_0, %c0_i32_1 : i32, i32, i32, i32
  }
  func.func @transform_1(%arg0: i32, %arg1: i32) -> (i32, i32, i32) {
    %c0_i32 = arith.constant 0 : i32
    %c0_i32_0 = arith.constant 0 : i32
    %c0_i32_1 = arith.constant 0 : i32
    %c0_i32_2 = arith.constant 0 : i32
    return %c0_i32, %c0_i32_0, %c0_i32_1 : i32, i32, i32
  }
  func.func @transform_2(%arg0: i32, %arg1: i32) -> (i32, i32, i32) {
    %c0_i32 = arith.constant 0 : i32
    %c0_i32_0 = arith.constant 0 : i32
    %c0_i32_1 = arith.constant 0 : i32
    %c0_i32_2 = arith.constant 0 : i32
    return %c0_i32, %c0_i32_0, %c0_i32_1 : i32, i32, i32
  }
  func.func @transform_3(%arg0: i32, %arg1: i32) -> (i32, i32, i32, i32) {
    %c0_i32 = arith.constant 0 : i32
    %c0_i32_0 = arith.constant 0 : i32
    %c0_i32_1 = arith.constant 0 : i32
    %c0_i32_2 = arith.constant 0 : i32
    return %c0_i32, %c0_i32_0, %c0_i32_1, %arg1 : i32, i32, i32, i32
  }
  func.func @transform_4(%arg0: i32, %arg1: i32) -> (i32, i32) {
    %c0_i32 = arith.constant 0 : i32
    %c0_i32_0 = arith.constant 0 : i32
    return %c0_i32, %arg1 : i32, i32
  }
  func.func @transform_5(%arg0: i32, %arg1: i32) -> (i32, i32) {
    %c0_i32 = arith.constant 0 : i32
    %c0_i32_0 = arith.constant 0 : i32
    return %c0_i32, %arg1 : i32, i32
  }
  func.func @transform_6(%arg0: i32, %arg1: i32) -> (i32, i32) {
    %c0_i32 = arith.constant 0 : i32
    %c0_i32_0 = arith.constant 0 : i32
    return %c0_i32, %arg1 : i32, i32
  }
  func.func @transform_7(%arg0: i32, %arg1: i32) -> (i32, i32, i32) {
    %c0_i32 = arith.constant 0 : i32
    %c0_i32_0 = arith.constant 0 : i32
    return %arg0, %c0_i32, %arg1 : i32, i32, i32
  }
  func.func @transform_8(%arg0: i32, %arg1: i32) -> (i32, i32, i32) {
    %c0_i32 = arith.constant 0 : i32
    %c0_i32_0 = arith.constant 0 : i32
    return %arg0, %c0_i32, %arg1 : i32, i32, i32
  }
}

module attributes {stable_mosaic.version = 11 : i64} {
  func.func @kernel(%arg0: i32, %arg1: i32, %arg2: memref<1x8x8x8xbf16, #tpu.memory_space<vmem>>, %arg3: memref<3x3x8x8xbf16, #tpu.memory_space<vmem>>, %arg4: memref<1x64x8xf32, #tpu.memory_space<vmem>>, %arg5: memref<1x64x8xf32, #tpu.memory_space<vmem>>, %arg6: memref<1x10x10x8xbf16, #tpu.memory_space<vmem>>) attributes {dimension_semantics = [#tpu.dimension_semantics<parallel>, #tpu.dimension_semantics<parallel>], iteration_bounds = array<i64: 2, 1>, scalar_prefetch = 0 : i64, scratch_operands = 1 : i64, tpu.core_type = #tpu.core_type<tc>, window_params = [{transform_indices = @transform_0, window_bounds = array<i64: 1, 8, 8, 8>}, {transform_indices = @transform_1, window_bounds = array<i64: 3, 3, 8, 8>}, {transform_indices = @transform_2, window_bounds = array<i64: 1, 64, 8>}, {transform_indices = @transform_3, window_bounds = array<i64: 1, 64, 8>}]} {
    %cst = arith.constant 0.000000e+00 : bf16
    %0 = vector.broadcast %cst : bf16 to vector<1x10x10x8xbf16>
    %c0 = arith.constant 0 : index
    %c0_0 = arith.constant 0 : index
    %c0_1 = arith.constant 0 : index
    %c0_2 = arith.constant 0 : index
    %1 = vector.load %arg6[%c0, %c0_0, %c0_1, %c0_2] : memref<1x10x10x8xbf16, #tpu.memory_space<vmem>>, vector<1x10x10x8xbf16>
    tpu.vector_store %arg6[%c0, %c0_0, %c0_1, %c0_2], %0 {strides = array<i32>} : memref<1x10x10x8xbf16, #tpu.memory_space<vmem>>, vector<1x10x10x8xbf16>,
    %c0_3 = arith.constant 0 : index
    %c0_4 = arith.constant 0 : index
    %c0_5 = arith.constant 0 : index
    %c0_6 = arith.constant 0 : index
    %2 = vector.load %arg2[%c0_3, %c0_4, %c0_5, %c0_6] : memref<1x8x8x8xbf16, #tpu.memory_space<vmem>>, vector<1x8x8x8xbf16>
    %3 = vector.shape_cast %2 : vector<1x8x8x8xbf16> to vector<8x8x8xbf16>
    %c0_7 = arith.constant 0 : index
    %c1 = arith.constant 1 : index
    %c1_8 = arith.constant 1 : index
    %c0_9 = arith.constant 0 : index
    %4 = vector.load %arg6[%c0_7, %c1, %c1_8, %c0_9] : memref<1x10x10x8xbf16, #tpu.memory_space<vmem>>, vector<1x8x8x8xbf16>
    %5 = vector.shape_cast %4 : vector<1x8x8x8xbf16> to vector<8x8x8xbf16>
    %6 = vector.shape_cast %3 : vector<8x8x8xbf16> to vector<1x8x8x8xbf16>
    tpu.vector_store %arg6[%c0_7, %c1, %c1_8, %c0_9], %6 {strides = array<i32>} : memref<1x10x10x8xbf16, #tpu.memory_space<vmem>>, vector<1x8x8x8xbf16>,
    %cst_10 = arith.constant 0.000000e+00 : f32
    %7 = vector.broadcast %cst_10 : f32 to vector<64x8xf32>
    %c0_11 = arith.constant 0 : index
    %c0_12 = arith.constant 0 : index
    %c0_13 = arith.constant 0 : index
    %c0_14 = arith.constant 0 : index
    %8 = vector.load %arg6[%c0_11, %c0_12, %c0_13, %c0_14] : memref<1x10x10x8xbf16, #tpu.memory_space<vmem>>, vector<1x8x8x8xbf16>
    %9 = vector.shape_cast %8 : vector<1x8x8x8xbf16> to vector<8x8x8xbf16>
    %10 = vector.shape_cast %9 : vector<8x8x8xbf16> to vector<64x8xbf16>
    %c0_15 = arith.constant 0 : index
    %c0_16 = arith.constant 0 : index
    %c0_17 = arith.constant 0 : index
    %c0_18 = arith.constant 0 : index
    %11 = vector.load %arg3[%c0_15, %c0_16, %c0_17, %c0_18] : memref<3x3x8x8xbf16, #tpu.memory_space<vmem>>, vector<1x1x8x8xbf16>
    %12 = vector.shape_cast %11 : vector<1x1x8x8xbf16> to vector<8x8xbf16>
    %cst_19 = arith.constant dense<0.000000e+00> : vector<64x8xf32>
    %13 = tpu.matmul %10, %12, %cst_19 {dimension_numbers = #tpu.dot_dimension_numbers<[1], [0], [0], [1], [0, 0, 1, 1], [], []>} : vector<64x8xbf16>, vector<8x8xbf16>, vector<64x8xf32> -> vector<64x8xf32>
    %14 = arith.addf %7, %13 : vector<64x8xf32>
    %c0_20 = arith.constant 0 : index
    %c0_21 = arith.constant 0 : index
    %c1_22 = arith.constant 1 : index
    %c0_23 = arith.constant 0 : index
    %15 = vector.load %arg6[%c0_20, %c0_21, %c1_22, %c0_23] : memref<1x10x10x8xbf16, #tpu.memory_space<vmem>>, vector<1x8x8x8xbf16>
    %16 = vector.shape_cast %15 : vector<1x8x8x8xbf16> to vector<8x8x8xbf16>
    %17 = vector.shape_cast %16 : vector<8x8x8xbf16> to vector<64x8xbf16>
    %c0_24 = arith.constant 0 : index
    %c1_25 = arith.constant 1 : index
    %c0_26 = arith.constant 0 : index
    %c0_27 = arith.constant 0 : index
    %18 = vector.load %arg3[%c0_24, %c1_25, %c0_26, %c0_27] : memref<3x3x8x8xbf16, #tpu.memory_space<vmem>>, vector<1x1x8x8xbf16>
    %19 = vector.shape_cast %18 : vector<1x1x8x8xbf16> to vector<8x8xbf16>
    %cst_28 = arith.constant dense<0.000000e+00> : vector<64x8xf32>
    %20 = tpu.matmul %17, %19, %cst_28 {dimension_numbers = #tpu.dot_dimension_numbers<[1], [0], [0], [1], [0, 0, 1, 1], [], []>} : vector<64x8xbf16>, vector<8x8xbf16>, vector<64x8xf32> -> vector<64x8xf32>
    %21 = arith.addf %14, %20 : vector<64x8xf32>
    %c0_29 = arith.constant 0 : index
    %c0_30 = arith.constant 0 : index
    %c2 = arith.constant 2 : index
    %c0_31 = arith.constant 0 : index
    %22 = vector.load %arg6[%c0_29, %c0_30, %c2, %c0_31] : memref<1x10x10x8xbf16, #tpu.memory_space<vmem>>, vector<1x8x8x8xbf16>
    %23 = vector.shape_cast %22 : vector<1x8x8x8xbf16> to vector<8x8x8xbf16>
    %24 = vector.shape_cast %23 : vector<8x8x8xbf16> to vector<64x8xbf16>
    %c0_32 = arith.constant 0 : index
    %c2_33 = arith.constant 2 : index
    %c0_34 = arith.constant 0 : index
    %c0_35 = arith.constant 0 : index
    %25 = vector.load %arg3[%c0_32, %c2_33, %c0_34, %c0_35] : memref<3x3x8x8xbf16, #tpu.memory_space<vmem>>, vector<1x1x8x8xbf16>
    %26 = vector.shape_cast %25 : vector<1x1x8x8xbf16> to vector<8x8xbf16>
    %cst_36 = arith.constant dense<0.000000e+00> : vector<64x8xf32>
    %27 = tpu.matmul %24, %26, %cst_36 {dimension_numbers = #tpu.dot_dimension_numbers<[1], [0], [0], [1], [0, 0, 1, 1], [], []>} : vector<64x8xbf16>, vector<8x8xbf16>, vector<64x8xf32> -> vector<64x8xf32>
    %28 = arith.addf %21, %27 : vector<64x8xf32>
    %c0_37 = arith.constant 0 : index
    %c1_38 = arith.constant 1 : index
    %c0_39 = arith.constant 0 : index
    %c0_40 = arith.constant 0 : index
    %29 = vector.load %arg6[%c0_37, %c1_38, %c0_39, %c0_40] : memref<1x10x10x8xbf16, #tpu.memory_space<vmem>>, vector<1x8x8x8xbf16>
    %30 = vector.shape_cast %29 : vector<1x8x8x8xbf16> to vector<8x8x8xbf16>
    %31 = vector.shape_cast %30 : vector<8x8x8xbf16> to vector<64x8xbf16>
    %c1_41 = arith.constant 1 : index
    %c0_42 = arith.constant 0 : index
    %c0_43 = arith.constant 0 : index
    %c0_44 = arith.constant 0 : index
    %32 = vector.load %arg3[%c1_41, %c0_42, %c0_43, %c0_44] : memref<3x3x8x8xbf16, #tpu.memory_space<vmem>>, vector<1x1x8x8xbf16>
    %33 = vector.shape_cast %32 : vector<1x1x8x8xbf16> to vector<8x8xbf16>
    %cst_45 = arith.constant dense<0.000000e+00> : vector<64x8xf32>
    %34 = tpu.matmul %31, %33, %cst_45 {dimension_numbers = #tpu.dot_dimension_numbers<[1], [0], [0], [1], [0, 0, 1, 1], [], []>} : vector<64x8xbf16>, vector<8x8xbf16>, vector<64x8xf32> -> vector<64x8xf32>
    %35 = arith.addf %28, %34 : vector<64x8xf32>
    %c0_46 = arith.constant 0 : index
    %c1_47 = arith.constant 1 : index
    %c1_48 = arith.constant 1 : index
    %c0_49 = arith.constant 0 : index
    %36 = vector.load %arg6[%c0_46, %c1_47, %c1_48, %c0_49] : memref<1x10x10x8xbf16, #tpu.memory_space<vmem>>, vector<1x8x8x8xbf16>
    %37 = vector.shape_cast %36 : vector<1x8x8x8xbf16> to vector<8x8x8xbf16>
    %38 = vector.shape_cast %37 : vector<8x8x8xbf16> to vector<64x8xbf16>
    %c1_50 = arith.constant 1 : index
    %c1_51 = arith.constant 1 : index
    %c0_52 = arith.constant 0 : index
    %c0_53 = arith.constant 0 : index
    %39 = vector.load %arg3[%c1_50, %c1_51, %c0_52, %c0_53] : memref<3x3x8x8xbf16, #tpu.memory_space<vmem>>, vector<1x1x8x8xbf16>
    %40 = vector.shape_cast %39 : vector<1x1x8x8xbf16> to vector<8x8xbf16>
    %cst_54 = arith.constant dense<0.000000e+00> : vector<64x8xf32>
    %41 = tpu.matmul %38, %40, %cst_54 {dimension_numbers = #tpu.dot_dimension_numbers<[1], [0], [0], [1], [0, 0, 1, 1], [], []>} : vector<64x8xbf16>, vector<8x8xbf16>, vector<64x8xf32> -> vector<64x8xf32>
    %42 = arith.addf %35, %41 : vector<64x8xf32>
    %c0_55 = arith.constant 0 : index
    %c1_56 = arith.constant 1 : index
    %c2_57 = arith.constant 2 : index
    %c0_58 = arith.constant 0 : index
    %43 = vector.load %arg6[%c0_55, %c1_56, %c2_57, %c0_58] : memref<1x10x10x8xbf16, #tpu.memory_space<vmem>>, vector<1x8x8x8xbf16>
    %44 = vector.shape_cast %43 : vector<1x8x8x8xbf16> to vector<8x8x8xbf16>
    %45 = vector.shape_cast %44 : vector<8x8x8xbf16> to vector<64x8xbf16>
    %c1_59 = arith.constant 1 : index
    %c2_60 = arith.constant 2 : index
    %c0_61 = arith.constant 0 : index
    %c0_62 = arith.constant 0 : index
    %46 = vector.load %arg3[%c1_59, %c2_60, %c0_61, %c0_62] : memref<3x3x8x8xbf16, #tpu.memory_space<vmem>>, vector<1x1x8x8xbf16>
    %47 = vector.shape_cast %46 : vector<1x1x8x8xbf16> to vector<8x8xbf16>
    %cst_63 = arith.constant dense<0.000000e+00> : vector<64x8xf32>
    %48 = tpu.matmul %45, %47, %cst_63 {dimension_numbers = #tpu.dot_dimension_numbers<[1], [0], [0], [1], [0, 0, 1, 1], [], []>} : vector<64x8xbf16>, vector<8x8xbf16>, vector<64x8xf32> -> vector<64x8xf32>
    %49 = arith.addf %42, %48 : vector<64x8xf32>
    %c0_64 = arith.constant 0 : index
    %c2_65 = arith.constant 2 : index
    %c0_66 = arith.constant 0 : index
    %c0_67 = arith.constant 0 : index
    %50 = vector.load %arg6[%c0_64, %c2_65, %c0_66, %c0_67] : memref<1x10x10x8xbf16, #tpu.memory_space<vmem>>, vector<1x8x8x8xbf16>
    %51 = vector.shape_cast %50 : vector<1x8x8x8xbf16> to vector<8x8x8xbf16>
    %52 = vector.shape_cast %51 : vector<8x8x8xbf16> to vector<64x8xbf16>
    %c2_68 = arith.constant 2 : index
    %c0_69 = arith.constant 0 : index
    %c0_70 = arith.constant 0 : index
    %c0_71 = arith.constant 0 : index
    %53 = vector.load %arg3[%c2_68, %c0_69, %c0_70, %c0_71] : memref<3x3x8x8xbf16, #tpu.memory_space<vmem>>, vector<1x1x8x8xbf16>
    %54 = vector.shape_cast %53 : vector<1x1x8x8xbf16> to vector<8x8xbf16>
    %cst_72 = arith.constant dense<0.000000e+00> : vector<64x8xf32>
    %55 = tpu.matmul %52, %54, %cst_72 {dimension_numbers = #tpu.dot_dimension_numbers<[1], [0], [0], [1], [0, 0, 1, 1], [], []>} : vector<64x8xbf16>, vector<8x8xbf16>, vector<64x8xf32> -> vector<64x8xf32>
    %56 = arith.addf %49, %55 : vector<64x8xf32>
    %c0_73 = arith.constant 0 : index
    %c2_74 = arith.constant 2 : index
    %c1_75 = arith.constant 1 : index
    %c0_76 = arith.constant 0 : index
    %57 = vector.load %arg6[%c0_73, %c2_74, %c1_75, %c0_76] : memref<1x10x10x8xbf16, #tpu.memory_space<vmem>>, vector<1x8x8x8xbf16>
    %58 = vector.shape_cast %57 : vector<1x8x8x8xbf16> to vector<8x8x8xbf16>
    %59 = vector.shape_cast %58 : vector<8x8x8xbf16> to vector<64x8xbf16>
    %c2_77 = arith.constant 2 : index
    %c1_78 = arith.constant 1 : index
    %c0_79 = arith.constant 0 : index
    %c0_80 = arith.constant 0 : index
    %60 = vector.load %arg3[%c2_77, %c1_78, %c0_79, %c0_80] : memref<3x3x8x8xbf16, #tpu.memory_space<vmem>>, vector<1x1x8x8xbf16>
    %61 = vector.shape_cast %60 : vector<1x1x8x8xbf16> to vector<8x8xbf16>
    %cst_81 = arith.constant dense<0.000000e+00> : vector<64x8xf32>
    %62 = tpu.matmul %59, %61, %cst_81 {dimension_numbers = #tpu.dot_dimension_numbers<[1], [0], [0], [1], [0, 0, 1, 1], [], []>} : vector<64x8xbf16>, vector<8x8xbf16>, vector<64x8xf32> -> vector<64x8xf32>
    %63 = arith.addf %56, %62 : vector<64x8xf32>
    %c0_82 = arith.constant 0 : index
    %c2_83 = arith.constant 2 : index
    %c2_84 = arith.constant 2 : index
    %c0_85 = arith.constant 0 : index
    %64 = vector.load %arg6[%c0_82, %c2_83, %c2_84, %c0_85] : memref<1x10x10x8xbf16, #tpu.memory_space<vmem>>, vector<1x8x8x8xbf16>
    %65 = vector.shape_cast %64 : vector<1x8x8x8xbf16> to vector<8x8x8xbf16>
    %66 = vector.shape_cast %65 : vector<8x8x8xbf16> to vector<64x8xbf16>
    %c2_86 = arith.constant 2 : index
    %c2_87 = arith.constant 2 : index
    %c0_88 = arith.constant 0 : index
    %c0_89 = arith.constant 0 : index
    %67 = vector.load %arg3[%c2_86, %c2_87, %c0_88, %c0_89] : memref<3x3x8x8xbf16, #tpu.memory_space<vmem>>, vector<1x1x8x8xbf16>
    %68 = vector.shape_cast %67 : vector<1x1x8x8xbf16> to vector<8x8xbf16>
    %cst_90 = arith.constant dense<0.000000e+00> : vector<64x8xf32>
    %69 = tpu.matmul %66, %68, %cst_90 {dimension_numbers = #tpu.dot_dimension_numbers<[1], [0], [0], [1], [0, 0, 1, 1], [], []>} : vector<64x8xbf16>, vector<8x8xbf16>, vector<64x8xf32> -> vector<64x8xf32>
    %70 = arith.addf %63, %69 : vector<64x8xf32>
    %c0_91 = arith.constant 0 : index
    %c0_92 = arith.constant 0 : index
    %c0_93 = arith.constant 0 : index
    %71 = vector.load %arg4[%c0_91, %c0_92, %c0_93] : memref<1x64x8xf32, #tpu.memory_space<vmem>>, vector<1x64x8xf32>
    %72 = vector.shape_cast %71 : vector<1x64x8xf32> to vector<64x8xf32>
    %73 = arith.addf %70, %72 : vector<64x8xf32>
    %c0_94 = arith.constant 0 : index
    %c0_95 = arith.constant 0 : index
    %c0_96 = arith.constant 0 : index
    %74 = vector.load %arg5[%c0_94, %c0_95, %c0_96] : memref<1x64x8xf32, #tpu.memory_space<vmem>>, vector<1x64x8xf32>
    %75 = vector.shape_cast %74 : vector<1x64x8xf32> to vector<64x8xf32>
    %76 = vector.shape_cast %73 : vector<64x8xf32> to vector<1x64x8xf32>
    tpu.vector_store %arg5[%c0_94, %c0_95, %c0_96], %76 {strides = array<i32>} : memref<1x64x8xf32, #tpu.memory_space<vmem>>, vector<1x64x8xf32>,
    return
  }
  func.func @transform_0(%arg0: i32, %arg1: i32) -> (i32, i32, i32, i32) {
    %c0_i32 = arith.constant 0 : i32
    %c0_i32_0 = arith.constant 0 : i32
    %c0_i32_1 = arith.constant 0 : i32
    %c0_i32_2 = arith.constant 0 : i32
    return %arg0, %c0_i32, %c0_i32_0, %c0_i32_1 : i32, i32, i32, i32
  }
  func.func @transform_1(%arg0: i32, %arg1: i32) -> (i32, i32, i32, i32) {
    %c0_i32 = arith.constant 0 : i32
    %c0_i32_0 = arith.constant 0 : i32
    %c0_i32_1 = arith.constant 0 : i32
    %c0_i32_2 = arith.constant 0 : i32
    return %c0_i32, %c0_i32_0, %c0_i32_1, %arg1 : i32, i32, i32, i32
  }
  func.func @transform_2(%arg0: i32, %arg1: i32) -> (i32, i32, i32) {
    %c0_i32 = arith.constant 0 : i32
    %c0_i32_0 = arith.constant 0 : i32
    return %arg0, %c0_i32, %arg1 : i32, i32, i32
  }
  func.func @transform_3(%arg0: i32, %arg1: i32) -> (i32, i32, i32) {
    %c0_i32 = arith.constant 0 : i32
    %c0_i32_0 = arith.constant 0 : i32
    return %arg0, %c0_i32, %arg1 : i32, i32, i32
  }
}

</mosaic_0001>

<llo_original>
// kernel: basic_block_forward.3
$region0: #{basic_block_forward.3}
  #allocation0 [shape = 'u32[]', space=smem, size = 0x4, offset = 0x4, fixed_abs, tag = 'smem constant byte address 0x4 - core index']
  #allocation1 [shape = 'u32[72,128]{1,0:T(1,128)}', space=vmem, size = 0x9000, scoped, tag = 'internal scratch']
  #allocation2 [shape = 'bf16[1,10,10,8]{3,2,1,0:T(8,128)(2,1)}', space=vmem, size = 0xa000, scoped, tag = 'scratch operand']
  %s0 = inlined_call_operand.vmem [shape: bf16[2,8,8,8], index: 0, kind: input, shape index: {}]
  %s1 = inlined_call_operand.vmem [shape: bf16[3,3,8,8], index: 1, kind: input, shape index: {}]
  %s2 = inlined_call_operand.vmem [shape: f32[2,64,8], index: 2, kind: input, shape index: {}]
  %s3 = inlined_call_operand.vmem [shape: f32[2,64,8], index: 3, kind: output, shape index: {}]
  %s4 = sld [smem:[#allocation0]]
  $region45: #{basic_block_forward.3} parent=0
    _
  %s6 = ssub.s32 1, %s4
  %s7 = scalar_select 0, %s6, %s4
  loop: start=0, step=1, limit=4
  $region2: #{basic_block_forward.3} parent=0 // loop_pre_header
    _
  $region3: #{basic_block_forward.3} parent=0 // loop_header
    %s9 = sphi 0, %s13
    %p10 = scmp.ge.s32.totalorder %s9, 4
    %s16 = sphi 0, %s28
    %s17 = sphi 0, %s24
    %s18 = sphi 0, %s16
    %s19 = sphi 0, %s17
    %s20 = sphi 0, %s18
    %s21 = sphi 0, %s19
    %s31 = sphi 0, %s33
    %s34 = sphi 0, %s31
    %s35 = sphi 0, %s34
    %s51 = sphi 0, %s35
    %s57 = sphi 0, %s59
    %s60 = sphi 0, %s57
    %s61 = sphi 0, %s60
    %s77 = sphi 0, %s61
    %s85 = sphi 0, %s87
    %s88 = sphi 0, %s85
    %s89 = sphi 0, %s88
    %s105 = sphi 0, %s89
    %s113 = sphi 0, %s115
    %s116 = sphi 0, %s113
    %s117 = sphi 0, %s116
    %s133 = sphi 0, %s117
  $region4: #{basic_block_forward.3} parent=0 // loop_header_branch
    %12 = sbr.rel (%p10) target = $region8
  $region5: #{basic_block_forward.3} parent=0 // loop_body
    %s14 = ssub.s32 %s9, 1
    %s15 = ssub.s32 %s9, 2
    %s22 = sadd.s32 1, %s17
    %p23 = scmp.ge.s32.totalorder %s22, 1
    %s24 = scalar_select %p23, 0, %s22
    %s25 = sadd.s32 1, %s16
    %s26 = scalar_select %p23, %s25, %s16
    %p27 = scmp.ge.s32.totalorder %s26, 2
    %s28 = scalar_select %p27, 0, %s26
    %s29 = ssub.s32 %s16, %s28
    %p30 = scmp.eq.s32.totalorder %s29, 0
    %s32 = sadd.s32 %s31, 1
    %s33 = scalar_select %p30, %s31, %s32
    %p36 = pneg %p30
    %p37 = scmp.eq.s32.totalorder %s9, 1
    %p38 = por %p36, %p37
    %p39 = scmp.ne.s32.totalorder %s31, %s34
    %p40 = scmp.eq.s32.totalorder %s9, 0
    %p41 = por %p39, %p40
    %p42 = scmp.ne.s32.totalorder %s31, %s34
    %p43 = scmp.eq.s32.totalorder %s14, 1
    %p44 = por %p42, %p43
    %p45 = scmp.ne.s32.totalorder %s34, %s35
    %p46 = scmp.eq.s32.totalorder %s14, 0
    %p47 = por %p45, %p46
    %p48 = scmp.ne.s32.totalorder %s34, %s35
    %p49 = scmp.eq.s32.totalorder %s15, 1
    %p50 = por %p48, %p49
    %p52 = scmp.ne.s32.totalorder %s35, %s51
    %p53 = scmp.eq.s32.totalorder %s15, 0
    %p54 = por %p52, %p53
    %s55 = ssub.s32 %s17, %s24
    %p56 = scmp.eq.s32.totalorder %s55, 0
    %s58 = sadd.s32 %s57, 1
    %s59 = scalar_select %p56, %s57, %s58
    %p62 = pneg %p56
    %p63 = scmp.eq.s32.totalorder %s9, 1
    %p64 = por %p62, %p63
    %p65 = scmp.ne.s32.totalorder %s57, %s60
    %p66 = scmp.eq.s32.totalorder %s9, 0
    %p67 = por %p65, %p66
    %p68 = scmp.ne.s32.totalorder %s57, %s60
    %p69 = scmp.eq.s32.totalorder %s14, 1
    %p70 = por %p68, %p69
    %p71 = scmp.ne.s32.totalorder %s60, %s61
    %p72 = scmp.eq.s32.totalorder %s14, 0
    %p73 = por %p71, %p72
    %p74 = scmp.ne.s32.totalorder %s60, %s61
    %p75 = scmp.eq.s32.totalorder %s15, 1
    %p76 = por %p74, %p75
    %p78 = scmp.ne.s32.totalorder %s61, %s77
    %p79 = scmp.eq.s32.totalorder %s15, 0
    %p80 = por %p78, %p79
    %s81 = ssub.s32 %s16, %s28
    %s82 = ssub.s32 %s17, %s24
    %s83 = sor.u32 %s81, %s82
    %p84 = scmp.eq.s32.totalorder %s83, 0
    %s86 = sadd.s32 %s85, 1
    %s87 = scalar_select %p84, %s85, %s86
    %p90 = pneg %p84
    %p91 = scmp.eq.s32.totalorder %s9, 1
    %p92 = por %p90, %p91
    %p93 = scmp.ne.s32.totalorder %s85, %s88
    %p94 = scmp.eq.s32.totalorder %s9, 0
    %p95 = por %p93, %p94
    %p96 = scmp.ne.s32.totalorder %s85, %s88
    %p97 = scmp.eq.s32.totalorder %s14, 1
    %p98 = por %p96, %p97
    %p99 = scmp.ne.s32.totalorder %s88, %s89
    %p100 = scmp.eq.s32.totalorder %s14, 0
    %p101 = por %p99, %p100
    %p102 = scmp.ne.s32.totalorder %s88, %s89
    %p103 = scmp.eq.s32.totalorder %s15, 1
    %p104 = por %p102, %p103
    %p106 = scmp.ne.s32.totalorder %s89, %s105
    %p107 = scmp.eq.s32.totalorder %s15, 0
    %p108 = por %p106, %p107
    %s109 = ssub.s32 %s16, %s28
    %s110 = ssub.s32 %s17, %s24
    %s111 = sor.u32 %s109, %s110
    %p112 = scmp.eq.s32.totalorder %s111, 0
    %s114 = sadd.s32 %s113, 1
    %s115 = scalar_select %p112, %s113, %s114
    %p118 = pneg %p112
    %p119 = scmp.eq.s32.totalorder %s9, 1
    %p120 = por %p118, %p119
    %p121 = scmp.ne.s32.totalorder %s113, %s116
    %p122 = scmp.eq.s32.totalorder %s9, 0
    %p123 = por %p121, %p122
    %p124 = scmp.ne.s32.totalorder %s113, %s116
    %p125 = scmp.eq.s32.totalorder %s14, 1
    %p126 = por %p124, %p125
    %p127 = scmp.ne.s32.totalorder %s116, %s117
    %p128 = scmp.eq.s32.totalorder %s14, 0
    %p129 = por %p127, %p128
    %p130 = scmp.ne.s32.totalorder %s116, %s117
    %p131 = scmp.eq.s32.totalorder %s15, 1
    %p132 = por %p130, %p131
    %p134 = scmp.ne.s32.totalorder %s117, %s133
    %p135 = scmp.eq.s32.totalorder %s15, 0
    %p136 = por %p134, %p135
    %p137 = scmp.le.s32.totalorder 1, %s9
    %p138 = scmp.lt.s32.totalorder %s9, 3
    %p139 = pnand %p137, %p138
    %p140 = pneg %p139
    // Predicated region
    $region9: #{basic_block_forward.3} parent=5 // pred_check
      _
    $region10: #{basic_block_forward.3} parent=5 // pred_check_branch
      %142 = sbr.rel (%p139) target = $region12
    $region11: #{basic_block_forward.3} parent=5 // pred_region
      %s143 = ssub.s32 %s9, 1
      // Predicated region
      $region13: #{basic_block_forward.3} parent=11 // pred_check
        %p144 = pneg %p73
      $region14: #{basic_block_forward.3} parent=11 // pred_check_branch
        %146 = sbr.rel (%p144) target = $region16
      $region15: #{basic_block_forward.3} parent=11 // pred_region
        %p147 = scmp.lt.s32.totalorder %s19, 0
        %s148 = scalar_select %p147, %s19, 0
        %s149 = smul.addr %s148, 4
        %s150 = scalar_lea.vmem %s1, %s149
      $region16: #{basic_block_forward.3} parent=11 // pred_fallthru
        _
    $region12: #{basic_block_forward.3} parent=5 // pred_fallthru
      _
    %p151 = scmp.lt.s32.totalorder %s9, 2
    // Predicated region
    $region17: #{basic_block_forward.3} parent=5 // pred_check
      %p152 = pneg %p151
    $region18: #{basic_block_forward.3} parent=5 // pred_check_branch
      %154 = sbr.rel (%p152) target = $region20
    $region19: #{basic_block_forward.3} parent=5 // pred_region
      // Predicated region
      $region21: #{basic_block_forward.3} parent=19 // pred_check
        %p155 = pneg %p41
      $region22: #{basic_block_forward.3} parent=19 // pred_check_branch
        %157 = sbr.rel (%p155) target = $region24
      $region23: #{basic_block_forward.3} parent=19 // pred_region
        %p158 = scmp.lt.s32.totalorder %s16, 1
        %s159 = scalar_select %p158, %s16, 1
        %s160 = smul.addr %s159, 8
        %s161 = smul.addr %s160, 4
        %s162 = scalar_lea.vmem %s0, %s161
      $region24: #{basic_block_forward.3} parent=19 // pred_fallthru
        _
      // Predicated region
      $region25: #{basic_block_forward.3} parent=19 // pred_check
        %p163 = pneg %p95
      $region26: #{basic_block_forward.3} parent=19 // pred_check_branch
        %165 = sbr.rel (%p163) target = $region28
      $region27: #{basic_block_forward.3} parent=19 // pred_region
        %p166 = scmp.lt.s32.totalorder %s16, 1
        %s167 = scalar_select %p166, %s16, 1
        %p168 = scmp.lt.s32.totalorder %s17, 0
        %s169 = scalar_select %p168, %s17, 0
        %s170 = smul.addr %s167, 8
        %s171 = sadd.s32 %s169, %s170
        %s172 = smul.addr %s171, 8
        %s173 = scalar_lea.vmem %s2, %s172
      $region28: #{basic_block_forward.3} parent=19 // pred_fallthru
        _
    $region20: #{basic_block_forward.3} parent=5 // pred_fallthru
      _
    %p174 = scmp.le.s32.totalorder 1, %s9
    %p175 = scmp.lt.s32.totalorder %s9, 3
    %p176 = pnand %p174, %p175
    %p177 = pneg %p176
    // Predicated region
    $region29: #{basic_block_forward.3} parent=5 // pred_check
      _
    $region30: #{basic_block_forward.3} parent=5 // pred_check_branch
      %179 = sbr.rel (%p176) target = $region32
    $region31: #{basic_block_forward.3} parent=5 // pred_region
      %s180 = ssub.s32 %s9, 1
      %p181 = scmp.lt.s32.totalorder %s18, 1
      %s182 = scalar_select %p181, %s18, 1
      %s183 = smul.addr %s182, 8
      %s184 = smul.addr %s183, 4
      %s185 = scalar_lea.vmem %s0, %s184
      %p186 = pneg %p47
      %p187 = pneg %p44
      %p188 = scmp.lt.s32.totalorder %s19, 0
      %s189 = scalar_select %p188, %s19, 0
      %s190 = smul.addr %s189, 4
      %s191 = scalar_lea.vmem %s1, %s190
      %p192 = pneg %p73
      %p193 = pneg %p70
      %p194 = scmp.lt.s32.totalorder %s18, 1
      %s195 = scalar_select %p194, %s18, 1
      %p196 = scmp.lt.s32.totalorder %s19, 0
      %s197 = scalar_select %p196, %s19, 0
      %s198 = smul.addr %s195, 8
      %s199 = sadd.s32 %s197, %s198
      %s200 = smul.addr %s199, 8
      %s201 = scalar_lea.vmem %s2, %s200
      %p202 = pneg %p101
      %p203 = pneg %p98
      %p204 = pneg %p129
      %p205 = pneg %p126
      %p206 = scmp.lt.s32.totalorder %s18, 1
      %s207 = scalar_select %p206, %s18, 1
      %p208 = scmp.lt.s32.totalorder %s19, 0
      %s209 = scalar_select %p208, %s19, 0
      %s210 = smul.addr %s207, 8
      %s211 = sadd.s32 %s209, %s210
      %s212 = smul.addr %s211, 8
      %s213 = scalar_lea.vmem %s3, %s212
      %p214 = scmp.lt.s32.totalorder %s18, 1
      %s215 = scalar_select %p214, %s18, 1
      %s216 = smul.addr %s215, 8
      %s217 = smul.addr %s216, 4
      %s218 = scalar_lea.vmem %s0, %s217
      %p219 = scmp.lt.s32.totalorder %s19, 0
      %s220 = scalar_select %p219, %s19, 0
      %s221 = smul.addr %s220, 4
      %s222 = scalar_lea.vmem %s1, %s221
      %p223 = scmp.lt.s32.totalorder %s18, 1
      %s224 = scalar_select %p223, %s18, 1
      %p225 = scmp.lt.s32.totalorder %s19, 0
      %s226 = scalar_select %p225, %s19, 0
      %s227 = smul.addr %s224, 8
      %s228 = sadd.s32 %s226, %s227
      %s229 = smul.addr %s228, 8
      %s230 = scalar_lea.vmem %s2, %s229
      %p231 = scmp.lt.s32.totalorder %s18, 1
      %s232 = scalar_select %p231, %s18, 1
      %p233 = scmp.lt.s32.totalorder %s19, 0
      %s234 = scalar_select %p233, %s19, 0
      %s235 = smul.addr %s232, 8
      %s236 = sadd.s32 %s234, %s235
      %s237 = smul.addr %s236, 8
      %s238 = scalar_lea.vmem %s3, %s237
      %vm240 = vcmask 60416
      %241 = vst.msk [vmem:[#allocation2] sm:$0xf] %vm240, 0
      %vm242 = vcmask 57344
      %243 = vst.msk [vmem:[#allocation2 + $0x4] sm:$0x1] %vm242, 0
      %244 = vst.msk [vmem:[#allocation2 + $0x8] sm:$0xf] %vm240, 0
      %245 = vst.msk [vmem:[#allocation2 + $0xc] sm:$0x1] %vm242, 0
      %246 = vst.msk [vmem:[#allocation2 + $0x10] sm:$0xf] %vm240, 0
      %247 = vst.msk [vmem:[#allocation2 + $0x14] sm:$0x1] %vm242, 0
      %248 = vst.msk [vmem:[#allocation2 + $0x18] sm:$0xf] %vm240, 0
      %249 = vst.msk [vmem:[#allocation2 + $0x1c] sm:$0x1] %vm242, 0
      %250 = vst.msk [vmem:[#allocation2 + $0x20] sm:$0xf] %vm240, 0
      %251 = vst.msk [vmem:[#allocation2 + $0x24] sm:$0x1] %vm242, 0
      %252 = vst.msk [vmem:[#allocation2 + $0x28] sm:$0xf] %vm240, 0
      %253 = vst.msk [vmem:[#allocation2 + $0x2c] sm:$0x1] %vm242, 0
      %254 = vst.msk [vmem:[#allocation2 + $0x30] sm:$0xf] %vm240, 0
      %255 = vst.msk [vmem:[#allocation2 + $0x34] sm:$0x1] %vm242, 0
      %256 = vst.msk [vmem:[#allocation2 + $0x38] sm:$0xf] %vm240, 0
      %257 = vst.msk [vmem:[#allocation2 + $0x3c] sm:$0x1] %vm242, 0
      %258 = vst.msk [vmem:[#allocation2 + $0x40] sm:$0xf] %vm240, 0
      %259 = vst.msk [vmem:[#allocation2 + $0x44] sm:$0x1] %vm242, 0
      %260 = vst.msk [vmem:[#allocation2 + $0x48] sm:$0xf] %vm240, 0
      %261 = vst.msk [vmem:[#allocation2 + $0x4c] sm:$0x1] %vm242, 0
      %v262 = vld [vmem:[%s218] sm:$0xf]
      %v263 = vld [vmem:[%s218 + $0x4] sm:$0xf]
      %v264 = vld [vmem:[%s218 + $0x8] sm:$0xf]
      %v265 = vld [vmem:[%s218 + $0xc] sm:$0xf]
      %v266 = vld [vmem:[%s218 + $0x10] sm:$0xf]
      %v267 = vld [vmem:[%s218 + $0x14] sm:$0xf]
      %v268 = vld [vmem:[%s218 + $0x18] sm:$0xf]
      %v269 = vld [vmem:[%s218 + $0x1c] sm:$0xf]
      %v271 = vshrl.u32 %v262, 16
      %v273 = vrot.slane %v271, 7
      %v274 = vshll.u32 %v262, 16
      %v276 = vor.u32 %v273, %v274
      %v277 = vrot.slane %v273, 4
      %v279 = vshrl.u32 %v263, 16
      %v281 = vrot.slane %v279, 7
      %v282 = vshll.u32 %v263, 16
      %v284 = vor.u32 %v281, %v282
      %v285 = vrot.slane %v281, 4
      %v287 = vshrl.u32 %v264, 16
      %v289 = vrot.slane %v287, 7
      %v290 = vshll.u32 %v264, 16
      %v292 = vor.u32 %v289, %v290
      %v293 = vrot.slane %v289, 4
      %v295 = vshrl.u32 %v265, 16
      %v297 = vrot.slane %v295, 7
      %v298 = vshll.u32 %v265, 16
      %v300 = vor.u32 %v297, %v298
      %v301 = vrot.slane %v297, 4
      %v303 = vshrl.u32 %v266, 16
      %v305 = vrot.slane %v303, 7
      %v306 = vshll.u32 %v266, 16
      %v308 = vor.u32 %v305, %v306
      %v309 = vrot.slane %v305, 4
      %v311 = vshrl.u32 %v267, 16
      %v313 = vrot.slane %v311, 7
      %v314 = vshll.u32 %v267, 16
      %v316 = vor.u32 %v313, %v314
      %v317 = vrot.slane %v313, 4
      %v319 = vshrl.u32 %v268, 16
      %v321 = vrot.slane %v319, 7
      %v322 = vshll.u32 %v268, 16
      %v324 = vor.u32 %v321, %v322
      %v325 = vrot.slane %v321, 4
      %v327 = vshrl.u32 %v269, 16
      %v329 = vrot.slane %v327, 7
      %v330 = vshll.u32 %v269, 16
      %v332 = vor.u32 %v329, %v330
      %v333 = vrot.slane %v329, 4
      %s350 = scalar_lea.vmem [#allocation2], 8
      %vm351 = vcmask 60416
      %vm352 = vsmask.f32 7938
      %vm353 = vmand %vm351, %vm352
      %v354 = vld [vmem:[%s350] sm:$0xf]
      %v355 = vsel %vm353, %v276, %v354
      %356 = vst [vmem:[%s350] sm:$0xf] %v355
      %vm357 = vcmask 57344
      %vm358 = vsmask.f32 256
      %vm359 = vmand %vm357, %vm358
      %v360 = vld [vmem:[%s350 + $0x4] sm:$0x1]
      %v361 = vsel %vm359, %v277, %v360
      %362 = vst [vmem:[%s350 + $0x4] sm:$0x1] %v361
      %v363 = vld [vmem:[%s350 + $0x8] sm:$0xf]
      %v364 = vsel %vm353, %v284, %v363
      %365 = vst [vmem:[%s350 + $0x8] sm:$0xf] %v364
      %v366 = vld [vmem:[%s350 + $0xc] sm:$0x1]
      %v367 = vsel %vm359, %v285, %v366
      %368 = vst [vmem:[%s350 + $0xc] sm:$0x1] %v367
      %v369 = vld [vmem:[%s350 + $0x10] sm:$0xf]
      %v370 = vsel %vm353, %v292, %v369
      %371 = vst [vmem:[%s350 + $0x10] sm:$0xf] %v370
      %v372 = vld [vmem:[%s350 + $0x14] sm:$0x1]
      %v373 = vsel %vm359, %v293, %v372
      %374 = vst [vmem:[%s350 + $0x14] sm:$0x1] %v373
      %v375 = vld [vmem:[%s350 + $0x18] sm:$0xf]
      %v376 = vsel %vm353, %v300, %v375
      %377 = vst [vmem:[%s350 + $0x18] sm:$0xf] %v376
      %v378 = vld [vmem:[%s350 + $0x1c] sm:$0x1]
      %v379 = vsel %vm359, %v301, %v378
      %380 = vst [vmem:[%s350 + $0x1c] sm:$0x1] %v379
      %v381 = vld [vmem:[%s350 + $0x20] sm:$0xf]
      %v382 = vsel %vm353, %v308, %v381
      %383 = vst [vmem:[%s350 + $0x20] sm:$0xf] %v382
      %v384 = vld [vmem:[%s350 + $0x24] sm:$0x1]
      %v385 = vsel %vm359, %v309, %v384
      %386 = vst [vmem:[%s350 + $0x24] sm:$0x1] %v385
      %v387 = vld [vmem:[%s350 + $0x28] sm:$0xf]
      %v388 = vsel %vm353, %v316, %v387
      %389 = vst [vmem:[%s350 + $0x28] sm:$0xf] %v388
      %v390 = vld [vmem:[%s350 + $0x2c] sm:$0x1]
      %v391 = vsel %vm359, %v317, %v390
      %392 = vst [vmem:[%s350 + $0x2c] sm:$0x1] %v391
      %v393 = vld [vmem:[%s350 + $0x30] sm:$0xf]
      %v394 = vsel %vm353, %v324, %v393
      %395 = vst [vmem:[%s350 + $0x30] sm:$0xf] %v394
      %v396 = vld [vmem:[%s350 + $0x34] sm:$0x1]
      %v397 = vsel %vm359, %v325, %v396
      %398 = vst [vmem:[%s350 + $0x34] sm:$0x1] %v397
      %v399 = vld [vmem:[%s350 + $0x38] sm:$0xf]
      %v400 = vsel %vm353, %v332, %v399
      %401 = vst [vmem:[%s350 + $0x38] sm:$0xf] %v400
      %v402 = vld [vmem:[%s350 + $0x3c] sm:$0x1]
      %v403 = vsel %vm359, %v333, %v402
      %404 = vst [vmem:[%s350 + $0x3c] sm:$0x1] %v403
      %v405 = vld [vmem:[#allocation2] sm:$0xf]
      %v406 = vld [vmem:[#allocation2 + $0x8] sm:$0xf]
      %v407 = vld [vmem:[#allocation2 + $0x10] sm:$0xf]
      %v408 = vld [vmem:[#allocation2 + $0x18] sm:$0xf]
      %v409 = vld [vmem:[#allocation2 + $0x20] sm:$0xf]
      %v410 = vld [vmem:[#allocation2 + $0x28] sm:$0xf]
      %v411 = vld [vmem:[#allocation2 + $0x30] sm:$0xf]
      %v412 = vld [vmem:[#allocation2 + $0x38] sm:$0xf]
      %v413 = vld [vmem:[%s222] sm:$0xf]
      %v414 = vld [vmem:[#allocation2 + $0x4] sm:$0x1]
      %v415 = vld [vmem:[#allocation2 + $0xc] sm:$0x1]
      %v416 = vld [vmem:[#allocation2 + $0x14] sm:$0x1]
      %v417 = vld [vmem:[#allocation2 + $0x1c] sm:$0x1]
      %v418 = vld [vmem:[#allocation2 + $0x24] sm:$0x1]
      %v419 = vld [vmem:[#allocation2 + $0x2c] sm:$0x1]
      %v420 = vld [vmem:[#allocation2 + $0x34] sm:$0x1]
      %v421 = vld [vmem:[#allocation2 + $0x3c] sm:$0x1]
      %vm422 = vsmask.f32 3328
      %vm423 = vsmask.f32 7440
      %vm424 = vmor %vm422, %vm423
      %v426 = vshrl.u32 %v405, 16
      %v428 = vrot.slane %v426, 4
      %v429 = vshll.u32 %v405, 16
      %v431 = vrot.slane %v429, 5
      %v432 = vor.u32 %v428, %v431
      %v433 = vrot.slane %v432, 4
      %v435 = vshll.u32 %v414, 16
      %v437 = vrot.slane %v435, 5
      %v438 = vsel %vm424, %v433, %v437
      %v440 = vshrl.u32 %v406, 16
      %v442 = vrot.slane %v440, 4
      %v443 = vshll.u32 %v406, 16
      %v445 = vrot.slane %v443, 5
      %v446 = vor.u32 %v442, %v445
      %v447 = vrot.slane %v446, 4
      %v449 = vshll.u32 %v415, 16
      %v451 = vrot.slane %v449, 5
      %v452 = vsel %vm424, %v447, %v451
      %v454 = vshrl.u32 %v407, 16
      %v456 = vrot.slane %v454, 4
      %v457 = vshll.u32 %v407, 16
      %v459 = vrot.slane %v457, 5
      %v460 = vor.u32 %v456, %v459
      %v461 = vrot.slane %v460, 4
      %v463 = vshll.u32 %v416, 16
      %v465 = vrot.slane %v463, 5
      %v466 = vsel %vm424, %v461, %v465
      %v468 = vshrl.u32 %v408, 16
      %v470 = vrot.slane %v468, 4
      %v471 = vshll.u32 %v408, 16
      %v473 = vrot.slane %v471, 5
      %v474 = vor.u32 %v470, %v473
      %v475 = vrot.slane %v474, 4
      %v477 = vshll.u32 %v417, 16
      %v479 = vrot.slane %v477, 5
      %v480 = vsel %vm424, %v475, %v479
      %v482 = vshrl.u32 %v409, 16
      %v484 = vrot.slane %v482, 4
      %v485 = vshll.u32 %v409, 16
      %v487 = vrot.slane %v485, 5
      %v488 = vor.u32 %v484, %v487
      %v489 = vrot.slane %v488, 4
      %v491 = vshll.u32 %v418, 16
      %v493 = vrot.slane %v491, 5
      %v494 = vsel %vm424, %v489, %v493
      %v496 = vshrl.u32 %v410, 16
      %v498 = vrot.slane %v496, 4
      %v499 = vshll.u32 %v410, 16
      %v501 = vrot.slane %v499, 5
      %v502 = vor.u32 %v498, %v501
      %v503 = vrot.slane %v502, 4
      %v505 = vshll.u32 %v419, 16
      %v507 = vrot.slane %v505, 5
      %v508 = vsel %vm424, %v503, %v507
      %v510 = vshrl.u32 %v411, 16
      %v512 = vrot.slane %v510, 4
      %v513 = vshll.u32 %v411, 16
      %v515 = vrot.slane %v513, 5
      %v516 = vor.u32 %v512, %v515
      %v517 = vrot.slane %v516, 4
      %v519 = vshll.u32 %v420, 16
      %v521 = vrot.slane %v519, 5
      %v522 = vsel %vm424, %v517, %v521
      %v524 = vshrl.u32 %v412, 16
      %v526 = vrot.slane %v524, 4
      %v527 = vshll.u32 %v412, 16
      %v529 = vrot.slane %v527, 5
      %v530 = vor.u32 %v526, %v529
      %v531 = vrot.slane %v530, 4
      %v533 = vshll.u32 %v421, 16
      %v535 = vrot.slane %v533, 5
      %v536 = vsel %vm424, %v531, %v535
      %s537 = scalar_lea.vmem %s222, 4
      %v538 = vld [vmem:[%s537] sm:$0xf]
      %v539 = vunpack.c.l.b16 %v438
      %v540 = vunpack.c.l.b16 %v452
      %v541 = vunpack.c.l.b16 %v466
      %v542 = vunpack.c.l.b16 %v480
      %v543 = vunpack.c.l.b16 %v494
      %v544 = vunpack.c.l.b16 %v508
      %v545 = vunpack.c.l.b16 %v522
      %v546 = vunpack.c.l.b16 %v536
      %v547 = vpack.c.b16 %v540, %v539
      %v548 = vpack.c.b16 %v542, %v541
      %v549 = vpack.c.b16 %v544, %v543
      %v550 = vpack.c.b16 %v546, %v545
      %vm551 = vcmask 64512
      %v553 = vsel %vm551, %v547, 0
      %v556 = vsel %vm551, %v548, 0
      %v559 = vsel %vm551, %v549, 0
      %v562 = vsel %vm551, %v550, 0
      %vm564 = vcmask 1043456
      %v566 = vsel %vm564, %v538, 0
      %568 = vmatpush.bf16.msra.mxu0 0
      %569 = vmatpush.bf16.msra.mxu0 0
      %570 = vmatpush.bf16.msra.mxu0 0
      %571 = vmatpush.bf16.msra.mxu0 0
      %572 = vmatpush.bf16.msra.mxu0 0
      %573 = vmatpush.bf16.msra.mxu0 0
      %574 = vmatpush.bf16.msra.mxu0 0
      %575 = vmatpush.bf16.msra.mxu0 %v566
      %576 = vmatmul.bf16.gmra.mxu0 %v553
      %v577 = vpop.f32.mrf.mxu0
      %v578 = vadd.f32 0.0, %v577
      %v579 = vpop.f32.mrf.mxu0
      %v580 = vadd.f32 0.0, %v579
      %581 = vmatmul.bf16.gmra.mxu0 %v556
      %v582 = vpop.f32.mrf.mxu0
      %v583 = vadd.f32 0.0, %v582
      %v584 = vpop.f32.mrf.mxu0
      %v585 = vadd.f32 0.0, %v584
      %586 = vmatmul.bf16.gmra.mxu0 %v559
      %v587 = vpop.f32.mrf.mxu0
      %v588 = vadd.f32 0.0, %v587
      %v589 = vpop.f32.mrf.mxu0
      %v590 = vadd.f32 0.0, %v589
      %591 = vmatmul.bf16.gmra.mxu0 %v562
      %v592 = vpop.f32.mrf.mxu0
      %v593 = vadd.f32 0.0, %v592
      %v594 = vpop.f32.mrf.mxu0
      %v595 = vadd.f32 0.0, %v594
      %596 = vdwg.mxu0
      %v605 = vunpack.c.l.b16 %v405
      %v606 = vunpack.c.l.b16 %v406
      %v607 = vunpack.c.l.b16 %v407
      %v608 = vunpack.c.l.b16 %v408
      %v609 = vunpack.c.l.b16 %v409
      %v610 = vunpack.c.l.b16 %v410
      %v611 = vunpack.c.l.b16 %v411
      %v612 = vunpack.c.l.b16 %v412
      %v613 = vpack.c.b16 %v606, %v605
      %v614 = vpack.c.b16 %v608, %v607
      %v615 = vpack.c.b16 %v610, %v609
      %v616 = vpack.c.b16 %v612, %v611
      %v618 = vsel %vm551, %v613, 0
      %v621 = vsel %vm551, %v614, 0
      %v624 = vsel %vm551, %v615, 0
      %v627 = vsel %vm551, %v616, 0
      %v630 = vsel %vm564, %v413, 0
      %632 = vmatpush.bf16.msra.mxu0 0
      %633 = vmatpush.bf16.msra.mxu0 0
      %634 = vmatpush.bf16.msra.mxu0 0
      %635 = vmatpush.bf16.msra.mxu0 0
      %636 = vmatpush.bf16.msra.mxu0 0
      %637 = vmatpush.bf16.msra.mxu0 0
      %638 = vmatpush.bf16.msra.mxu0 0
      %639 = vmatpush.bf16.msra.mxu0 %v630
      %640 = vmatmul.bf16.gmra.mxu0 %v618
      %v641 = vpop.f32.mrf.mxu0
      %v642 = vadd.f32 %v578, %v641
      %v643 = vpop.f32.mrf.mxu0
      %v644 = vadd.f32 %v580, %v643
      %645 = vmatmul.bf16.gmra.mxu0 %v621
      %v646 = vpop.f32.mrf.mxu0
      %v647 = vadd.f32 %v583, %v646
      %v648 = vpop.f32.mrf.mxu0
      %v649 = vadd.f32 %v585, %v648
      %650 = vmatmul.bf16.gmra.mxu0 %v624
      %v651 = vpop.f32.mrf.mxu0
      %v652 = vadd.f32 %v588, %v651
      %v653 = vpop.f32.mrf.mxu0
      %v654 = vadd.f32 %v590, %v653
      %655 = vmatmul.bf16.gmra.mxu0 %v627
      %v656 = vpop.f32.mrf.mxu0
      %v657 = vadd.f32 %v593, %v656
      %v658 = vpop.f32.mrf.mxu0
      %v659 = vadd.f32 %v595, %v658
      %660 = vdwg.mxu0
      %v661 = vld [vmem:[#allocation2] sm:$0xe]
      %v662 = vld [vmem:[#allocation2 + $0x8] sm:$0xe]
      %v663 = vld [vmem:[#allocation2 + $0x10] sm:$0xe]
      %v664 = vld [vmem:[#allocation2 + $0x18] sm:$0xe]
      %v665 = vld [vmem:[#allocation2 + $0x20] sm:$0xe]
      %v666 = vld [vmem:[#allocation2 + $0x28] sm:$0xe]
      %v667 = vld [vmem:[#allocation2 + $0x30] sm:$0xe]
      %v668 = vld [vmem:[#allocation2 + $0x38] sm:$0xe]
      %vm685 = vcmask 1042432
      %vm686 = vcmask 1046532
      %vm687 = vmor %vm685, %vm686
      %v688 = vrot.slane %v661, 5
      %v689 = vrot.slane %v688, 4
      %v690 = vrot.slane %v414, 5
      %v691 = vsel %vm687, %v689, %v690
      %v692 = vrot.slane %v662, 5
      %v693 = vrot.slane %v692, 4
      %v694 = vrot.slane %v415, 5
      %v695 = vsel %vm687, %v693, %v694
      %v696 = vrot.slane %v663, 5
      %v697 = vrot.slane %v696, 4
      %v698 = vrot.slane %v416, 5
      %v699 = vsel %vm687, %v697, %v698
      %v700 = vrot.slane %v664, 5
      %v701 = vrot.slane %v700, 4
      %v702 = vrot.slane %v417, 5
      %v703 = vsel %vm687, %v701, %v702
      %v704 = vrot.slane %v665, 5
      %v705 = vrot.slane %v704, 4
      %v706 = vrot.slane %v418, 5
      %v707 = vsel %vm687, %v705, %v706
      %v708 = vrot.slane %v666, 5
      %v709 = vrot.slane %v708, 4
      %v710 = vrot.slane %v419, 5
      %v711 = vsel %vm687, %v709, %v710
      %v712 = vrot.slane %v667, 5
      %v713 = vrot.slane %v712, 4
      %v714 = vrot.slane %v420, 5
      %v715 = vsel %vm687, %v713, %v714
      %v716 = vrot.slane %v668, 5
      %v717 = vrot.slane %v716, 4
      %v718 = vrot.slane %v421, 5
      %v719 = vsel %vm687, %v717, %v718
      %s720 = scalar_lea.vmem %s222, 8
      %v721 = vld [vmem:[%s720] sm:$0xf]
      %v722 = vunpack.c.l.b16 %v691
      %v723 = vunpack.c.l.b16 %v695
      %v724 = vunpack.c.l.b16 %v699
      %v725 = vunpack.c.l.b16 %v703
      %v726 = vunpack.c.l.b16 %v707
      %v727 = vunpack.c.l.b16 %v711
      %v728 = vunpack.c.l.b16 %v715
      %v729 = vunpack.c.l.b16 %v719
      %v730 = vpack.c.b16 %v723, %v722
      %v731 = vpack.c.b16 %v725, %v724
      %v732 = vpack.c.b16 %v727, %v726
      %v733 = vpack.c.b16 %v729, %v728
      %v735 = vsel %vm551, %v730, 0
      %v738 = vsel %vm551, %v731, 0
      %v741 = vsel %vm551, %v732, 0
      %v744 = vsel %vm551, %v733, 0
      %v747 = vsel %vm564, %v721, 0
      %749 = vmatpush.bf16.msra.mxu0 0
      %750 = vmatpush.bf16.msra.mxu0 0
      %751 = vmatpush.bf16.msra.mxu0 0
      %752 = vmatpush.bf16.msra.mxu0 0
      %753 = vmatpush.bf16.msra.mxu0 0
      %754 = vmatpush.bf16.msra.mxu0 0
      %755 = vmatpush.bf16.msra.mxu0 0
      %756 = vmatpush.bf16.msra.mxu0 %v747
      %757 = vmatmul.bf16.gmra.mxu0 %v735
      %v758 = vpop.f32.mrf.mxu0
      %v759 = vadd.f32 0.0, %v758
      %v760 = vpop.f32.mrf.mxu0
      %v761 = vadd.f32 0.0, %v760
      %762 = vmatmul.bf16.gmra.mxu0 %v738
      %v763 = vpop.f32.mrf.mxu0
      %v764 = vadd.f32 0.0, %v763
      %v765 = vpop.f32.mrf.mxu0
      %v766 = vadd.f32 0.0, %v765
      %767 = vmatmul.bf16.gmra.mxu0 %v741
      %v768 = vpop.f32.mrf.mxu0
      %v769 = vadd.f32 0.0, %v768
      %v770 = vpop.f32.mrf.mxu0
      %v771 = vadd.f32 0.0, %v770
      %772 = vmatmul.bf16.gmra.mxu0 %v744
      %v773 = vpop.f32.mrf.mxu0
      %v774 = vadd.f32 0.0, %v773
      %v775 = vpop.f32.mrf.mxu0
      %v776 = vadd.f32 0.0, %v775
      %777 = vdwg.mxu0
      %v778 = vadd.f32 %v642, %v759
      %v779 = vadd.f32 %v644, %v761
      %v780 = vadd.f32 %v647, %v764
      %v781 = vadd.f32 %v649, %v766
      %v782 = vadd.f32 %v652, %v769
      %v783 = vadd.f32 %v654, %v771
      %v784 = vadd.f32 %v657, %v774
      %v785 = vadd.f32 %v659, %v776
      %v786 = vld [vmem:[%s350] sm:$0xf]
      %v787 = vld [vmem:[%s350 + $0x8] sm:$0xf]
      %v788 = vld [vmem:[%s350 + $0x10] sm:$0xf]
      %v789 = vld [vmem:[%s350 + $0x18] sm:$0xf]
      %v790 = vld [vmem:[%s350 + $0x20] sm:$0xf]
      %v791 = vld [vmem:[%s350 + $0x28] sm:$0xf]
      %v792 = vld [vmem:[%s350 + $0x30] sm:$0xf]
      %v793 = vld [vmem:[%s350 + $0x38] sm:$0xf]
      %s794 = scalar_lea.vmem %s222, 12
      %v795 = vld [vmem:[%s794] sm:$0xf]
      %v804 = vunpack.c.l.b16 %v786
      %v805 = vunpack.c.l.b16 %v787
      %v806 = vunpack.c.l.b16 %v788
      %v807 = vunpack.c.l.b16 %v789
      %v808 = vunpack.c.l.b16 %v790
      %v809 = vunpack.c.l.b16 %v791
      %v810 = vunpack.c.l.b16 %v792
      %v811 = vunpack.c.l.b16 %v793
      %v812 = vpack.c.b16 %v805, %v804
      %v813 = vpack.c.b16 %v807, %v806
      %v814 = vpack.c.b16 %v809, %v808
      %v815 = vpack.c.b16 %v811, %v810
      %v817 = vsel %vm551, %v812, 0
      %v820 = vsel %vm551, %v813, 0
      %v823 = vsel %vm551, %v814, 0
      %v826 = vsel %vm551, %v815, 0
      %v829 = vsel %vm564, %v795, 0
      %831 = vmatpush.bf16.msra.mxu0 0
      %832 = vmatpush.bf16.msra.mxu0 0
      %833 = vmatpush.bf16.msra.mxu0 0
      %834 = vmatpush.bf16.msra.mxu0 0
      %835 = vmatpush.bf16.msra.mxu0 0
      %836 = vmatpush.bf16.msra.mxu0 0
      %837 = vmatpush.bf16.msra.mxu0 0
      %838 = vmatpush.bf16.msra.mxu0 %v829
      %839 = vmatmul.bf16.gmra.mxu0 %v817
      %v840 = vpop.f32.mrf.mxu0
      %v841 = vadd.f32 0.0, %v840
      %v842 = vpop.f32.mrf.mxu0
      %v843 = vadd.f32 0.0, %v842
      %844 = vmatmul.bf16.gmra.mxu0 %v820
      %v845 = vpop.f32.mrf.mxu0
      %v846 = vadd.f32 0.0, %v845
      %v847 = vpop.f32.mrf.mxu0
      %v848 = vadd.f32 0.0, %v847
      %849 = vmatmul.bf16.gmra.mxu0 %v823
      %v850 = vpop.f32.mrf.mxu0
      %v851 = vadd.f32 0.0, %v850
      %v852 = vpop.f32.mrf.mxu0
      %v853 = vadd.f32 0.0, %v852
      %854 = vmatmul.bf16.gmra.mxu0 %v826
      %v855 = vpop.f32.mrf.mxu0
      %v856 = vadd.f32 0.0, %v855
      %v857 = vpop.f32.mrf.mxu0
      %v858 = vadd.f32 0.0, %v857
      %859 = vdwg.mxu0
      %v860 = vadd.f32 %v778, %v841
      %v861 = vadd.f32 %v779, %v843
      %v862 = vadd.f32 %v780, %v846
      %v863 = vadd.f32 %v781, %v848
      %v864 = vadd.f32 %v782, %v851
      %v865 = vadd.f32 %v783, %v853
      %v866 = vadd.f32 %v784, %v856
      %v867 = vadd.f32 %v785, %v858
      %v868 = vld [vmem:[%s350] sm:$0xf]
      %v869 = vld [vmem:[%s350 + $0x4] sm:$0x1]
      %v870 = vld [vmem:[%s350 + $0x8] sm:$0xf]
      %v871 = vld [vmem:[%s350 + $0xc] sm:$0x1]
      %v872 = vld [vmem:[%s350 + $0x10] sm:$0xf]
      %v873 = vld [vmem:[%s350 + $0x14] sm:$0x1]
      %v874 = vld [vmem:[%s350 + $0x18] sm:$0xf]
      %v875 = vld [vmem:[%s350 + $0x1c] sm:$0x1]
      %v876 = vld [vmem:[%s350 + $0x20] sm:$0xf]
      %v877 = vld [vmem:[%s350 + $0x24] sm:$0x1]
      %v878 = vld [vmem:[%s350 + $0x28] sm:$0xf]
      %v879 = vld [vmem:[%s350 + $0x2c] sm:$0x1]
      %v880 = vld [vmem:[%s350 + $0x30] sm:$0xf]
      %v881 = vld [vmem:[%s350 + $0x34] sm:$0x1]
      %v882 = vld [vmem:[%s350 + $0x38] sm:$0xf]
      %v883 = vld [vmem:[%s350 + $0x3c] sm:$0x1]
      %v885 = vshrl.u32 %v868, 16
      %v887 = vrot.slane %v885, 4
      %v888 = vshll.u32 %v868, 16
      %v890 = vrot.slane %v888, 5
      %v891 = vor.u32 %v887, %v890
      %v892 = vrot.slane %v891, 4
      %v894 = vshll.u32 %v869, 16
      %v896 = vrot.slane %v894, 5
      %v897 = vsel %vm424, %v892, %v896
      %v899 = vshrl.u32 %v870, 16
      %v901 = vrot.slane %v899, 4
      %v902 = vshll.u32 %v870, 16
      %v904 = vrot.slane %v902, 5
      %v905 = vor.u32 %v901, %v904
      %v906 = vrot.slane %v905, 4
      %v908 = vshll.u32 %v871, 16
      %v910 = vrot.slane %v908, 5
      %v911 = vsel %vm424, %v906, %v910
      %v913 = vshrl.u32 %v872, 16
      %v915 = vrot.slane %v913, 4
      %v916 = vshll.u32 %v872, 16
      %v918 = vrot.slane %v916, 5
      %v919 = vor.u32 %v915, %v918
      %v920 = vrot.slane %v919, 4
      %v922 = vshll.u32 %v873, 16
      %v924 = vrot.slane %v922, 5
      %v925 = vsel %vm424, %v920, %v924
      %v927 = vshrl.u32 %v874, 16
      %v929 = vrot.slane %v927, 4
      %v930 = vshll.u32 %v874, 16
      %v932 = vrot.slane %v930, 5
      %v933 = vor.u32 %v929, %v932
      %v934 = vrot.slane %v933, 4
      %v936 = vshll.u32 %v875, 16
      %v938 = vrot.slane %v936, 5
      %v939 = vsel %vm424, %v934, %v938
      %v941 = vshrl.u32 %v876, 16
      %v943 = vrot.slane %v941, 4
      %v944 = vshll.u32 %v876, 16
      %v946 = vrot.slane %v944, 5
      %v947 = vor.u32 %v943, %v946
      %v948 = vrot.slane %v947, 4
      %v950 = vshll.u32 %v877, 16
      %v952 = vrot.slane %v950, 5
      %v953 = vsel %vm424, %v948, %v952
      %v955 = vshrl.u32 %v878, 16
      %v957 = vrot.slane %v955, 4
      %v958 = vshll.u32 %v878, 16
      %v960 = vrot.slane %v958, 5
      %v961 = vor.u32 %v957, %v960
      %v962 = vrot.slane %v961, 4
      %v964 = vshll.u32 %v879, 16
      %v966 = vrot.slane %v964, 5
      %v967 = vsel %vm424, %v962, %v966
      %v969 = vshrl.u32 %v880, 16
      %v971 = vrot.slane %v969, 4
      %v972 = vshll.u32 %v880, 16
      %v974 = vrot.slane %v972, 5
      %v975 = vor.u32 %v971, %v974
      %v976 = vrot.slane %v975, 4
      %v978 = vshll.u32 %v881, 16
      %v980 = vrot.slane %v978, 5
      %v981 = vsel %vm424, %v976, %v980
      %v983 = vshrl.u32 %v882, 16
      %v985 = vrot.slane %v983, 4
      %v986 = vshll.u32 %v882, 16
      %v988 = vrot.slane %v986, 5
      %v989 = vor.u32 %v985, %v988
      %v990 = vrot.slane %v989, 4
      %v992 = vshll.u32 %v883, 16
      %v994 = vrot.slane %v992, 5
      %v995 = vsel %vm424, %v990, %v994
      %s996 = scalar_lea.vmem %s222, 16
      %v997 = vld [vmem:[%s996] sm:$0xf]
      %v998 = vunpack.c.l.b16 %v897
      %v999 = vunpack.c.l.b16 %v911
      %v1000 = vunpack.c.l.b16 %v925
      %v1001 = vunpack.c.l.b16 %v939
      %v1002 = vunpack.c.l.b16 %v953
      %v1003 = vunpack.c.l.b16 %v967
      %v1004 = vunpack.c.l.b16 %v981
      %v1005 = vunpack.c.l.b16 %v995
      %v1006 = vpack.c.b16 %v999, %v998
      %v1007 = vpack.c.b16 %v1001, %v1000
      %v1008 = vpack.c.b16 %v1003, %v1002
      %v1009 = vpack.c.b16 %v1005, %v1004
      %v1011 = vsel %vm551, %v1006, 0
      %v1014 = vsel %vm551, %v1007, 0
      %v1017 = vsel %vm551, %v1008, 0
      %v1020 = vsel %vm551, %v1009, 0
      %v1023 = vsel %vm564, %v997, 0
      %1025 = vmatpush.bf16.msra.mxu0 0
      %1026 = vmatpush.bf16.msra.mxu0 0
      %1027 = vmatpush.bf16.msra.mxu0 0
      %1028 = vmatpush.bf16.msra.mxu0 0
      %1029 = vmatpush.bf16.msra.mxu0 0
      %1030 = vmatpush.bf16.msra.mxu0 0
      %1031 = vmatpush.bf16.msra.mxu0 0
      %1032 = vmatpush.bf16.msra.mxu0 %v1023
      %1033 = vmatmul.bf16.gmra.mxu0 %v1011
      %v1034 = vpop.f32.mrf.mxu0
      %v1035 = vadd.f32 0.0, %v1034
      %v1036 = vpop.f32.mrf.mxu0
      %v1037 = vadd.f32 0.0, %v1036
      %1038 = vmatmul.bf16.gmra.mxu0 %v1014
      %v1039 = vpop.f32.mrf.mxu0
      %v1040 = vadd.f32 0.0, %v1039
      %v1041 = vpop.f32.mrf.mxu0
      %v1042 = vadd.f32 0.0, %v1041
      %1043 = vmatmul.bf16.gmra.mxu0 %v1017
      %v1044 = vpop.f32.mrf.mxu0
      %v1045 = vadd.f32 0.0, %v1044
      %v1046 = vpop.f32.mrf.mxu0
      %v1047 = vadd.f32 0.0, %v1046
      %1048 = vmatmul.bf16.gmra.mxu0 %v1020
      %v1049 = vpop.f32.mrf.mxu0
      %v1050 = vadd.f32 0.0, %v1049
      %v1051 = vpop.f32.mrf.mxu0
      %v1052 = vadd.f32 0.0, %v1051
      %1053 = vdwg.mxu0
      %v1054 = vadd.f32 %v860, %v1035
      %v1055 = vadd.f32 %v861, %v1037
      %v1056 = vadd.f32 %v862, %v1040
      %v1057 = vadd.f32 %v863, %v1042
      %v1058 = vadd.f32 %v864, %v1045
      %v1059 = vadd.f32 %v865, %v1047
      %v1060 = vadd.f32 %v866, %v1050
      %v1061 = vadd.f32 %v867, %v1052
      %v1062 = vld [vmem:[%s350] sm:$0xe]
      %v1063 = vld [vmem:[%s350 + $0x8] sm:$0xe]
      %v1064 = vld [vmem:[%s350 + $0x10] sm:$0xe]
      %v1065 = vld [vmem:[%s350 + $0x18] sm:$0xe]
      %v1066 = vld [vmem:[%s350 + $0x20] sm:$0xe]
      %v1067 = vld [vmem:[%s350 + $0x28] sm:$0xe]
      %v1068 = vld [vmem:[%s350 + $0x30] sm:$0xe]
      %v1069 = vld [vmem:[%s350 + $0x38] sm:$0xe]
      %v1086 = vrot.slane %v1062, 5
      %v1087 = vrot.slane %v1086, 4
      %v1088 = vrot.slane %v869, 5
      %v1089 = vsel %vm687, %v1087, %v1088
      %v1090 = vrot.slane %v1063, 5
      %v1091 = vrot.slane %v1090, 4
      %v1092 = vrot.slane %v871, 5
      %v1093 = vsel %vm687, %v1091, %v1092
      %v1094 = vrot.slane %v1064, 5
      %v1095 = vrot.slane %v1094, 4
      %v1096 = vrot.slane %v873, 5
      %v1097 = vsel %vm687, %v1095, %v1096
      %v1098 = vrot.slane %v1065, 5
      %v1099 = vrot.slane %v1098, 4
      %v1100 = vrot.slane %v875, 5
      %v1101 = vsel %vm687, %v1099, %v1100
      %v1102 = vrot.slane %v1066, 5
      %v1103 = vrot.slane %v1102, 4
      %v1104 = vrot.slane %v877, 5
      %v1105 = vsel %vm687, %v1103, %v1104
      %v1106 = vrot.slane %v1067, 5
      %v1107 = vrot.slane %v1106, 4
      %v1108 = vrot.slane %v879, 5
      %v1109 = vsel %vm687, %v1107, %v1108
      %v1110 = vrot.slane %v1068, 5
      %v1111 = vrot.slane %v1110, 4
      %v1112 = vrot.slane %v881, 5
      %v1113 = vsel %vm687, %v1111, %v1112
      %v1114 = vrot.slane %v1069, 5
      %v1115 = vrot.slane %v1114, 4
      %v1116 = vrot.slane %v883, 5
      %v1117 = vsel %vm687, %v1115, %v1116
      %s1118 = scalar_lea.vmem %s222, 20
      %v1119 = vld [vmem:[%s1118] sm:$0xf]
      %v1120 = vunpack.c.l.b16 %v1089
      %v1121 = vunpack.c.l.b16 %v1093
      %v1122 = vunpack.c.l.b16 %v1097
      %v1123 = vunpack.c.l.b16 %v1101
      %v1124 = vunpack.c.l.b16 %v1105
      %v1125 = vunpack.c.l.b16 %v1109
      %v1126 = vunpack.c.l.b16 %v1113
      %v1127 = vunpack.c.l.b16 %v1117
      %v1128 = vpack.c.b16 %v1121, %v1120
      %v1129 = vpack.c.b16 %v1123, %v1122
      %v1130 = vpack.c.b16 %v1125, %v1124
      %v1131 = vpack.c.b16 %v1127, %v1126
      %v1133 = vsel %vm551, %v1128, 0
      %v1136 = vsel %vm551, %v1129, 0
      %v1139 = vsel %vm551, %v1130, 0
      %v1142 = vsel %vm551, %v1131, 0
      %v1145 = vsel %vm564, %v1119, 0
      %1147 = vmatpush.bf16.msra.mxu0 0
      %1148 = vmatpush.bf16.msra.mxu0 0
      %1149 = vmatpush.bf16.msra.mxu0 0
      %1150 = vmatpush.bf16.msra.mxu0 0
      %1151 = vmatpush.bf16.msra.mxu0 0
      %1152 = vmatpush.bf16.msra.mxu0 0
      %1153 = vmatpush.bf16.msra.mxu0 0
      %1154 = vmatpush.bf16.msra.mxu0 %v1145
      %1155 = vmatmul.bf16.gmra.mxu0 %v1133
      %v1156 = vpop.f32.mrf.mxu0
      %v1157 = vadd.f32 0.0, %v1156
      %v1158 = vpop.f32.mrf.mxu0
      %v1159 = vadd.f32 0.0, %v1158
      %1160 = vmatmul.bf16.gmra.mxu0 %v1136
      %v1161 = vpop.f32.mrf.mxu0
      %v1162 = vadd.f32 0.0, %v1161
      %v1163 = vpop.f32.mrf.mxu0
      %v1164 = vadd.f32 0.0, %v1163
      %1165 = vmatmul.bf16.gmra.mxu0 %v1139
      %v1166 = vpop.f32.mrf.mxu0
      %v1167 = vadd.f32 0.0, %v1166
      %v1168 = vpop.f32.mrf.mxu0
      %v1169 = vadd.f32 0.0, %v1168
      %1170 = vmatmul.bf16.gmra.mxu0 %v1142
      %v1171 = vpop.f32.mrf.mxu0
      %v1172 = vadd.f32 0.0, %v1171
      %v1173 = vpop.f32.mrf.mxu0
      %v1174 = vadd.f32 0.0, %v1173
      %1175 = vdwg.mxu0
      %v1176 = vadd.f32 %v1054, %v1157
      %v1177 = vadd.f32 %v1055, %v1159
      %v1178 = vadd.f32 %v1056, %v1162
      %v1179 = vadd.f32 %v1057, %v1164
      %v1180 = vadd.f32 %v1058, %v1167
      %v1181 = vadd.f32 %v1059, %v1169
      %v1182 = vadd.f32 %v1060, %v1172
      %v1183 = vadd.f32 %v1061, %v1174
      %s1184 = scalar_lea.vmem [#allocation2], 16
      %v1185 = vld [vmem:[%s1184] sm:$0xf]
      %v1186 = vld [vmem:[%s1184 + $0x8] sm:$0xf]
      %v1187 = vld [vmem:[%s1184 + $0x10] sm:$0xf]
      %v1188 = vld [vmem:[%s1184 + $0x18] sm:$0xf]
      %v1189 = vld [vmem:[%s1184 + $0x20] sm:$0xf]
      %v1190 = vld [vmem:[%s1184 + $0x28] sm:$0xf]
      %v1191 = vld [vmem:[%s1184 + $0x30] sm:$0xf]
      %v1192 = vld [vmem:[%s1184 + $0x38] sm:$0xf]
      %s1193 = scalar_lea.vmem %s222, 24
      %v1194 = vld [vmem:[%s1193] sm:$0xf]
      %v1203 = vunpack.c.l.b16 %v1185
      %v1204 = vunpack.c.l.b16 %v1186
      %v1205 = vunpack.c.l.b16 %v1187
      %v1206 = vunpack.c.l.b16 %v1188
      %v1207 = vunpack.c.l.b16 %v1189
      %v1208 = vunpack.c.l.b16 %v1190
      %v1209 = vunpack.c.l.b16 %v1191
      %v1210 = vunpack.c.l.b16 %v1192
      %v1211 = vpack.c.b16 %v1204, %v1203
      %v1212 = vpack.c.b16 %v1206, %v1205
      %v1213 = vpack.c.b16 %v1208, %v1207
      %v1214 = vpack.c.b16 %v1210, %v1209
      %v1216 = vsel %vm551, %v1211, 0
      %v1219 = vsel %vm551, %v1212, 0
      %v1222 = vsel %vm551, %v1213, 0
      %v1225 = vsel %vm551, %v1214, 0
      %v1228 = vsel %vm564, %v1194, 0
      %1230 = vmatpush.bf16.msra.mxu0 0
      %1231 = vmatpush.bf16.msra.mxu0 0
      %1232 = vmatpush.bf16.msra.mxu0 0
      %1233 = vmatpush.bf16.msra.mxu0 0
      %1234 = vmatpush.bf16.msra.mxu0 0
      %1235 = vmatpush.bf16.msra.mxu0 0
      %1236 = vmatpush.bf16.msra.mxu0 0
      %1237 = vmatpush.bf16.msra.mxu0 %v1228
      %1238 = vmatmul.bf16.gmra.mxu0 %v1216
      %v1239 = vpop.f32.mrf.mxu0
      %v1240 = vadd.f32 0.0, %v1239
      %v1241 = vpop.f32.mrf.mxu0
      %v1242 = vadd.f32 0.0, %v1241
      %1243 = vmatmul.bf16.gmra.mxu0 %v1219
      %v1244 = vpop.f32.mrf.mxu0
      %v1245 = vadd.f32 0.0, %v1244
      %v1246 = vpop.f32.mrf.mxu0
      %v1247 = vadd.f32 0.0, %v1246
      %1248 = vmatmul.bf16.gmra.mxu0 %v1222
      %v1249 = vpop.f32.mrf.mxu0
      %v1250 = vadd.f32 0.0, %v1249
      %v1251 = vpop.f32.mrf.mxu0
      %v1252 = vadd.f32 0.0, %v1251
      %1253 = vmatmul.bf16.gmra.mxu0 %v1225
      %v1254 = vpop.f32.mrf.mxu0
      %v1255 = vadd.f32 0.0, %v1254
      %v1256 = vpop.f32.mrf.mxu0
      %v1257 = vadd.f32 0.0, %v1256
      %1258 = vdwg.mxu0
      %v1259 = vadd.f32 %v1176, %v1240
      %v1260 = vadd.f32 %v1177, %v1242
      %v1261 = vadd.f32 %v1178, %v1245
      %v1262 = vadd.f32 %v1179, %v1247
      %v1263 = vadd.f32 %v1180, %v1250
      %v1264 = vadd.f32 %v1181, %v1252
      %v1265 = vadd.f32 %v1182, %v1255
      %v1266 = vadd.f32 %v1183, %v1257
      %v1267 = vld [vmem:[%s1184] sm:$0xf]
      %v1268 = vld [vmem:[%s1184 + $0x4] sm:$0x1]
      %v1269 = vld [vmem:[%s1184 + $0x8] sm:$0xf]
      %v1270 = vld [vmem:[%s1184 + $0xc] sm:$0x1]
      %v1271 = vld [vmem:[%s1184 + $0x10] sm:$0xf]
      %v1272 = vld [vmem:[%s1184 + $0x14] sm:$0x1]
      %v1273 = vld [vmem:[%s1184 + $0x18] sm:$0xf]
      %v1274 = vld [vmem:[%s1184 + $0x1c] sm:$0x1]
      %v1275 = vld [vmem:[%s1184 + $0x20] sm:$0xf]
      %v1276 = vld [vmem:[%s1184 + $0x24] sm:$0x1]
      %v1277 = vld [vmem:[%s1184 + $0x28] sm:$0xf]
      %v1278 = vld [vmem:[%s1184 + $0x2c] sm:$0x1]
      %v1279 = vld [vmem:[%s1184 + $0x30] sm:$0xf]
      %v1280 = vld [vmem:[%s1184 + $0x34] sm:$0x1]
      %v1281 = vld [vmem:[%s1184 + $0x38] sm:$0xf]
      %v1282 = vld [vmem:[%s1184 + $0x3c] sm:$0x1]
      %v1284 = vshrl.u32 %v1267, 16
      %v1286 = vrot.slane %v1284, 4
      %v1287 = vshll.u32 %v1267, 16
      %v1289 = vrot.slane %v1287, 5
      %v1290 = vor.u32 %v1286, %v1289
      %v1291 = vrot.slane %v1290, 4
      %v1293 = vshll.u32 %v1268, 16
      %v1295 = vrot.slane %v1293, 5
      %v1296 = vsel %vm424, %v1291, %v1295
      %v1298 = vshrl.u32 %v1269, 16
      %v1300 = vrot.slane %v1298, 4
      %v1301 = vshll.u32 %v1269, 16
      %v1303 = vrot.slane %v1301, 5
      %v1304 = vor.u32 %v1300, %v1303
      %v1305 = vrot.slane %v1304, 4
      %v1307 = vshll.u32 %v1270, 16
      %v1309 = vrot.slane %v1307, 5
      %v1310 = vsel %vm424, %v1305, %v1309
      %v1312 = vshrl.u32 %v1271, 16
      %v1314 = vrot.slane %v1312, 4
      %v1315 = vshll.u32 %v1271, 16
      %v1317 = vrot.slane %v1315, 5
      %v1318 = vor.u32 %v1314, %v1317
      %v1319 = vrot.slane %v1318, 4
      %v1321 = vshll.u32 %v1272, 16
      %v1323 = vrot.slane %v1321, 5
      %v1324 = vsel %vm424, %v1319, %v1323
      %v1326 = vshrl.u32 %v1273, 16
      %v1328 = vrot.slane %v1326, 4
      %v1329 = vshll.u32 %v1273, 16
      %v1331 = vrot.slane %v1329, 5
      %v1332 = vor.u32 %v1328, %v1331
      %v1333 = vrot.slane %v1332, 4
      %v1335 = vshll.u32 %v1274, 16
      %v1337 = vrot.slane %v1335, 5
      %v1338 = vsel %vm424, %v1333, %v1337
      %v1340 = vshrl.u32 %v1275, 16
      %v1342 = vrot.slane %v1340, 4
      %v1343 = vshll.u32 %v1275, 16
      %v1345 = vrot.slane %v1343, 5
      %v1346 = vor.u32 %v1342, %v1345
      %v1347 = vrot.slane %v1346, 4
      %v1349 = vshll.u32 %v1276, 16
      %v1351 = vrot.slane %v1349, 5
      %v1352 = vsel %vm424, %v1347, %v1351
      %v1354 = vshrl.u32 %v1277, 16
      %v1356 = vrot.slane %v1354, 4
      %v1357 = vshll.u32 %v1277, 16
      %v1359 = vrot.slane %v1357, 5
      %v1360 = vor.u32 %v1356, %v1359
      %v1361 = vrot.slane %v1360, 4
      %v1363 = vshll.u32 %v1278, 16
      %v1365 = vrot.slane %v1363, 5
      %v1366 = vsel %vm424, %v1361, %v1365
      %v1368 = vshrl.u32 %v1279, 16
      %v1370 = vrot.slane %v1368, 4
      %v1371 = vshll.u32 %v1279, 16
      %v1373 = vrot.slane %v1371, 5
      %v1374 = vor.u32 %v1370, %v1373
      %v1375 = vrot.slane %v1374, 4
      %v1377 = vshll.u32 %v1280, 16
      %v1379 = vrot.slane %v1377, 5
      %v1380 = vsel %vm424, %v1375, %v1379
      %v1382 = vshrl.u32 %v1281, 16
      %v1384 = vrot.slane %v1382, 4
      %v1385 = vshll.u32 %v1281, 16
      %v1387 = vrot.slane %v1385, 5
      %v1388 = vor.u32 %v1384, %v1387
      %v1389 = vrot.slane %v1388, 4
      %v1391 = vshll.u32 %v1282, 16
      %v1393 = vrot.slane %v1391, 5
      %v1394 = vsel %vm424, %v1389, %v1393
      %s1395 = scalar_lea.vmem %s222, 28
      %v1396 = vld [vmem:[%s1395] sm:$0xf]
      %v1397 = vunpack.c.l.b16 %v1296
      %v1398 = vunpack.c.l.b16 %v1310
      %v1399 = vunpack.c.l.b16 %v1324
      %v1400 = vunpack.c.l.b16 %v1338
      %v1401 = vunpack.c.l.b16 %v1352
      %v1402 = vunpack.c.l.b16 %v1366
      %v1403 = vunpack.c.l.b16 %v1380
      %v1404 = vunpack.c.l.b16 %v1394
      %v1405 = vpack.c.b16 %v1398, %v1397
      %v1406 = vpack.c.b16 %v1400, %v1399
      %v1407 = vpack.c.b16 %v1402, %v1401
      %v1408 = vpack.c.b16 %v1404, %v1403
      %v1410 = vsel %vm551, %v1405, 0
      %v1413 = vsel %vm551, %v1406, 0
      %v1416 = vsel %vm551, %v1407, 0
      %v1419 = vsel %vm551, %v1408, 0
      %v1422 = vsel %vm564, %v1396, 0
      %1424 = vmatpush.bf16.msra.mxu0 0
      %1425 = vmatpush.bf16.msra.mxu0 0
      %1426 = vmatpush.bf16.msra.mxu0 0
      %1427 = vmatpush.bf16.msra.mxu0 0
      %1428 = vmatpush.bf16.msra.mxu0 0
      %1429 = vmatpush.bf16.msra.mxu0 0
      %1430 = vmatpush.bf16.msra.mxu0 0
      %1431 = vmatpush.bf16.msra.mxu0 %v1422
      %1432 = vmatmul.bf16.gmra.mxu0 %v1410
      %v1433 = vpop.f32.mrf.mxu0
      %v1434 = vadd.f32 0.0, %v1433
      %v1435 = vpop.f32.mrf.mxu0
      %v1436 = vadd.f32 0.0, %v1435
      %1437 = vmatmul.bf16.gmra.mxu0 %v1413
      %v1438 = vpop.f32.mrf.mxu0
      %v1439 = vadd.f32 0.0, %v1438
      %v1440 = vpop.f32.mrf.mxu0
      %v1441 = vadd.f32 0.0, %v1440
      %1442 = vmatmul.bf16.gmra.mxu0 %v1416
      %v1443 = vpop.f32.mrf.mxu0
      %v1444 = vadd.f32 0.0, %v1443
      %v1445 = vpop.f32.mrf.mxu0
      %v1446 = vadd.f32 0.0, %v1445
      %1447 = vmatmul.bf16.gmra.mxu0 %v1419
      %v1448 = vpop.f32.mrf.mxu0
      %v1449 = vadd.f32 0.0, %v1448
      %v1450 = vpop.f32.mrf.mxu0
      %v1451 = vadd.f32 0.0, %v1450
      %1452 = vdwg.mxu0
      %v1453 = vadd.f32 %v1259, %v1434
      %v1454 = vadd.f32 %v1260, %v1436
      %v1455 = vadd.f32 %v1261, %v1439
      %v1456 = vadd.f32 %v1262, %v1441
      %v1457 = vadd.f32 %v1263, %v1444
      %v1458 = vadd.f32 %v1264, %v1446
      %v1459 = vadd.f32 %v1265, %v1449
      %v1460 = vadd.f32 %v1266, %v1451
      %v1461 = vld [vmem:[%s1184] sm:$0xe]
      %v1462 = vld [vmem:[%s1184 + $0x8] sm:$0xe]
      %v1463 = vld [vmem:[%s1184 + $0x10] sm:$0xe]
      %v1464 = vld [vmem:[%s1184 + $0x18] sm:$0xe]
      %v1465 = vld [vmem:[%s1184 + $0x20] sm:$0xe]
      %v1466 = vld [vmem:[%s1184 + $0x28] sm:$0xe]
      %v1467 = vld [vmem:[%s1184 + $0x30] sm:$0xe]
      %v1468 = vld [vmem:[%s1184 + $0x38] sm:$0xe]
      %v1485 = vrot.slane %v1461, 5
      %v1486 = vrot.slane %v1485, 4
      %v1487 = vrot.slane %v1268, 5
      %v1488 = vsel %vm687, %v1486, %v1487
      %v1489 = vrot.slane %v1462, 5
      %v1490 = vrot.slane %v1489, 4
      %v1491 = vrot.slane %v1270, 5
      %v1492 = vsel %vm687, %v1490, %v1491
      %v1493 = vrot.slane %v1463, 5
      %v1494 = vrot.slane %v1493, 4
      %v1495 = vrot.slane %v1272, 5
      %v1496 = vsel %vm687, %v1494, %v1495
      %v1497 = vrot.slane %v1464, 5
      %v1498 = vrot.slane %v1497, 4
      %v1499 = vrot.slane %v1274, 5
      %v1500 = vsel %vm687, %v1498, %v1499
      %v1501 = vrot.slane %v1465, 5
      %v1502 = vrot.slane %v1501, 4
      %v1503 = vrot.slane %v1276, 5
      %v1504 = vsel %vm687, %v1502, %v1503
      %v1505 = vrot.slane %v1466, 5
      %v1506 = vrot.slane %v1505, 4
      %v1507 = vrot.slane %v1278, 5
      %v1508 = vsel %vm687, %v1506, %v1507
      %v1509 = vrot.slane %v1467, 5
      %v1510 = vrot.slane %v1509, 4
      %v1511 = vrot.slane %v1280, 5
      %v1512 = vsel %vm687, %v1510, %v1511
      %v1513 = vrot.slane %v1468, 5
      %v1514 = vrot.slane %v1513, 4
      %v1515 = vrot.slane %v1282, 5
      %v1516 = vsel %vm687, %v1514, %v1515
      %s1517 = scalar_lea.vmem %s222, 32
      %v1518 = vld [vmem:[%s1517] sm:$0xf]
      %v1519 = vunpack.c.l.b16 %v1488
      %v1520 = vunpack.c.l.b16 %v1492
      %v1521 = vunpack.c.l.b16 %v1496
      %v1522 = vunpack.c.l.b16 %v1500
      %v1523 = vunpack.c.l.b16 %v1504
      %v1524 = vunpack.c.l.b16 %v1508
      %v1525 = vunpack.c.l.b16 %v1512
      %v1526 = vunpack.c.l.b16 %v1516
      %v1527 = vpack.c.b16 %v1520, %v1519
      %v1528 = vpack.c.b16 %v1522, %v1521
      %v1529 = vpack.c.b16 %v1524, %v1523
      %v1530 = vpack.c.b16 %v1526, %v1525
      %v1532 = vsel %vm551, %v1527, 0
      %v1535 = vsel %vm551, %v1528, 0
      %v1538 = vsel %vm551, %v1529, 0
      %v1541 = vsel %vm551, %v1530, 0
      %v1544 = vsel %vm564, %v1518, 0
      %1546 = vmatpush.bf16.msra.mxu0 0
      %1547 = vmatpush.bf16.msra.mxu0 0
      %1548 = vmatpush.bf16.msra.mxu0 0
      %1549 = vmatpush.bf16.msra.mxu0 0
      %1550 = vmatpush.bf16.msra.mxu0 0
      %1551 = vmatpush.bf16.msra.mxu0 0
      %1552 = vmatpush.bf16.msra.mxu0 0
      %1553 = vmatpush.bf16.msra.mxu0 %v1544
      %1554 = vmatmul.bf16.gmra.mxu0 %v1532
      %v1555 = vpop.f32.mrf.mxu0
      %v1556 = vadd.f32 0.0, %v1555
      %v1557 = vpop.f32.mrf.mxu0
      %v1558 = vadd.f32 0.0, %v1557
      %1559 = vmatmul.bf16.gmra.mxu0 %v1535
      %v1560 = vpop.f32.mrf.mxu0
      %v1561 = vadd.f32 0.0, %v1560
      %v1562 = vpop.f32.mrf.mxu0
      %v1563 = vadd.f32 0.0, %v1562
      %1564 = vmatmul.bf16.gmra.mxu0 %v1538
      %v1565 = vpop.f32.mrf.mxu0
      %v1566 = vadd.f32 0.0, %v1565
      %v1567 = vpop.f32.mrf.mxu0
      %v1568 = vadd.f32 0.0, %v1567
      %1569 = vmatmul.bf16.gmra.mxu0 %v1541
      %v1570 = vpop.f32.mrf.mxu0
      %v1571 = vadd.f32 0.0, %v1570
      %v1572 = vpop.f32.mrf.mxu0
      %v1573 = vadd.f32 0.0, %v1572
      %1574 = vdwg.mxu0
      %v1575 = vadd.f32 %v1453, %v1556
      %v1576 = vadd.f32 %v1454, %v1558
      %v1577 = vadd.f32 %v1455, %v1561
      %v1578 = vadd.f32 %v1456, %v1563
      %v1579 = vadd.f32 %v1457, %v1566
      %v1580 = vadd.f32 %v1458, %v1568
      %v1581 = vadd.f32 %v1459, %v1571
      %v1582 = vadd.f32 %v1460, %v1573
      %v1583 = vld [vmem:[%s230] sm:$0xff]
      %v1584 = vld [vmem:[%s230 + $0x8] sm:$0xff]
      %v1585 = vld [vmem:[%s230 + $0x10] sm:$0xff]
      %v1586 = vld [vmem:[%s230 + $0x18] sm:$0xff]
      %v1587 = vld [vmem:[%s230 + $0x20] sm:$0xff]
      %v1588 = vld [vmem:[%s230 + $0x28] sm:$0xff]
      %v1589 = vld [vmem:[%s230 + $0x30] sm:$0xff]
      %v1590 = vld [vmem:[%s230 + $0x38] sm:$0xff]
      %v1591 = vadd.f32 %v1575, %v1583
      %v1592 = vadd.f32 %v1576, %v1584
      %v1593 = vadd.f32 %v1577, %v1585
      %v1594 = vadd.f32 %v1578, %v1586
      %v1595 = vadd.f32 %v1579, %v1587
      %v1596 = vadd.f32 %v1580, %v1588
      %v1597 = vadd.f32 %v1581, %v1589
      %v1598 = vadd.f32 %v1582, %v1590
      %1599 = vst.msk [vmem:[%s238] sm:$0xff] %vm551, %v1591
      %1600 = vst.msk [vmem:[%s238 + $0x8] sm:$0xff] %vm551, %v1592
      %1601 = vst.msk [vmem:[%s238 + $0x10] sm:$0xff] %vm551, %v1593
      %1602 = vst.msk [vmem:[%s238 + $0x18] sm:$0xff] %vm551, %v1594
      %1603 = vst.msk [vmem:[%s238 + $0x20] sm:$0xff] %vm551, %v1595
      %1604 = vst.msk [vmem:[%s238 + $0x28] sm:$0xff] %vm551, %v1596
      %1605 = vst.msk [vmem:[%s238 + $0x30] sm:$0xff] %vm551, %v1597
      %1606 = vst.msk [vmem:[%s238 + $0x38] sm:$0xff] %vm551, %v1598
      %p1607 = scmp.lt.s32.totalorder %s18, 1
      %s1608 = scalar_select %p1607, %s18, 1
      %p1609 = scmp.lt.s32.totalorder %s19, 0
      %s1610 = scalar_select %p1609, %s19, 0
      %s1611 = smul.addr %s1608, 8
      %s1612 = sadd.s32 %s1610, %s1611
      %s1613 = smul.addr %s1612, 8
      %s1614 = scalar_lea.vmem %s3, %s1613
      // Predicated region
      $region33: #{basic_block_forward.3} parent=31 // pred_check
        %p1615 = pneg %p126
      $region34: #{basic_block_forward.3} parent=31 // pred_check_branch
        %1617 = sbr.rel (%p1615) target = $region36
      $region35: #{basic_block_forward.3} parent=31 // pred_region
        _
      $region36: #{basic_block_forward.3} parent=31 // pred_fallthru
        _
    $region32: #{basic_block_forward.3} parent=5 // pred_fallthru
      _
    %p1618 = scmp.le.s32.totalorder 2, %s9
    // Predicated region
    $region37: #{basic_block_forward.3} parent=5 // pred_check
      %p1619 = pneg %p1618
    $region38: #{basic_block_forward.3} parent=5 // pred_check_branch
      %1621 = sbr.rel (%p1619) target = $region40
    $region39: #{basic_block_forward.3} parent=5 // pred_region
      %s1622 = ssub.s32 %s9, 2
      // Predicated region
      $region41: #{basic_block_forward.3} parent=39 // pred_check
        %p1623 = pneg %p132
      $region42: #{basic_block_forward.3} parent=39 // pred_check_branch
        %1625 = sbr.rel (%p1623) target = $region44
      $region43: #{basic_block_forward.3} parent=39 // pred_region
        %p1626 = scmp.lt.s32.totalorder %s20, 1
        %s1627 = scalar_select %p1626, %s20, 1
        %p1628 = scmp.lt.s32.totalorder %s21, 0
        %s1629 = scalar_select %p1628, %s21, 0
        %s1630 = smul.addr %s1627, 8
        %s1631 = sadd.s32 %s1629, %s1630
        %s1632 = smul.addr %s1631, 8
        %s1633 = scalar_lea.vmem %s3, %s1632
      $region44: #{basic_block_forward.3} parent=39 // pred_fallthru
        _
    $region40: #{basic_block_forward.3} parent=5 // pred_fallthru
      _
  $region6: #{basic_block_forward.3} parent=0 // loop_footer
    %s13 = sadd.s32 1, %s9
  $region7: #{basic_block_forward.3} parent=0 // loop_footer_branch
    %8 = sbr.rel target = $region3
  $region8: #{basic_block_forward.3} parent=0 // loop_exit
    _

// kernel: basic_block_forward.2
$region0: #{basic_block_forward.2}
  #allocation0 [shape = 'u32[]', space=smem, size = 0x4, offset = 0x4, fixed_abs, tag = 'smem constant byte address 0x4 - core index']
  #allocation1 [shape = 'u32[72,128]{1,0:T(1,128)}', space=vmem, size = 0x9000, scoped, tag = 'internal scratch']
  #allocation2 [shape = 'bf16[4,9,9,4]{3,2,1,0:T(8,128)(2,1)}', space=vmem, size = 0x24000, scoped, tag = 'scratch operand']
  %s0 = inlined_call_operand.vmem [shape: f32[2,32,8,4], index: 0, kind: input, shape index: {}]
  %s1 = inlined_call_operand.vmem [shape: f32[1,1,4], index: 1, kind: input, shape index: {}]
  %s2 = inlined_call_operand.vmem [shape: f32[1,1,4], index: 2, kind: input, shape index: {}]
  %s3 = inlined_call_operand.vmem [shape: bf16[3,3,4,8], index: 3, kind: input, shape index: {}]
  %s4 = inlined_call_operand.vmem [shape: f32[1,8], index: 4, kind: input, shape index: {}]
  %s5 = inlined_call_operand.vmem [shape: f32[1,8], index: 5, kind: input, shape index: {}]
  %s6 = inlined_call_operand.vmem [shape: bf16[4,8], index: 6, kind: input, shape index: {}]
  %s7 = inlined_call_operand.vmem [shape: bf16[2,64,8], index: 7, kind: output, shape index: {0}]
  %s8 = inlined_call_operand.vmem [shape: f32[2,64,8], index: 8, kind: output, shape index: {1}]
  %9 = xla_tuple %s7, %s8
  %s10 = sld [smem:[#allocation0]]
  $region69: #{basic_block_forward.2} parent=0
    _
  %s12 = ssub.s32 1, %s10
  %s13 = scalar_select 0, %s12, %s10
  loop: start=0, step=1, limit=4
  $region2: #{basic_block_forward.2} parent=0 // loop_pre_header
    _
  $region3: #{basic_block_forward.2} parent=0 // loop_header
    %s15 = sphi 0, %s19
    %p16 = scmp.ge.s32.totalorder %s15, 4
    %s22 = sphi 0, %s34
    %s23 = sphi 0, %s30
    %s24 = sphi 0, %s22
    %s25 = sphi 0, %s23
    %s26 = sphi 0, %s24
    %s27 = sphi 0, %s25
    %s37 = sphi 0, %s39
    %s40 = sphi 0, %s37
    %s41 = sphi 0, %s40
    %s57 = sphi 0, %s41
    %s61 = sphi 0, %s61
    %s63 = sphi 0, %s61
    %s64 = sphi 0, %s63
    %s78 = sphi 0, %s64
    %s82 = sphi 0, %s82
    %s84 = sphi 0, %s82
    %s85 = sphi 0, %s84
    %s99 = sphi 0, %s85
    %s105 = sphi 0, %s107
    %s108 = sphi 0, %s105
    %s109 = sphi 0, %s108
    %s125 = sphi 0, %s109
    %s131 = sphi 0, %s133
    %s134 = sphi 0, %s131
    %s135 = sphi 0, %s134
    %s151 = sphi 0, %s135
    %s157 = sphi 0, %s159
    %s160 = sphi 0, %s157
    %s161 = sphi 0, %s160
    %s177 = sphi 0, %s161
    %s183 = sphi 0, %s185
    %s186 = sphi 0, %s183
    %s187 = sphi 0, %s186
    %s203 = sphi 0, %s187
    %s211 = sphi 0, %s213
    %s214 = sphi 0, %s211
    %s215 = sphi 0, %s214
    %s231 = sphi 0, %s215
    %s239 = sphi 0, %s241
    %s242 = sphi 0, %s239
    %s243 = sphi 0, %s242
    %s259 = sphi 0, %s243
  $region4: #{basic_block_forward.2} parent=0 // loop_header_branch
    %18 = sbr.rel (%p16) target = $region8
  $region5: #{basic_block_forward.2} parent=0 // loop_body
    %s20 = ssub.s32 %s15, 1
    %s21 = ssub.s32 %s15, 2
    %s28 = sadd.s32 1, %s23
    %p29 = scmp.ge.s32.totalorder %s28, 1
    %s30 = scalar_select %p29, 0, %s28
    %s31 = sadd.s32 1, %s22
    %s32 = scalar_select %p29, %s31, %s22
    %p33 = scmp.ge.s32.totalorder %s32, 2
    %s34 = scalar_select %p33, 0, %s32
    %s35 = ssub.s32 %s22, %s34
    %p36 = scmp.eq.s32.totalorder %s35, 0
    %s38 = sadd.s32 %s37, 1
    %s39 = scalar_select %p36, %s37, %s38
    %p42 = pneg %p36
    %p43 = scmp.eq.s32.totalorder %s15, 1
    %p44 = por %p42, %p43
    %p45 = scmp.ne.s32.totalorder %s37, %s40
    %p46 = scmp.eq.s32.totalorder %s15, 0
    %p47 = por %p45, %p46
    %p48 = scmp.ne.s32.totalorder %s37, %s40
    %p49 = scmp.eq.s32.totalorder %s20, 1
    %p50 = por %p48, %p49
    %p51 = scmp.ne.s32.totalorder %s40, %s41
    %p52 = scmp.eq.s32.totalorder %s20, 0
    %p53 = por %p51, %p52
    %p54 = scmp.ne.s32.totalorder %s40, %s41
    %p55 = scmp.eq.s32.totalorder %s21, 1
    %p56 = por %p54, %p55
    %p58 = scmp.ne.s32.totalorder %s41, %s57
    %p59 = scmp.eq.s32.totalorder %s21, 0
    %p60 = por %p58, %p59
    %s62 = sadd.s32 %s61, 1
    %p65 = scmp.eq.s32.totalorder %s15, 1
    %p66 = scmp.ne.s32.totalorder %s61, %s63
    %p67 = scmp.eq.s32.totalorder %s15, 0
    %p68 = por %p66, %p67
    %p69 = scmp.ne.s32.totalorder %s61, %s63
    %p70 = scmp.eq.s32.totalorder %s20, 1
    %p71 = por %p69, %p70
    %p72 = scmp.ne.s32.totalorder %s63, %s64
    %p73 = scmp.eq.s32.totalorder %s20, 0
    %p74 = por %p72, %p73
    %p75 = scmp.ne.s32.totalorder %s63, %s64
    %p76 = scmp.eq.s32.totalorder %s21, 1
    %p77 = por %p75, %p76
    %p79 = scmp.ne.s32.totalorder %s64, %s78
    %p80 = scmp.eq.s32.totalorder %s21, 0
    %p81 = por %p79, %p80
    %s83 = sadd.s32 %s82, 1
    %p86 = scmp.eq.s32.totalorder %s15, 1
    %p87 = scmp.ne.s32.totalorder %s82, %s84
    %p88 = scmp.eq.s32.totalorder %s15, 0
    %p89 = por %p87, %p88
    %p90 = scmp.ne.s32.totalorder %s82, %s84
    %p91 = scmp.eq.s32.totalorder %s20, 1
    %p92 = por %p90, %p91
    %p93 = scmp.ne.s32.totalorder %s84, %s85
    %p94 = scmp.eq.s32.totalorder %s20, 0
    %p95 = por %p93, %p94
    %p96 = scmp.ne.s32.totalorder %s84, %s85
    %p97 = scmp.eq.s32.totalorder %s21, 1
    %p98 = por %p96, %p97
    %p100 = scmp.ne.s32.totalorder %s85, %s99
    %p101 = scmp.eq.s32.totalorder %s21, 0
    %p102 = por %p100, %p101
    %s103 = ssub.s32 %s23, %s30
    %p104 = scmp.eq.s32.totalorder %s103, 0
    %s106 = sadd.s32 %s105, 1
    %s107 = scalar_select %p104, %s105, %s106
    %p110 = pneg %p104
    %p111 = scmp.eq.s32.totalorder %s15, 1
    %p112 = por %p110, %p111
    %p113 = scmp.ne.s32.totalorder %s105, %s108
    %p114 = scmp.eq.s32.totalorder %s15, 0
    %p115 = por %p113, %p114
    %p116 = scmp.ne.s32.totalorder %s105, %s108
    %p117 = scmp.eq.s32.totalorder %s20, 1
    %p118 = por %p116, %p117
    %p119 = scmp.ne.s32.totalorder %s108, %s109
    %p120 = scmp.eq.s32.totalorder %s20, 0
    %p121 = por %p119, %p120
    %p122 = scmp.ne.s32.totalorder %s108, %s109
    %p123 = scmp.eq.s32.totalorder %s21, 1
    %p124 = por %p122, %p123
    %p126 = scmp.ne.s32.totalorder %s109, %s125
    %p127 = scmp.eq.s32.totalorder %s21, 0
    %p128 = por %p126, %p127
    %s129 = ssub.s32 %s23, %s30
    %p130 = scmp.eq.s32.totalorder %s129, 0
    %s132 = sadd.s32 %s131, 1
    %s133 = scalar_select %p130, %s131, %s132
    %p136 = pneg %p130
    %p137 = scmp.eq.s32.totalorder %s15, 1
    %p138 = por %p136, %p137
    %p139 = scmp.ne.s32.totalorder %s131, %s134
    %p140 = scmp.eq.s32.totalorder %s15, 0
    %p141 = por %p139, %p140
    %p142 = scmp.ne.s32.totalorder %s131, %s134
    %p143 = scmp.eq.s32.totalorder %s20, 1
    %p144 = por %p142, %p143
    %p145 = scmp.ne.s32.totalorder %s134, %s135
    %p146 = scmp.eq.s32.totalorder %s20, 0
    %p147 = por %p145, %p146
    %p148 = scmp.ne.s32.totalorder %s134, %s135
    %p149 = scmp.eq.s32.totalorder %s21, 1
    %p150 = por %p148, %p149
    %p152 = scmp.ne.s32.totalorder %s135, %s151
    %p153 = scmp.eq.s32.totalorder %s21, 0
    %p154 = por %p152, %p153
    %s155 = ssub.s32 %s23, %s30
    %p156 = scmp.eq.s32.totalorder %s155, 0
    %s158 = sadd.s32 %s157, 1
    %s159 = scalar_select %p156, %s157, %s158
    %p162 = pneg %p156
    %p163 = scmp.eq.s32.totalorder %s15, 1
    %p164 = por %p162, %p163
    %p165 = scmp.ne.s32.totalorder %s157, %s160
    %p166 = scmp.eq.s32.totalorder %s15, 0
    %p167 = por %p165, %p166
    %p168 = scmp.ne.s32.totalorder %s157, %s160
    %p169 = scmp.eq.s32.totalorder %s20, 1
    %p170 = por %p168, %p169
    %p171 = scmp.ne.s32.totalorder %s160, %s161
    %p172 = scmp.eq.s32.totalorder %s20, 0
    %p173 = por %p171, %p172
    %p174 = scmp.ne.s32.totalorder %s160, %s161
    %p175 = scmp.eq.s32.totalorder %s21, 1
    %p176 = por %p174, %p175
    %p178 = scmp.ne.s32.totalorder %s161, %s177
    %p179 = scmp.eq.s32.totalorder %s21, 0
    %p180 = por %p178, %p179
    %s181 = ssub.s32 %s23, %s30
    %p182 = scmp.eq.s32.totalorder %s181, 0
    %s184 = sadd.s32 %s183, 1
    %s185 = scalar_select %p182, %s183, %s184
    %p188 = pneg %p182
    %p189 = scmp.eq.s32.totalorder %s15, 1
    %p190 = por %p188, %p189
    %p191 = scmp.ne.s32.totalorder %s183, %s186
    %p192 = scmp.eq.s32.totalorder %s15, 0
    %p193 = por %p191, %p192
    %p194 = scmp.ne.s32.totalorder %s183, %s186
    %p195 = scmp.eq.s32.totalorder %s20, 1
    %p196 = por %p194, %p195
    %p197 = scmp.ne.s32.totalorder %s186, %s187
    %p198 = scmp.eq.s32.totalorder %s20, 0
    %p199 = por %p197, %p198
    %p200 = scmp.ne.s32.totalorder %s186, %s187
    %p201 = scmp.eq.s32.totalorder %s21, 1
    %p202 = por %p200, %p201
    %p204 = scmp.ne.s32.totalorder %s187, %s203
    %p205 = scmp.eq.s32.totalorder %s21, 0
    %p206 = por %p204, %p205
    %s207 = ssub.s32 %s22, %s34
    %s208 = ssub.s32 %s23, %s30
    %s209 = sor.u32 %s207, %s208
    %p210 = scmp.eq.s32.totalorder %s209, 0
    %s212 = sadd.s32 %s211, 1
    %s213 = scalar_select %p210, %s211, %s212
    %p216 = pneg %p210
    %p217 = scmp.eq.s32.totalorder %s15, 1
    %p218 = por %p216, %p217
    %p219 = scmp.ne.s32.totalorder %s211, %s214
    %p220 = scmp.eq.s32.totalorder %s15, 0
    %p221 = por %p219, %p220
    %p222 = scmp.ne.s32.totalorder %s211, %s214
    %p223 = scmp.eq.s32.totalorder %s20, 1
    %p224 = por %p222, %p223
    %p225 = scmp.ne.s32.totalorder %s214, %s215
    %p226 = scmp.eq.s32.totalorder %s20, 0
    %p227 = por %p225, %p226
    %p228 = scmp.ne.s32.totalorder %s214, %s215
    %p229 = scmp.eq.s32.totalorder %s21, 1
    %p230 = por %p228, %p229
    %p232 = scmp.ne.s32.totalorder %s215, %s231
    %p233 = scmp.eq.s32.totalorder %s21, 0
    %p234 = por %p232, %p233
    %s235 = ssub.s32 %s22, %s34
    %s236 = ssub.s32 %s23, %s30
    %s237 = sor.u32 %s235, %s236
    %p238 = scmp.eq.s32.totalorder %s237, 0
    %s240 = sadd.s32 %s239, 1
    %s241 = scalar_select %p238, %s239, %s240
    %p244 = pneg %p238
    %p245 = scmp.eq.s32.totalorder %s15, 1
    %p246 = por %p244, %p245
    %p247 = scmp.ne.s32.totalorder %s239, %s242
    %p248 = scmp.eq.s32.totalorder %s15, 0
    %p249 = por %p247, %p248
    %p250 = scmp.ne.s32.totalorder %s239, %s242
    %p251 = scmp.eq.s32.totalorder %s20, 1
    %p252 = por %p250, %p251
    %p253 = scmp.ne.s32.totalorder %s242, %s243
    %p254 = scmp.eq.s32.totalorder %s20, 0
    %p255 = por %p253, %p254
    %p256 = scmp.ne.s32.totalorder %s242, %s243
    %p257 = scmp.eq.s32.totalorder %s21, 1
    %p258 = por %p256, %p257
    %p260 = scmp.ne.s32.totalorder %s243, %s259
    %p261 = scmp.eq.s32.totalorder %s21, 0
    %p262 = por %p260, %p261
    %p263 = scmp.le.s32.totalorder 1, %s15
    %p264 = scmp.lt.s32.totalorder %s15, 3
    %p265 = pnand %p263, %p264
    %p266 = pneg %p265
    // Predicated region
    $region9: #{basic_block_forward.2} parent=5 // pred_check
      _
    $region10: #{basic_block_forward.2} parent=5 // pred_check_branch
      %268 = sbr.rel (%p265) target = $region12
    $region11: #{basic_block_forward.2} parent=5 // pred_region
      %s269 = ssub.s32 %s15, 1
      // Predicated region
      $region13: #{basic_block_forward.2} parent=11 // pred_check
        %p270 = pneg %p74
      $region14: #{basic_block_forward.2} parent=11 // pred_check_branch
        %272 = sbr.rel (%p270) target = $region16
      $region15: #{basic_block_forward.2} parent=11 // pred_region
        _
      $region16: #{basic_block_forward.2} parent=11 // pred_fallthru
        _
      // Predicated region
      $region17: #{basic_block_forward.2} parent=11 // pred_check
        %p273 = pneg %p95
      $region18: #{basic_block_forward.2} parent=11 // pred_check_branch
        %275 = sbr.rel (%p273) target = $region20
      $region19: #{basic_block_forward.2} parent=11 // pred_region
        _
      $region20: #{basic_block_forward.2} parent=11 // pred_fallthru
        _
      // Predicated region
      $region21: #{basic_block_forward.2} parent=11 // pred_check
        %p276 = pneg %p121
      $region22: #{basic_block_forward.2} parent=11 // pred_check_branch
        %278 = sbr.rel (%p276) target = $region24
      $region23: #{basic_block_forward.2} parent=11 // pred_region
        %p279 = scmp.lt.s32.totalorder %s25, 0
        %s280 = scalar_select %p279, %s25, 0
        %s281 = smul.addr %s280, 2
        %s282 = scalar_lea.vmem %s3, %s281
      $region24: #{basic_block_forward.2} parent=11 // pred_fallthru
        _
      // Predicated region
      $region25: #{basic_block_forward.2} parent=11 // pred_check
        %p283 = pneg %p147
      $region26: #{basic_block_forward.2} parent=11 // pred_check_branch
        %285 = sbr.rel (%p283) target = $region28
      $region27: #{basic_block_forward.2} parent=11 // pred_region
        %p286 = scmp.lt.s32.totalorder %s25, 0
        %s287 = scalar_select %p286, %s25, 0
        %s288 = scalar_lea.vmem %s4, %s287
      $region28: #{basic_block_forward.2} parent=11 // pred_fallthru
        _
      // Predicated region
      $region29: #{basic_block_forward.2} parent=11 // pred_check
        %p289 = pneg %p173
      $region30: #{basic_block_forward.2} parent=11 // pred_check_branch
        %291 = sbr.rel (%p289) target = $region32
      $region31: #{basic_block_forward.2} parent=11 // pred_region
        %p292 = scmp.lt.s32.totalorder %s25, 0
        %s293 = scalar_select %p292, %s25, 0
        %s294 = scalar_lea.vmem %s5, %s293
      $region32: #{basic_block_forward.2} parent=11 // pred_fallthru
        _
      // Predicated region
      $region33: #{basic_block_forward.2} parent=11 // pred_check
        %p295 = pneg %p199
      $region34: #{basic_block_forward.2} parent=11 // pred_check_branch
        %297 = sbr.rel (%p295) target = $region36
      $region35: #{basic_block_forward.2} parent=11 // pred_region
        %p298 = scmp.lt.s32.totalorder %s25, 0
        %s299 = scalar_select %p298, %s25, 0
        %s300 = smul.addr %s299, 2
        %s301 = scalar_lea.vmem %s6, %s300
      $region36: #{basic_block_forward.2} parent=11 // pred_fallthru
        _
    $region12: #{basic_block_forward.2} parent=5 // pred_fallthru
      _
    %p302 = scmp.lt.s32.totalorder %s15, 2
    // Predicated region
    $region37: #{basic_block_forward.2} parent=5 // pred_check
      %p303 = pneg %p302
    $region38: #{basic_block_forward.2} parent=5 // pred_check_branch
      %305 = sbr.rel (%p303) target = $region40
    $region39: #{basic_block_forward.2} parent=5 // pred_region
      // Predicated region
      $region41: #{basic_block_forward.2} parent=39 // pred_check
        %p306 = pneg %p47
      $region42: #{basic_block_forward.2} parent=39 // pred_check_branch
        %308 = sbr.rel (%p306) target = $region44
      $region43: #{basic_block_forward.2} parent=39 // pred_region
        %p309 = scmp.lt.s32.totalorder %s22, 1
        %s310 = scalar_select %p309, %s22, 1
        %s311 = smul.addr %s310, 32
        %s312 = smul.addr %s311, 8
        %s313 = scalar_lea.vmem %s0, %s312
      $region44: #{basic_block_forward.2} parent=39 // pred_fallthru
        _
    $region40: #{basic_block_forward.2} parent=5 // pred_fallthru
      _
    %p314 = scmp.le.s32.totalorder 1, %s15
    %p315 = scmp.lt.s32.totalorder %s15, 3
    %p316 = pnand %p314, %p315
    %p317 = pneg %p316
    // Predicated region
    $region45: #{basic_block_forward.2} parent=5 // pred_check
      _
    $region46: #{basic_block_forward.2} parent=5 // pred_check_branch
      %319 = sbr.rel (%p316) target = $region48
    $region47: #{basic_block_forward.2} parent=5 // pred_region
      %s320 = ssub.s32 %s15, 1
      %p321 = scmp.lt.s32.totalorder %s24, 1
      %s322 = scalar_select %p321, %s24, 1
      %s323 = smul.addr %s322, 32
      %s324 = smul.addr %s323, 8
      %s325 = scalar_lea.vmem %s0, %s324
      %p326 = pneg %p53
      %p327 = pneg %p50
      %p328 = pneg %p74
      %p329 = pneg %p71
      %p330 = pneg %p95
      %p331 = pneg %p92
      %p332 = scmp.lt.s32.totalorder %s25, 0
      %s333 = scalar_select %p332, %s25, 0
      %s334 = smul.addr %s333, 2
      %s335 = scalar_lea.vmem %s3, %s334
      %p336 = pneg %p121
      %p337 = pneg %p118
      %p338 = scmp.lt.s32.totalorder %s25, 0
      %s339 = scalar_select %p338, %s25, 0
      %s340 = scalar_lea.vmem %s4, %s339
      %p341 = pneg %p147
      %p342 = pneg %p144
      %p343 = scmp.lt.s32.totalorder %s25, 0
      %s344 = scalar_select %p343, %s25, 0
      %s345 = scalar_lea.vmem %s5, %s344
      %p346 = pneg %p173
      %p347 = pneg %p170
      %p348 = scmp.lt.s32.totalorder %s25, 0
      %s349 = scalar_select %p348, %s25, 0
      %s350 = smul.addr %s349, 2
      %s351 = scalar_lea.vmem %s6, %s350
      %p352 = pneg %p199
      %p353 = pneg %p196
      %p354 = pneg %p227
      %p355 = pneg %p224
      %p356 = scmp.lt.s32.totalorder %s24, 1
      %s357 = scalar_select %p356, %s24, 1
      %p358 = scmp.lt.s32.totalorder %s25, 0
      %s359 = scalar_select %p358, %s25, 0
      %s360 = smul.addr %s357, 8
      %s361 = sadd.s32 %s359, %s360
      %s362 = smul.addr %s361, 4
      %s363 = scalar_lea.vmem %s7, %s362
      %p364 = pneg %p255
      %p365 = pneg %p252
      %p366 = scmp.lt.s32.totalorder %s24, 1
      %s367 = scalar_select %p366, %s24, 1
      %p368 = scmp.lt.s32.totalorder %s25, 0
      %s369 = scalar_select %p368, %s25, 0
      %s370 = smul.addr %s367, 8
      %s371 = sadd.s32 %s369, %s370
      %s372 = smul.addr %s371, 8
      %s373 = scalar_lea.vmem %s8, %s372
      %p374 = scmp.lt.s32.totalorder %s24, 1
      %s375 = scalar_select %p374, %s24, 1
      %s376 = smul.addr %s375, 32
      %s377 = smul.addr %s376, 8
      %s378 = scalar_lea.vmem %s0, %s377
      %p379 = scmp.lt.s32.totalorder %s25, 0
      %s380 = scalar_select %p379, %s25, 0
      %s381 = smul.addr %s380, 2
      %s382 = scalar_lea.vmem %s3, %s381
      %p383 = scmp.lt.s32.totalorder %s25, 0
      %s384 = scalar_select %p383, %s25, 0
      %s385 = scalar_lea.vmem %s4, %s384
      %p386 = scmp.lt.s32.totalorder %s25, 0
      %s387 = scalar_select %p386, %s25, 0
      %s388 = scalar_lea.vmem %s5, %s387
      %p389 = scmp.lt.s32.totalorder %s25, 0
      %s390 = scalar_select %p389, %s25, 0
      %s391 = smul.addr %s390, 2
      %s392 = scalar_lea.vmem %s6, %s391
      %p393 = scmp.lt.s32.totalorder %s24, 1
      %s394 = scalar_select %p393, %s24, 1
      %p395 = scmp.lt.s32.totalorder %s25, 0
      %s396 = scalar_select %p395, %s25, 0
      %s397 = smul.addr %s394, 8
      %s398 = sadd.s32 %s396, %s397
      %s399 = smul.addr %s398, 4
      %s400 = scalar_lea.vmem %s7, %s399
      %p401 = scmp.lt.s32.totalorder %s24, 1
      %s402 = scalar_select %p401, %s24, 1
      %p403 = scmp.lt.s32.totalorder %s25, 0
      %s404 = scalar_select %p403, %s25, 0
      %s405 = smul.addr %s402, 8
      %s406 = sadd.s32 %s404, %s405
      %s407 = smul.addr %s406, 8
      %s408 = scalar_lea.vmem %s8, %s407
      %vm410 = vcmask 27648
      %411 = vst.msk [vmem:[#allocation2] sm:$0xf] %vm410, 0
      %vm412 = vcmask 24576
      %vm413 = vsmask.f32 256
      %vm414 = vmand %vm412, %vm413
      %v415 = vld [vmem:[#allocation2 + $0x4] sm:$0x1]
      %v416 = vsel %vm414, 0, %v415
      %417 = vst [vmem:[#allocation2 + $0x4] sm:$0x1] %v416
      %418 = vst.msk [vmem:[#allocation2 + $0x8] sm:$0xf] %vm410, 0
      %v419 = vld [vmem:[#allocation2 + $0xc] sm:$0x1]
      %v420 = vsel %vm414, 0, %v419
      %421 = vst [vmem:[#allocation2 + $0xc] sm:$0x1] %v420
      %422 = vst.msk [vmem:[#allocation2 + $0x10] sm:$0xf] %vm410, 0
      %v423 = vld [vmem:[#allocation2 + $0x14] sm:$0x1]
      %v424 = vsel %vm414, 0, %v423
      %425 = vst [vmem:[#allocation2 + $0x14] sm:$0x1] %v424
      %426 = vst.msk [vmem:[#allocation2 + $0x18] sm:$0xf] %vm410, 0
      %v427 = vld [vmem:[#allocation2 + $0x1c] sm:$0x1]
      %v428 = vsel %vm414, 0, %v427
      %429 = vst [vmem:[#allocation2 + $0x1c] sm:$0x1] %v428
      %430 = vst.msk [vmem:[#allocation2 + $0x20] sm:$0xf] %vm410, 0
      %v431 = vld [vmem:[#allocation2 + $0x24] sm:$0x1]
      %v432 = vsel %vm414, 0, %v431
      %433 = vst [vmem:[#allocation2 + $0x24] sm:$0x1] %v432
      %434 = vst.msk [vmem:[#allocation2 + $0x28] sm:$0xf] %vm410, 0
      %v435 = vld [vmem:[#allocation2 + $0x2c] sm:$0x1]
      %v436 = vsel %vm414, 0, %v435
      %437 = vst [vmem:[#allocation2 + $0x2c] sm:$0x1] %v436
      %438 = vst.msk [vmem:[#allocation2 + $0x30] sm:$0xf] %vm410, 0
      %v439 = vld [vmem:[#allocation2 + $0x34] sm:$0x1]
      %v440 = vsel %vm414, 0, %v439
      %441 = vst [vmem:[#allocation2 + $0x34] sm:$0x1] %v440
      %442 = vst.msk [vmem:[#allocation2 + $0x38] sm:$0xf] %vm410, 0
      %v443 = vld [vmem:[#allocation2 + $0x3c] sm:$0x1]
      %v444 = vsel %vm414, 0, %v443
      %445 = vst [vmem:[#allocation2 + $0x3c] sm:$0x1] %v444
      %446 = vst.msk [vmem:[#allocation2 + $0x40] sm:$0xf] %vm410, 0
      %v447 = vld [vmem:[#allocation2 + $0x44] sm:$0x1]
      %v448 = vsel %vm414, 0, %v447
      %449 = vst [vmem:[#allocation2 + $0x44] sm:$0x1] %v448
      %450 = vst.msk [vmem:[#allocation2 + $0x48] sm:$0xf] %vm410, 0
      %v451 = vld [vmem:[#allocation2 + $0x4c] sm:$0x1]
      %v452 = vsel %vm414, 0, %v451
      %453 = vst [vmem:[#allocation2 + $0x4c] sm:$0x1] %v452
      %454 = vst.msk [vmem:[#allocation2 + $0x50] sm:$0xf] %vm410, 0
      %v455 = vld [vmem:[#allocation2 + $0x54] sm:$0x1]
      %v456 = vsel %vm414, 0, %v455
      %457 = vst [vmem:[#allocation2 + $0x54] sm:$0x1] %v456
      %458 = vst.msk [vmem:[#allocation2 + $0x58] sm:$0xf] %vm410, 0
      %v459 = vld [vmem:[#allocation2 + $0x5c] sm:$0x1]
      %v460 = vsel %vm414, 0, %v459
      %461 = vst [vmem:[#allocation2 + $0x5c] sm:$0x1] %v460
      %462 = vst.msk [vmem:[#allocation2 + $0x60] sm:$0xf] %vm410, 0
      %v463 = vld [vmem:[#allocation2 + $0x64] sm:$0x1]
      %v464 = vsel %vm414, 0, %v463
      %465 = vst [vmem:[#allocation2 + $0x64] sm:$0x1] %v464
      %466 = vst.msk [vmem:[#allocation2 + $0x68] sm:$0xf] %vm410, 0
      %v467 = vld [vmem:[#allocation2 + $0x6c] sm:$0x1]
      %v468 = vsel %vm414, 0, %v467
      %469 = vst [vmem:[#allocation2 + $0x6c] sm:$0x1] %v468
      %470 = vst.msk [vmem:[#allocation2 + $0x70] sm:$0xf] %vm410, 0
      %v471 = vld [vmem:[#allocation2 + $0x74] sm:$0x1]
      %v472 = vsel %vm414, 0, %v471
      %473 = vst [vmem:[#allocation2 + $0x74] sm:$0x1] %v472
      %474 = vst.msk [vmem:[#allocation2 + $0x78] sm:$0xf] %vm410, 0
      %v475 = vld [vmem:[#allocation2 + $0x7c] sm:$0x1]
      %v476 = vsel %vm414, 0, %v475
      %477 = vst [vmem:[#allocation2 + $0x7c] sm:$0x1] %v476
      %478 = vst.msk [vmem:[#allocation2 + $0x80] sm:$0xf] %vm410, 0
      %v479 = vld [vmem:[#allocation2 + $0x84] sm:$0x1]
      %v480 = vsel %vm414, 0, %v479
      %481 = vst [vmem:[#allocation2 + $0x84] sm:$0x1] %v480
      %482 = vst.msk [vmem:[#allocation2 + $0x88] sm:$0xf] %vm410, 0
      %v483 = vld [vmem:[#allocation2 + $0x8c] sm:$0x1]
      %v484 = vsel %vm414, 0, %v483
      %485 = vst [vmem:[#allocation2 + $0x8c] sm:$0x1] %v484
      %486 = vst.msk [vmem:[#allocation2 + $0x90] sm:$0xf] %vm410, 0
      %v487 = vld [vmem:[#allocation2 + $0x94] sm:$0x1]
      %v488 = vsel %vm414, 0, %v487
      %489 = vst [vmem:[#allocation2 + $0x94] sm:$0x1] %v488
      %490 = vst.msk [vmem:[#allocation2 + $0x98] sm:$0xf] %vm410, 0
      %v491 = vld [vmem:[#allocation2 + $0x9c] sm:$0x1]
      %v492 = vsel %vm414, 0, %v491
      %493 = vst [vmem:[#allocation2 + $0x9c] sm:$0x1] %v492
      %494 = vst.msk [vmem:[#allocation2 + $0xa0] sm:$0xf] %vm410, 0
      %v495 = vld [vmem:[#allocation2 + $0xa4] sm:$0x1]
      %v496 = vsel %vm414, 0, %v495
      %497 = vst [vmem:[#allocation2 + $0xa4] sm:$0x1] %v496
      %498 = vst.msk [vmem:[#allocation2 + $0xa8] sm:$0xf] %vm410, 0
      %v499 = vld [vmem:[#allocation2 + $0xac] sm:$0x1]
      %v500 = vsel %vm414, 0, %v499
      %501 = vst [vmem:[#allocation2 + $0xac] sm:$0x1] %v500
      %502 = vst.msk [vmem:[#allocation2 + $0xb0] sm:$0xf] %vm410, 0
      %v503 = vld [vmem:[#allocation2 + $0xb4] sm:$0x1]
      %v504 = vsel %vm414, 0, %v503
      %505 = vst [vmem:[#allocation2 + $0xb4] sm:$0x1] %v504
      %506 = vst.msk [vmem:[#allocation2 + $0xb8] sm:$0xf] %vm410, 0
      %v507 = vld [vmem:[#allocation2 + $0xbc] sm:$0x1]
      %v508 = vsel %vm414, 0, %v507
      %509 = vst [vmem:[#allocation2 + $0xbc] sm:$0x1] %v508
      %510 = vst.msk [vmem:[#allocation2 + $0xc0] sm:$0xf] %vm410, 0
      %v511 = vld [vmem:[#allocation2 + $0xc4] sm:$0x1]
      %v512 = vsel %vm414, 0, %v511
      %513 = vst [vmem:[#allocation2 + $0xc4] sm:$0x1] %v512
      %514 = vst.msk [vmem:[#allocation2 + $0xc8] sm:$0xf] %vm410, 0
      %v515 = vld [vmem:[#allocation2 + $0xcc] sm:$0x1]
      %v516 = vsel %vm414, 0, %v515
      %517 = vst [vmem:[#allocation2 + $0xcc] sm:$0x1] %v516
      %518 = vst.msk [vmem:[#allocation2 + $0xd0] sm:$0xf] %vm410, 0
      %v519 = vld [vmem:[#allocation2 + $0xd4] sm:$0x1]
      %v520 = vsel %vm414, 0, %v519
      %521 = vst [vmem:[#allocation2 + $0xd4] sm:$0x1] %v520
      %522 = vst.msk [vmem:[#allocation2 + $0xd8] sm:$0xf] %vm410, 0
      %v523 = vld [vmem:[#allocation2 + $0xdc] sm:$0x1]
      %v524 = vsel %vm414, 0, %v523
      %525 = vst [vmem:[#allocation2 + $0xdc] sm:$0x1] %v524
      %526 = vst.msk [vmem:[#allocation2 + $0xe0] sm:$0xf] %vm410, 0
      %v527 = vld [vmem:[#allocation2 + $0xe4] sm:$0x1]
      %v528 = vsel %vm414, 0, %v527
      %529 = vst [vmem:[#allocation2 + $0xe4] sm:$0x1] %v528
      %530 = vst.msk [vmem:[#allocation2 + $0xe8] sm:$0xf] %vm410, 0
      %v531 = vld [vmem:[#allocation2 + $0xec] sm:$0x1]
      %v532 = vsel %vm414, 0, %v531
      %533 = vst [vmem:[#allocation2 + $0xec] sm:$0x1] %v532
      %534 = vst.msk [vmem:[#allocation2 + $0xf0] sm:$0xf] %vm410, 0
      %v535 = vld [vmem:[#allocation2 + $0xf4] sm:$0x1]
      %v536 = vsel %vm414, 0, %v535
      %537 = vst [vmem:[#allocation2 + $0xf4] sm:$0x1] %v536
      %538 = vst.msk [vmem:[#allocation2 + $0xf8] sm:$0xf] %vm410, 0
      %v539 = vld [vmem:[#allocation2 + $0xfc] sm:$0x1]
      %v540 = vsel %vm414, 0, %v539
      %541 = vst [vmem:[#allocation2 + $0xfc] sm:$0x1] %v540
      %542 = vst.msk [vmem:[#allocation2 + $0x100] sm:$0xf] %vm410, 0
      %v543 = vld [vmem:[#allocation2 + $0x104] sm:$0x1]
      %v544 = vsel %vm414, 0, %v543
      %545 = vst [vmem:[#allocation2 + $0x104] sm:$0x1] %v544
      %546 = vst.msk [vmem:[#allocation2 + $0x108] sm:$0xf] %vm410, 0
      %v547 = vld [vmem:[#allocation2 + $0x10c] sm:$0x1]
      %v548 = vsel %vm414, 0, %v547
      %549 = vst [vmem:[#allocation2 + $0x10c] sm:$0x1] %v548
      %550 = vst.msk [vmem:[#allocation2 + $0x110] sm:$0xf] %vm410, 0
      %v551 = vld [vmem:[#allocation2 + $0x114] sm:$0x1]
      %v552 = vsel %vm414, 0, %v551
      %553 = vst [vmem:[#allocation2 + $0x114] sm:$0x1] %v552
      %554 = vst.msk [vmem:[#allocation2 + $0x118] sm:$0xf] %vm410, 0
      %v555 = vld [vmem:[#allocation2 + $0x11c] sm:$0x1]
      %v556 = vsel %vm414, 0, %v555
      %557 = vst [vmem:[#allocation2 + $0x11c] sm:$0x1] %v556
      %v558 = vld [vmem:[%s378] sm:$0xff]
      %v559 = vld [vmem:[%s378 + $0x8] sm:$0xff]
      %v560 = vld [vmem:[%s378 + $0x10] sm:$0xff]
      %v561 = vld [vmem:[%s378 + $0x18] sm:$0xff]
      %v562 = vld [vmem:[%s378 + $0x20] sm:$0xff]
      %v563 = vld [vmem:[%s378 + $0x28] sm:$0xff]
      %v564 = vld [vmem:[%s378 + $0x30] sm:$0xff]
      %v565 = vld [vmem:[%s378 + $0x38] sm:$0xff]
      %v566 = vld [vmem:[%s1] sm:$0x1]
      %v568 = vperm.slane %v566, 0
      %v570 = vmul.f32 %v558, %v568
      %v571 = vmul.f32 %v559, %v568
      %v572 = vmul.f32 %v560, %v568
      %v573 = vmul.f32 %v561, %v568
      %v574 = vmul.f32 %v562, %v568
      %v575 = vmul.f32 %v563, %v568
      %v576 = vmul.f32 %v564, %v568
      %v577 = vmul.f32 %v565, %v568
      %v578 = vld [vmem:[%s2] sm:$0x1]
      %v580 = vperm.slane %v578, 0
      %v582 = vadd.f32 %v570, %v580
      %v583 = vadd.f32 %v571, %v580
      %v584 = vadd.f32 %v572, %v580
      %v585 = vadd.f32 %v573, %v580
      %v586 = vadd.f32 %v574, %v580
      %v587 = vadd.f32 %v575, %v580
      %v588 = vadd.f32 %v576, %v580
      %v589 = vadd.f32 %v577, %v580
      %v590 = vmax.f32 %v582, 0.0
      %v591 = vmax.f32 %v583, 0.0
      %v592 = vmax.f32 %v584, 0.0
      %v593 = vmax.f32 %v585, 0.0
      %v594 = vmax.f32 %v586, 0.0
      %v595 = vmax.f32 %v587, 0.0
      %v596 = vmax.f32 %v588, 0.0
      %v597 = vmax.f32 %v589, 0.0
      %v598 = vpack.c.bf16 %v590, %v590
      %v599 = vpack.c.bf16 %v591, %v591
      %v600 = vpack.c.bf16 %v592, %v592
      %v601 = vpack.c.bf16 %v593, %v593
      %v602 = vpack.c.bf16 %v594, %v594
      %v603 = vpack.c.bf16 %v595, %v595
      %v604 = vpack.c.bf16 %v596, %v596
      %v605 = vpack.c.bf16 %v597, %v597
      %s606 = scalar_lea.vmem [#allocation2], 216
      %607 = vst.msk [vmem:[%s606] sm:$0xf] %vm410, %v598
      %608 = vst.msk [vmem:[%s606 + $0x8] sm:$0xf] %vm410, %v599
      %609 = vst.msk [vmem:[%s606 + $0x10] sm:$0xf] %vm410, %v600
      %610 = vst.msk [vmem:[%s606 + $0x18] sm:$0xf] %vm410, %v601
      %611 = vst.msk [vmem:[%s606 + $0x20] sm:$0xf] %vm410, %v602
      %612 = vst.msk [vmem:[%s606 + $0x28] sm:$0xf] %vm410, %v603
      %613 = vst.msk [vmem:[%s606 + $0x30] sm:$0xf] %vm410, %v604
      %614 = vst.msk [vmem:[%s606 + $0x38] sm:$0xf] %vm410, %v605
      %s615 = scalar_lea.vmem %s378, 64
      %v616 = vld [vmem:[%s615] sm:$0xff]
      %v617 = vld [vmem:[%s615 + $0x8] sm:$0xff]
      %v618 = vld [vmem:[%s615 + $0x10] sm:$0xff]
      %v619 = vld [vmem:[%s615 + $0x18] sm:$0xff]
      %v620 = vld [vmem:[%s615 + $0x20] sm:$0xff]
      %v621 = vld [vmem:[%s615 + $0x28] sm:$0xff]
      %v622 = vld [vmem:[%s615 + $0x30] sm:$0xff]
      %v623 = vld [vmem:[%s615 + $0x38] sm:$0xff]
      %v624 = vld [vmem:[%s1] sm:$0x1]
      %v626 = vperm.slane %v624, 0
      %v628 = vmul.f32 %v616, %v626
      %v629 = vmul.f32 %v617, %v626
      %v630 = vmul.f32 %v618, %v626
      %v631 = vmul.f32 %v619, %v626
      %v632 = vmul.f32 %v620, %v626
      %v633 = vmul.f32 %v621, %v626
      %v634 = vmul.f32 %v622, %v626
      %v635 = vmul.f32 %v623, %v626
      %v636 = vld [vmem:[%s2] sm:$0x1]
      %v638 = vperm.slane %v636, 0
      %v640 = vadd.f32 %v628, %v638
      %v641 = vadd.f32 %v629, %v638
      %v642 = vadd.f32 %v630, %v638
      %v643 = vadd.f32 %v631, %v638
      %v644 = vadd.f32 %v632, %v638
      %v645 = vadd.f32 %v633, %v638
      %v646 = vadd.f32 %v634, %v638
      %v647 = vadd.f32 %v635, %v638
      %v648 = vmax.f32 %v640, 0.0
      %v649 = vmax.f32 %v641, 0.0
      %v650 = vmax.f32 %v642, 0.0
      %v651 = vmax.f32 %v643, 0.0
      %v652 = vmax.f32 %v644, 0.0
      %v653 = vmax.f32 %v645, 0.0
      %v654 = vmax.f32 %v646, 0.0
      %v655 = vmax.f32 %v647, 0.0
      %v656 = vpack.c.bf16 %v648, %v648
      %v657 = vpack.c.bf16 %v649, %v649
      %v658 = vpack.c.bf16 %v650, %v650
      %v659 = vpack.c.bf16 %v651, %v651
      %v660 = vpack.c.bf16 %v652, %v652
      %v661 = vpack.c.bf16 %v653, %v653
      %v662 = vpack.c.bf16 %v654, %v654
      %v663 = vpack.c.bf16 %v655, %v655
      %v665 = vshrl.u32 %v656, 16
      %v667 = vrot.slane %v665, 7
      %v668 = vshll.u32 %v656, 16
      %v670 = vor.u32 %v667, %v668
      %v671 = vrot.slane %v667, 4
      %v673 = vshrl.u32 %v657, 16
      %v675 = vrot.slane %v673, 7
      %v676 = vshll.u32 %v657, 16
      %v678 = vor.u32 %v675, %v676
      %v679 = vrot.slane %v675, 4
      %v681 = vshrl.u32 %v658, 16
      %v683 = vrot.slane %v681, 7
      %v684 = vshll.u32 %v658, 16
      %v686 = vor.u32 %v683, %v684
      %v687 = vrot.slane %v683, 4
      %v689 = vshrl.u32 %v659, 16
      %v691 = vrot.slane %v689, 7
      %v692 = vshll.u32 %v659, 16
      %v694 = vor.u32 %v691, %v692
      %v695 = vrot.slane %v691, 4
      %v697 = vshrl.u32 %v660, 16
      %v699 = vrot.slane %v697, 7
      %v700 = vshll.u32 %v660, 16
      %v702 = vor.u32 %v699, %v700
      %v703 = vrot.slane %v699, 4
      %v705 = vshrl.u32 %v661, 16
      %v707 = vrot.slane %v705, 7
      %v708 = vshll.u32 %v661, 16
      %v710 = vor.u32 %v707, %v708
      %v711 = vrot.slane %v707, 4
      %v713 = vshrl.u32 %v662, 16
      %v715 = vrot.slane %v713, 7
      %v716 = vshll.u32 %v662, 16
      %v718 = vor.u32 %v715, %v716
      %v719 = vrot.slane %v715, 4
      %v721 = vshrl.u32 %v663, 16
      %v723 = vrot.slane %v721, 7
      %v724 = vshll.u32 %v663, 16
      %v726 = vor.u32 %v723, %v724
      %v727 = vrot.slane %v723, 4
      %s744 = scalar_lea.vmem [#allocation2], 144
      %vm745 = vcmask 27648
      %vm746 = vsmask.f32 7938
      %vm747 = vmand %vm745, %vm746
      %v748 = vld [vmem:[%s744] sm:$0xf]
      %v749 = vsel %vm747, %v670, %v748
      %750 = vst [vmem:[%s744] sm:$0xf] %v749
      %v751 = vld [vmem:[%s744 + $0x4] sm:$0x1]
      %v752 = vsel %vm414, %v671, %v751
      %753 = vst [vmem:[%s744 + $0x4] sm:$0x1] %v752
      %v754 = vld [vmem:[%s744 + $0x8] sm:$0xf]
      %v755 = vsel %vm747, %v678, %v754
      %756 = vst [vmem:[%s744 + $0x8] sm:$0xf] %v755
      %v757 = vld [vmem:[%s744 + $0xc] sm:$0x1]
      %v758 = vsel %vm414, %v679, %v757
      %759 = vst [vmem:[%s744 + $0xc] sm:$0x1] %v758
      %v760 = vld [vmem:[%s744 + $0x10] sm:$0xf]
      %v761 = vsel %vm747, %v686, %v760
      %762 = vst [vmem:[%s744 + $0x10] sm:$0xf] %v761
      %v763 = vld [vmem:[%s744 + $0x14] sm:$0x1]
      %v764 = vsel %vm414, %v687, %v763
      %765 = vst [vmem:[%s744 + $0x14] sm:$0x1] %v764
      %v766 = vld [vmem:[%s744 + $0x18] sm:$0xf]
      %v767 = vsel %vm747, %v694, %v766
      %768 = vst [vmem:[%s744 + $0x18] sm:$0xf] %v767
      %v769 = vld [vmem:[%s744 + $0x1c] sm:$0x1]
      %v770 = vsel %vm414, %v695, %v769
      %771 = vst [vmem:[%s744 + $0x1c] sm:$0x1] %v770
      %v772 = vld [vmem:[%s744 + $0x20] sm:$0xf]
      %v773 = vsel %vm747, %v702, %v772
      %774 = vst [vmem:[%s744 + $0x20] sm:$0xf] %v773
      %v775 = vld [vmem:[%s744 + $0x24] sm:$0x1]
      %v776 = vsel %vm414, %v703, %v775
      %777 = vst [vmem:[%s744 + $0x24] sm:$0x1] %v776
      %v778 = vld [vmem:[%s744 + $0x28] sm:$0xf]
      %v779 = vsel %vm747, %v710, %v778
      %780 = vst [vmem:[%s744 + $0x28] sm:$0xf] %v779
      %v781 = vld [vmem:[%s744 + $0x2c] sm:$0x1]
      %v782 = vsel %vm414, %v711, %v781
      %783 = vst [vmem:[%s744 + $0x2c] sm:$0x1] %v782
      %v784 = vld [vmem:[%s744 + $0x30] sm:$0xf]
      %v785 = vsel %vm747, %v718, %v784
      %786 = vst [vmem:[%s744 + $0x30] sm:$0xf] %v785
      %v787 = vld [vmem:[%s744 + $0x34] sm:$0x1]
      %v788 = vsel %vm414, %v719, %v787
      %789 = vst [vmem:[%s744 + $0x34] sm:$0x1] %v788
      %v790 = vld [vmem:[%s744 + $0x38] sm:$0xf]
      %v791 = vsel %vm747, %v726, %v790
      %792 = vst [vmem:[%s744 + $0x38] sm:$0xf] %v791
      %v793 = vld [vmem:[%s744 + $0x3c] sm:$0x1]
      %v794 = vsel %vm414, %v727, %v793
      %795 = vst [vmem:[%s744 + $0x3c] sm:$0x1] %v794
      %s796 = scalar_lea.vmem %s378, 128
      %v797 = vld [vmem:[%s796] sm:$0xff]
      %v798 = vld [vmem:[%s796 + $0x8] sm:$0xff]
      %v799 = vld [vmem:[%s796 + $0x10] sm:$0xff]
      %v800 = vld [vmem:[%s796 + $0x18] sm:$0xff]
      %v801 = vld [vmem:[%s796 + $0x20] sm:$0xff]
      %v802 = vld [vmem:[%s796 + $0x28] sm:$0xff]
      %v803 = vld [vmem:[%s796 + $0x30] sm:$0xff]
      %v804 = vld [vmem:[%s796 + $0x38] sm:$0xff]
      %v805 = vld [vmem:[%s1] sm:$0x1]
      %v807 = vperm.slane %v805, 0
      %v809 = vmul.f32 %v797, %v807
      %v810 = vmul.f32 %v798, %v807
      %v811 = vmul.f32 %v799, %v807
      %v812 = vmul.f32 %v800, %v807
      %v813 = vmul.f32 %v801, %v807
      %v814 = vmul.f32 %v802, %v807
      %v815 = vmul.f32 %v803, %v807
      %v816 = vmul.f32 %v804, %v807
      %v817 = vld [vmem:[%s2] sm:$0x1]
      %v819 = vperm.slane %v817, 0
      %v821 = vadd.f32 %v809, %v819
      %v822 = vadd.f32 %v810, %v819
      %v823 = vadd.f32 %v811, %v819
      %v824 = vadd.f32 %v812, %v819
      %v825 = vadd.f32 %v813, %v819
      %v826 = vadd.f32 %v814, %v819
      %v827 = vadd.f32 %v815, %v819
      %v828 = vadd.f32 %v816, %v819
      %v829 = vmax.f32 %v821, 0.0
      %v830 = vmax.f32 %v822, 0.0
      %v831 = vmax.f32 %v823, 0.0
      %v832 = vmax.f32 %v824, 0.0
      %v833 = vmax.f32 %v825, 0.0
      %v834 = vmax.f32 %v826, 0.0
      %v835 = vmax.f32 %v827, 0.0
      %v836 = vmax.f32 %v828, 0.0
      %v837 = vpack.c.bf16 %v829, %v829
      %v838 = vpack.c.bf16 %v830, %v830
      %v839 = vpack.c.bf16 %v831, %v831
      %v840 = vpack.c.bf16 %v832, %v832
      %v841 = vpack.c.bf16 %v833, %v833
      %v842 = vpack.c.bf16 %v834, %v834
      %v843 = vpack.c.bf16 %v835, %v835
      %v844 = vpack.c.bf16 %v836, %v836
      %s845 = scalar_lea.vmem [#allocation2], 80
      %846 = vst.msk [vmem:[%s845] sm:$0xf] %vm410, %v837
      %847 = vst.msk [vmem:[%s845 + $0x8] sm:$0xf] %vm410, %v838
      %848 = vst.msk [vmem:[%s845 + $0x10] sm:$0xf] %vm410, %v839
      %849 = vst.msk [vmem:[%s845 + $0x18] sm:$0xf] %vm410, %v840
      %850 = vst.msk [vmem:[%s845 + $0x20] sm:$0xf] %vm410, %v841
      %851 = vst.msk [vmem:[%s845 + $0x28] sm:$0xf] %vm410, %v842
      %852 = vst.msk [vmem:[%s845 + $0x30] sm:$0xf] %vm410, %v843
      %853 = vst.msk [vmem:[%s845 + $0x38] sm:$0xf] %vm410, %v844
      %s854 = scalar_lea.vmem %s378, 192
      %v855 = vld [vmem:[%s854] sm:$0xff]
      %v856 = vld [vmem:[%s854 + $0x8] sm:$0xff]
      %v857 = vld [vmem:[%s854 + $0x10] sm:$0xff]
      %v858 = vld [vmem:[%s854 + $0x18] sm:$0xff]
      %v859 = vld [vmem:[%s854 + $0x20] sm:$0xff]
      %v860 = vld [vmem:[%s854 + $0x28] sm:$0xff]
      %v861 = vld [vmem:[%s854 + $0x30] sm:$0xff]
      %v862 = vld [vmem:[%s854 + $0x38] sm:$0xff]
      %v863 = vld [vmem:[%s1] sm:$0x1]
      %v865 = vperm.slane %v863, 0
      %v867 = vmul.f32 %v855, %v865
      %v868 = vmul.f32 %v856, %v865
      %v869 = vmul.f32 %v857, %v865
      %v870 = vmul.f32 %v858, %v865
      %v871 = vmul.f32 %v859, %v865
      %v872 = vmul.f32 %v860, %v865
      %v873 = vmul.f32 %v861, %v865
      %v874 = vmul.f32 %v862, %v865
      %v875 = vld [vmem:[%s2] sm:$0x1]
      %v877 = vperm.slane %v875, 0
      %v879 = vadd.f32 %v867, %v877
      %v880 = vadd.f32 %v868, %v877
      %v881 = vadd.f32 %v869, %v877
      %v882 = vadd.f32 %v870, %v877
      %v883 = vadd.f32 %v871, %v877
      %v884 = vadd.f32 %v872, %v877
      %v885 = vadd.f32 %v873, %v877
      %v886 = vadd.f32 %v874, %v877
      %v887 = vmax.f32 %v879, 0.0
      %v888 = vmax.f32 %v880, 0.0
      %v889 = vmax.f32 %v881, 0.0
      %v890 = vmax.f32 %v882, 0.0
      %v891 = vmax.f32 %v883, 0.0
      %v892 = vmax.f32 %v884, 0.0
      %v893 = vmax.f32 %v885, 0.0
      %v894 = vmax.f32 %v886, 0.0
      %v895 = vpack.c.bf16 %v887, %v887
      %v896 = vpack.c.bf16 %v888, %v888
      %v897 = vpack.c.bf16 %v889, %v889
      %v898 = vpack.c.bf16 %v890, %v890
      %v899 = vpack.c.bf16 %v891, %v891
      %v900 = vpack.c.bf16 %v892, %v892
      %v901 = vpack.c.bf16 %v893, %v893
      %v902 = vpack.c.bf16 %v894, %v894
      %v904 = vshrl.u32 %v895, 16
      %v906 = vrot.slane %v904, 7
      %v907 = vshll.u32 %v895, 16
      %v909 = vor.u32 %v906, %v907
      %v910 = vrot.slane %v906, 4
      %v912 = vshrl.u32 %v896, 16
      %v914 = vrot.slane %v912, 7
      %v915 = vshll.u32 %v896, 16
      %v917 = vor.u32 %v914, %v915
      %v918 = vrot.slane %v914, 4
      %v920 = vshrl.u32 %v897, 16
      %v922 = vrot.slane %v920, 7
      %v923 = vshll.u32 %v897, 16
      %v925 = vor.u32 %v922, %v923
      %v926 = vrot.slane %v922, 4
      %v928 = vshrl.u32 %v898, 16
      %v930 = vrot.slane %v928, 7
      %v931 = vshll.u32 %v898, 16
      %v933 = vor.u32 %v930, %v931
      %v934 = vrot.slane %v930, 4
      %v936 = vshrl.u32 %v899, 16
      %v938 = vrot.slane %v936, 7
      %v939 = vshll.u32 %v899, 16
      %v941 = vor.u32 %v938, %v939
      %v942 = vrot.slane %v938, 4
      %v944 = vshrl.u32 %v900, 16
      %v946 = vrot.slane %v944, 7
      %v947 = vshll.u32 %v900, 16
      %v949 = vor.u32 %v946, %v947
      %v950 = vrot.slane %v946, 4
      %v952 = vshrl.u32 %v901, 16
      %v954 = vrot.slane %v952, 7
      %v955 = vshll.u32 %v901, 16
      %v957 = vor.u32 %v954, %v955
      %v958 = vrot.slane %v954, 4
      %v960 = vshrl.u32 %v902, 16
      %v962 = vrot.slane %v960, 7
      %v963 = vshll.u32 %v902, 16
      %v965 = vor.u32 %v962, %v963
      %v966 = vrot.slane %v962, 4
      %s983 = scalar_lea.vmem [#allocation2], 8
      %v984 = vld [vmem:[%s983] sm:$0xf]
      %v985 = vsel %vm747, %v909, %v984
      %986 = vst [vmem:[%s983] sm:$0xf] %v985
      %v987 = vld [vmem:[%s983 + $0x4] sm:$0x1]
      %v988 = vsel %vm414, %v910, %v987
      %989 = vst [vmem:[%s983 + $0x4] sm:$0x1] %v988
      %v990 = vld [vmem:[%s983 + $0x8] sm:$0xf]
      %v991 = vsel %vm747, %v917, %v990
      %992 = vst [vmem:[%s983 + $0x8] sm:$0xf] %v991
      %v993 = vld [vmem:[%s983 + $0xc] sm:$0x1]
      %v994 = vsel %vm414, %v918, %v993
      %995 = vst [vmem:[%s983 + $0xc] sm:$0x1] %v994
      %v996 = vld [vmem:[%s983 + $0x10] sm:$0xf]
      %v997 = vsel %vm747, %v925, %v996
      %998 = vst [vmem:[%s983 + $0x10] sm:$0xf] %v997
      %v999 = vld [vmem:[%s983 + $0x14] sm:$0x1]
      %v1000 = vsel %vm414, %v926, %v999
      %1001 = vst [vmem:[%s983 + $0x14] sm:$0x1] %v1000
      %v1002 = vld [vmem:[%s983 + $0x18] sm:$0xf]
      %v1003 = vsel %vm747, %v933, %v1002
      %1004 = vst [vmem:[%s983 + $0x18] sm:$0xf] %v1003
      %v1005 = vld [vmem:[%s983 + $0x1c] sm:$0x1]
      %v1006 = vsel %vm414, %v934, %v1005
      %1007 = vst [vmem:[%s983 + $0x1c] sm:$0x1] %v1006
      %v1008 = vld [vmem:[%s983 + $0x20] sm:$0xf]
      %v1009 = vsel %vm747, %v941, %v1008
      %1010 = vst [vmem:[%s983 + $0x20] sm:$0xf] %v1009
      %v1011 = vld [vmem:[%s983 + $0x24] sm:$0x1]
      %v1012 = vsel %vm414, %v942, %v1011
      %1013 = vst [vmem:[%s983 + $0x24] sm:$0x1] %v1012
      %v1014 = vld [vmem:[%s983 + $0x28] sm:$0xf]
      %v1015 = vsel %vm747, %v949, %v1014
      %1016 = vst [vmem:[%s983 + $0x28] sm:$0xf] %v1015
      %v1017 = vld [vmem:[%s983 + $0x2c] sm:$0x1]
      %v1018 = vsel %vm414, %v950, %v1017
      %1019 = vst [vmem:[%s983 + $0x2c] sm:$0x1] %v1018
      %v1020 = vld [vmem:[%s983 + $0x30] sm:$0xf]
      %v1021 = vsel %vm747, %v957, %v1020
      %1022 = vst [vmem:[%s983 + $0x30] sm:$0xf] %v1021
      %v1023 = vld [vmem:[%s983 + $0x34] sm:$0x1]
      %v1024 = vsel %vm414, %v958, %v1023
      %1025 = vst [vmem:[%s983 + $0x34] sm:$0x1] %v1024
      %v1026 = vld [vmem:[%s983 + $0x38] sm:$0xf]
      %v1027 = vsel %vm747, %v965, %v1026
      %1028 = vst [vmem:[%s983 + $0x38] sm:$0xf] %v1027
      %v1029 = vld [vmem:[%s983 + $0x3c] sm:$0x1]
      %v1030 = vsel %vm414, %v966, %v1029
      %1031 = vst [vmem:[%s983 + $0x3c] sm:$0x1] %v1030
      %v1032 = vld [vmem:[#allocation2] sm:$0xf]
      %v1033 = vld [vmem:[#allocation2 + $0x8] sm:$0xf]
      %v1034 = vld [vmem:[#allocation2 + $0x10] sm:$0xf]
      %v1035 = vld [vmem:[#allocation2 + $0x18] sm:$0xf]
      %v1036 = vld [vmem:[#allocation2 + $0x20] sm:$0xf]
      %v1037 = vld [vmem:[#allocation2 + $0x28] sm:$0xf]
      %v1038 = vld [vmem:[#allocation2 + $0x30] sm:$0xf]
      %v1039 = vld [vmem:[#allocation2 + $0x38] sm:$0xf]
      %v1040 = vld [vmem:[%s382] sm:$0x3]
      %s1041 = scalar_lea.vmem [#allocation2], 72
      %v1042 = vld [vmem:[%s1041] sm:$0xf]
      %v1043 = vld [vmem:[%s1041 + $0x8] sm:$0xf]
      %v1044 = vld [vmem:[%s1041 + $0x10] sm:$0xf]
      %v1045 = vld [vmem:[%s1041 + $0x18] sm:$0xf]
      %v1046 = vld [vmem:[%s1041 + $0x20] sm:$0xf]
      %v1047 = vld [vmem:[%s1041 + $0x28] sm:$0xf]
      %v1048 = vld [vmem:[%s1041 + $0x30] sm:$0xf]
      %v1049 = vld [vmem:[%s1041 + $0x38] sm:$0xf]
      %s1050 = scalar_lea.vmem %s382, 2
      %v1051 = vld [vmem:[%s1050] sm:$0x3]
      %v1060 = vunpack.c.l.b16 %v1042
      %v1061 = vunpack.c.l.b16 %v1043
      %v1062 = vunpack.c.l.b16 %v1044
      %v1063 = vunpack.c.l.b16 %v1045
      %v1064 = vunpack.c.l.b16 %v1046
      %v1065 = vunpack.c.l.b16 %v1047
      %v1066 = vunpack.c.l.b16 %v1048
      %v1067 = vunpack.c.l.b16 %v1049
      %v1068 = vpack.c.b16 %v1061, %v1060
      %v1069 = vpack.c.b16 %v1063, %v1062
      %v1070 = vpack.c.b16 %v1065, %v1064
      %v1071 = vpack.c.b16 %v1067, %v1066
      %vm1072 = vcmask 31744
      %v1074 = vsel %vm1072, %v1068, 0
      %v1077 = vsel %vm1072, %v1069, 0
      %v1080 = vsel %vm1072, %v1070, 0
      %v1083 = vsel %vm1072, %v1071, 0
      %vm1085 = vcmask 1041408
      %v1087 = vsel %vm1085, %v1051, 0
      %1089 = vmatpush.bf16.msra.mxu0 0
      %1090 = vmatpush.bf16.msra.mxu0 0
      %1091 = vmatpush.bf16.msra.mxu0 0
      %1092 = vmatpush.bf16.msra.mxu0 0
      %1093 = vmatpush.bf16.msra.mxu0 0
      %1094 = vmatpush.bf16.msra.mxu0 0
      %1095 = vmatpush.bf16.msra.mxu0 0
      %1096 = vmatpush.bf16.msra.mxu0 %v1087
      %1097 = vmatmul.bf16.gmra.mxu0 %v1074
      %v1098 = vpop.f32.mrf.mxu0
      %v1099 = vadd.f32 0.0, %v1098
      %v1100 = vpop.f32.mrf.mxu0
      %v1101 = vadd.f32 0.0, %v1100
      %1102 = vmatmul.bf16.gmra.mxu0 %v1077
      %v1103 = vpop.f32.mrf.mxu0
      %v1104 = vadd.f32 0.0, %v1103
      %v1105 = vpop.f32.mrf.mxu0
      %v1106 = vadd.f32 0.0, %v1105
      %1107 = vmatmul.bf16.gmra.mxu0 %v1080
      %v1108 = vpop.f32.mrf.mxu0
      %v1109 = vadd.f32 0.0, %v1108
      %v1110 = vpop.f32.mrf.mxu0
      %v1111 = vadd.f32 0.0, %v1110
      %1112 = vmatmul.bf16.gmra.mxu0 %v1083
      %v1113 = vpop.f32.mrf.mxu0
      %v1114 = vadd.f32 0.0, %v1113
      %v1115 = vpop.f32.mrf.mxu0
      %v1116 = vadd.f32 0.0, %v1115
      %1117 = vdwg.mxu0
      %v1126 = vunpack.c.l.b16 %v1032
      %v1127 = vunpack.c.l.b16 %v1033
      %v1128 = vunpack.c.l.b16 %v1034
      %v1129 = vunpack.c.l.b16 %v1035
      %v1130 = vunpack.c.l.b16 %v1036
      %v1131 = vunpack.c.l.b16 %v1037
      %v1132 = vunpack.c.l.b16 %v1038
      %v1133 = vunpack.c.l.b16 %v1039
      %v1134 = vpack.c.b16 %v1127, %v1126
      %v1135 = vpack.c.b16 %v1129, %v1128
      %v1136 = vpack.c.b16 %v1131, %v1130
      %v1137 = vpack.c.b16 %v1133, %v1132
      %v1139 = vsel %vm1072, %v1134, 0
      %v1142 = vsel %vm1072, %v1135, 0
      %v1145 = vsel %vm1072, %v1136, 0
      %v1148 = vsel %vm1072, %v1137, 0
      %v1151 = vsel %vm1085, %v1040, 0
      %1153 = vmatpush.bf16.msra.mxu0 0
      %1154 = vmatpush.bf16.msra.mxu0 0
      %1155 = vmatpush.bf16.msra.mxu0 0
      %1156 = vmatpush.bf16.msra.mxu0 0
      %1157 = vmatpush.bf16.msra.mxu0 0
      %1158 = vmatpush.bf16.msra.mxu0 0
      %1159 = vmatpush.bf16.msra.mxu0 0
      %1160 = vmatpush.bf16.msra.mxu0 %v1151
      %1161 = vmatmul.bf16.gmra.mxu0 %v1139
      %v1162 = vpop.f32.mrf.mxu0
      %v1163 = vadd.f32 %v1099, %v1162
      %v1164 = vpop.f32.mrf.mxu0
      %v1165 = vadd.f32 %v1101, %v1164
      %1166 = vmatmul.bf16.gmra.mxu0 %v1142
      %v1167 = vpop.f32.mrf.mxu0
      %v1168 = vadd.f32 %v1104, %v1167
      %v1169 = vpop.f32.mrf.mxu0
      %v1170 = vadd.f32 %v1106, %v1169
      %1171 = vmatmul.bf16.gmra.mxu0 %v1145
      %v1172 = vpop.f32.mrf.mxu0
      %v1173 = vadd.f32 %v1109, %v1172
      %v1174 = vpop.f32.mrf.mxu0
      %v1175 = vadd.f32 %v1111, %v1174
      %1176 = vmatmul.bf16.gmra.mxu0 %v1148
      %v1177 = vpop.f32.mrf.mxu0
      %v1178 = vadd.f32 %v1114, %v1177
      %v1179 = vpop.f32.mrf.mxu0
      %v1180 = vadd.f32 %v1116, %v1179
      %1181 = vdwg.mxu0
      %v1182 = vld [vmem:[#allocation2] sm:$0xf]
      %v1183 = vld [vmem:[#allocation2 + $0x4] sm:$0x1]
      %v1184 = vld [vmem:[#allocation2 + $0x8] sm:$0xf]
      %v1185 = vld [vmem:[#allocation2 + $0xc] sm:$0x1]
      %v1186 = vld [vmem:[#allocation2 + $0x10] sm:$0xf]
      %v1187 = vld [vmem:[#allocation2 + $0x14] sm:$0x1]
      %v1188 = vld [vmem:[#allocation2 + $0x18] sm:$0xf]
      %v1189 = vld [vmem:[#allocation2 + $0x1c] sm:$0x1]
      %v1190 = vld [vmem:[#allocation2 + $0x20] sm:$0xf]
      %v1191 = vld [vmem:[#allocation2 + $0x24] sm:$0x1]
      %v1192 = vld [vmem:[#allocation2 + $0x28] sm:$0xf]
      %v1193 = vld [vmem:[#allocation2 + $0x2c] sm:$0x1]
      %v1194 = vld [vmem:[#allocation2 + $0x30] sm:$0xf]
      %v1195 = vld [vmem:[#allocation2 + $0x34] sm:$0x1]
      %v1196 = vld [vmem:[#allocation2 + $0x38] sm:$0xf]
      %v1197 = vld [vmem:[#allocation2 + $0x3c] sm:$0x1]
      %vm1198 = vsmask.f32 3328
      %vm1199 = vsmask.f32 7440
      %vm1200 = vmor %vm1198, %vm1199
      %v1202 = vshrl.u32 %v1182, 16
      %v1204 = vrot.slane %v1202, 4
      %v1205 = vshll.u32 %v1182, 16
      %v1207 = vrot.slane %v1205, 5
      %v1208 = vor.u32 %v1204, %v1207
      %v1209 = vrot.slane %v1208, 4
      %v1211 = vshll.u32 %v1183, 16
      %v1213 = vrot.slane %v1211, 5
      %v1214 = vsel %vm1200, %v1209, %v1213
      %v1216 = vshrl.u32 %v1184, 16
      %v1218 = vrot.slane %v1216, 4
      %v1219 = vshll.u32 %v1184, 16
      %v1221 = vrot.slane %v1219, 5
      %v1222 = vor.u32 %v1218, %v1221
      %v1223 = vrot.slane %v1222, 4
      %v1225 = vshll.u32 %v1185, 16
      %v1227 = vrot.slane %v1225, 5
      %v1228 = vsel %vm1200, %v1223, %v1227
      %v1230 = vshrl.u32 %v1186, 16
      %v1232 = vrot.slane %v1230, 4
      %v1233 = vshll.u32 %v1186, 16
      %v1235 = vrot.slane %v1233, 5
      %v1236 = vor.u32 %v1232, %v1235
      %v1237 = vrot.slane %v1236, 4
      %v1239 = vshll.u32 %v1187, 16
      %v1241 = vrot.slane %v1239, 5
      %v1242 = vsel %vm1200, %v1237, %v1241
      %v1244 = vshrl.u32 %v1188, 16
      %v1246 = vrot.slane %v1244, 4
      %v1247 = vshll.u32 %v1188, 16
      %v1249 = vrot.slane %v1247, 5
      %v1250 = vor.u32 %v1246, %v1249
      %v1251 = vrot.slane %v1250, 4
      %v1253 = vshll.u32 %v1189, 16
      %v1255 = vrot.slane %v1253, 5
      %v1256 = vsel %vm1200, %v1251, %v1255
      %v1258 = vshrl.u32 %v1190, 16
      %v1260 = vrot.slane %v1258, 4
      %v1261 = vshll.u32 %v1190, 16
      %v1263 = vrot.slane %v1261, 5
      %v1264 = vor.u32 %v1260, %v1263
      %v1265 = vrot.slane %v1264, 4
      %v1267 = vshll.u32 %v1191, 16
      %v1269 = vrot.slane %v1267, 5
      %v1270 = vsel %vm1200, %v1265, %v1269
      %v1272 = vshrl.u32 %v1192, 16
      %v1274 = vrot.slane %v1272, 4
      %v1275 = vshll.u32 %v1192, 16
      %v1277 = vrot.slane %v1275, 5
      %v1278 = vor.u32 %v1274, %v1277
      %v1279 = vrot.slane %v1278, 4
      %v1281 = vshll.u32 %v1193, 16
      %v1283 = vrot.slane %v1281, 5
      %v1284 = vsel %vm1200, %v1279, %v1283
      %v1286 = vshrl.u32 %v1194, 16
      %v1288 = vrot.slane %v1286, 4
      %v1289 = vshll.u32 %v1194, 16
      %v1291 = vrot.slane %v1289, 5
      %v1292 = vor.u32 %v1288, %v1291
      %v1293 = vrot.slane %v1292, 4
      %v1295 = vshll.u32 %v1195, 16
      %v1297 = vrot.slane %v1295, 5
      %v1298 = vsel %vm1200, %v1293, %v1297
      %v1300 = vshrl.u32 %v1196, 16
      %v1302 = vrot.slane %v1300, 4
      %v1303 = vshll.u32 %v1196, 16
      %v1305 = vrot.slane %v1303, 5
      %v1306 = vor.u32 %v1302, %v1305
      %v1307 = vrot.slane %v1306, 4
      %v1309 = vshll.u32 %v1197, 16
      %v1311 = vrot.slane %v1309, 5
      %v1312 = vsel %vm1200, %v1307, %v1311
      %s1313 = scalar_lea.vmem %s382, 4
      %v1314 = vld [vmem:[%s1313] sm:$0x3]
      %v1315 = vunpack.c.l.b16 %v1214
      %v1316 = vunpack.c.l.b16 %v1228
      %v1317 = vunpack.c.l.b16 %v1242
      %v1318 = vunpack.c.l.b16 %v1256
      %v1319 = vunpack.c.l.b16 %v1270
      %v1320 = vunpack.c.l.b16 %v1284
      %v1321 = vunpack.c.l.b16 %v1298
      %v1322 = vunpack.c.l.b16 %v1312
      %v1323 = vpack.c.b16 %v1316, %v1315
      %v1324 = vpack.c.b16 %v1318, %v1317
      %v1325 = vpack.c.b16 %v1320, %v1319
      %v1326 = vpack.c.b16 %v1322, %v1321
      %v1328 = vsel %vm1072, %v1323, 0
      %v1331 = vsel %vm1072, %v1324, 0
      %v1334 = vsel %vm1072, %v1325, 0
      %v1337 = vsel %vm1072, %v1326, 0
      %v1340 = vsel %vm1085, %v1314, 0
      %1342 = vmatpush.bf16.msra.mxu0 0
      %1343 = vmatpush.bf16.msra.mxu0 0
      %1344 = vmatpush.bf16.msra.mxu0 0
      %1345 = vmatpush.bf16.msra.mxu0 0
      %1346 = vmatpush.bf16.msra.mxu0 0
      %1347 = vmatpush.bf16.msra.mxu0 0
      %1348 = vmatpush.bf16.msra.mxu0 0
      %1349 = vmatpush.bf16.msra.mxu0 %v1340
      %1350 = vmatmul.bf16.gmra.mxu0 %v1328
      %v1351 = vpop.f32.mrf.mxu0
      %v1352 = vadd.f32 0.0, %v1351
      %v1353 = vpop.f32.mrf.mxu0
      %v1354 = vadd.f32 0.0, %v1353
      %1355 = vmatmul.bf16.gmra.mxu0 %v1331
      %v1356 = vpop.f32.mrf.mxu0
      %v1357 = vadd.f32 0.0, %v1356
      %v1358 = vpop.f32.mrf.mxu0
      %v1359 = vadd.f32 0.0, %v1358
      %1360 = vmatmul.bf16.gmra.mxu0 %v1334
      %v1361 = vpop.f32.mrf.mxu0
      %v1362 = vadd.f32 0.0, %v1361
      %v1363 = vpop.f32.mrf.mxu0
      %v1364 = vadd.f32 0.0, %v1363
      %1365 = vmatmul.bf16.gmra.mxu0 %v1337
      %v1366 = vpop.f32.mrf.mxu0
      %v1367 = vadd.f32 0.0, %v1366
      %v1368 = vpop.f32.mrf.mxu0
      %v1369 = vadd.f32 0.0, %v1368
      %1370 = vdwg.mxu0
      %v1371 = vadd.f32 %v1163, %v1352
      %v1372 = vadd.f32 %v1165, %v1354
      %v1373 = vadd.f32 %v1168, %v1357
      %v1374 = vadd.f32 %v1170, %v1359
      %v1375 = vadd.f32 %v1173, %v1362
      %v1376 = vadd.f32 %v1175, %v1364
      %v1377 = vadd.f32 %v1178, %v1367
      %v1378 = vadd.f32 %v1180, %v1369
      %v1379 = vld [vmem:[%s744] sm:$0xf]
      %v1380 = vld [vmem:[%s744 + $0x8] sm:$0xf]
      %v1381 = vld [vmem:[%s744 + $0x10] sm:$0xf]
      %v1382 = vld [vmem:[%s744 + $0x18] sm:$0xf]
      %v1383 = vld [vmem:[%s744 + $0x20] sm:$0xf]
      %v1384 = vld [vmem:[%s744 + $0x28] sm:$0xf]
      %v1385 = vld [vmem:[%s744 + $0x30] sm:$0xf]
      %v1386 = vld [vmem:[%s744 + $0x38] sm:$0xf]
      %s1387 = scalar_lea.vmem %s382, 6
      %v1388 = vld [vmem:[%s1387] sm:$0x3]
      %v1397 = vunpack.c.l.b16 %v1379
      %v1398 = vunpack.c.l.b16 %v1380
      %v1399 = vunpack.c.l.b16 %v1381
      %v1400 = vunpack.c.l.b16 %v1382
      %v1401 = vunpack.c.l.b16 %v1383
      %v1402 = vunpack.c.l.b16 %v1384
      %v1403 = vunpack.c.l.b16 %v1385
      %v1404 = vunpack.c.l.b16 %v1386
      %v1405 = vpack.c.b16 %v1398, %v1397
      %v1406 = vpack.c.b16 %v1400, %v1399
      %v1407 = vpack.c.b16 %v1402, %v1401
      %v1408 = vpack.c.b16 %v1404, %v1403
      %v1410 = vsel %vm1072, %v1405, 0
      %v1413 = vsel %vm1072, %v1406, 0
      %v1416 = vsel %vm1072, %v1407, 0
      %v1419 = vsel %vm1072, %v1408, 0
      %v1422 = vsel %vm1085, %v1388, 0
      %1424 = vmatpush.bf16.msra.mxu0 0
      %1425 = vmatpush.bf16.msra.mxu0 0
      %1426 = vmatpush.bf16.msra.mxu0 0
      %1427 = vmatpush.bf16.msra.mxu0 0
      %1428 = vmatpush.bf16.msra.mxu0 0
      %1429 = vmatpush.bf16.msra.mxu0 0
      %1430 = vmatpush.bf16.msra.mxu0 0
      %1431 = vmatpush.bf16.msra.mxu0 %v1422
      %1432 = vmatmul.bf16.gmra.mxu0 %v1410
      %v1433 = vpop.f32.mrf.mxu0
      %v1434 = vadd.f32 0.0, %v1433
      %v1435 = vpop.f32.mrf.mxu0
      %v1436 = vadd.f32 0.0, %v1435
      %1437 = vmatmul.bf16.gmra.mxu0 %v1413
      %v1438 = vpop.f32.mrf.mxu0
      %v1439 = vadd.f32 0.0, %v1438
      %v1440 = vpop.f32.mrf.mxu0
      %v1441 = vadd.f32 0.0, %v1440
      %1442 = vmatmul.bf16.gmra.mxu0 %v1416
      %v1443 = vpop.f32.mrf.mxu0
      %v1444 = vadd.f32 0.0, %v1443
      %v1445 = vpop.f32.mrf.mxu0
      %v1446 = vadd.f32 0.0, %v1445
      %1447 = vmatmul.bf16.gmra.mxu0 %v1419
      %v1448 = vpop.f32.mrf.mxu0
      %v1449 = vadd.f32 0.0, %v1448
      %v1450 = vpop.f32.mrf.mxu0
      %v1451 = vadd.f32 0.0, %v1450
      %1452 = vdwg.mxu0
      %v1453 = vadd.f32 %v1371, %v1434
      %v1454 = vadd.f32 %v1372, %v1436
      %v1455 = vadd.f32 %v1373, %v1439
      %v1456 = vadd.f32 %v1374, %v1441
      %v1457 = vadd.f32 %v1375, %v1444
      %v1458 = vadd.f32 %v1376, %v1446
      %v1459 = vadd.f32 %v1377, %v1449
      %v1460 = vadd.f32 %v1378, %v1451
      %v1461 = vld [vmem:[%s606] sm:$0xf]
      %v1462 = vld [vmem:[%s606 + $0x8] sm:$0xf]
      %v1463 = vld [vmem:[%s606 + $0x10] sm:$0xf]
      %v1464 = vld [vmem:[%s606 + $0x18] sm:$0xf]
      %v1465 = vld [vmem:[%s606 + $0x20] sm:$0xf]
      %v1466 = vld [vmem:[%s606 + $0x28] sm:$0xf]
      %v1467 = vld [vmem:[%s606 + $0x30] sm:$0xf]
      %v1468 = vld [vmem:[%s606 + $0x38] sm:$0xf]
      %s1469 = scalar_lea.vmem %s382, 8
      %v1470 = vld [vmem:[%s1469] sm:$0x3]
      %v1479 = vunpack.c.l.b16 %v1461
      %v1480 = vunpack.c.l.b16 %v1462
      %v1481 = vunpack.c.l.b16 %v1463
      %v1482 = vunpack.c.l.b16 %v1464
      %v1483 = vunpack.c.l.b16 %v1465
      %v1484 = vunpack.c.l.b16 %v1466
      %v1485 = vunpack.c.l.b16 %v1467
      %v1486 = vunpack.c.l.b16 %v1468
      %v1487 = vpack.c.b16 %v1480, %v1479
      %v1488 = vpack.c.b16 %v1482, %v1481
      %v1489 = vpack.c.b16 %v1484, %v1483
      %v1490 = vpack.c.b16 %v1486, %v1485
      %v1492 = vsel %vm1072, %v1487, 0
      %v1495 = vsel %vm1072, %v1488, 0
      %v1498 = vsel %vm1072, %v1489, 0
      %v1501 = vsel %vm1072, %v1490, 0
      %v1504 = vsel %vm1085, %v1470, 0
      %1506 = vmatpush.bf16.msra.mxu0 0
      %1507 = vmatpush.bf16.msra.mxu0 0
      %1508 = vmatpush.bf16.msra.mxu0 0
      %1509 = vmatpush.bf16.msra.mxu0 0
      %1510 = vmatpush.bf16.msra.mxu0 0
      %1511 = vmatpush.bf16.msra.mxu0 0
      %1512 = vmatpush.bf16.msra.mxu0 0
      %1513 = vmatpush.bf16.msra.mxu0 %v1504
      %1514 = vmatmul.bf16.gmra.mxu0 %v1492
      %v1515 = vpop.f32.mrf.mxu0
      %v1516 = vadd.f32 0.0, %v1515
      %v1517 = vpop.f32.mrf.mxu0
      %v1518 = vadd.f32 0.0, %v1517
      %1519 = vmatmul.bf16.gmra.mxu0 %v1495
      %v1520 = vpop.f32.mrf.mxu0
      %v1521 = vadd.f32 0.0, %v1520
      %v1522 = vpop.f32.mrf.mxu0
      %v1523 = vadd.f32 0.0, %v1522
      %1524 = vmatmul.bf16.gmra.mxu0 %v1498
      %v1525 = vpop.f32.mrf.mxu0
      %v1526 = vadd.f32 0.0, %v1525
      %v1527 = vpop.f32.mrf.mxu0
      %v1528 = vadd.f32 0.0, %v1527
      %1529 = vmatmul.bf16.gmra.mxu0 %v1501
      %v1530 = vpop.f32.mrf.mxu0
      %v1531 = vadd.f32 0.0, %v1530
      %v1532 = vpop.f32.mrf.mxu0
      %v1533 = vadd.f32 0.0, %v1532
      %1534 = vdwg.mxu0
      %v1535 = vadd.f32 %v1453, %v1516
      %v1536 = vadd.f32 %v1454, %v1518
      %v1537 = vadd.f32 %v1455, %v1521
      %v1538 = vadd.f32 %v1456, %v1523
      %v1539 = vadd.f32 %v1457, %v1526
      %v1540 = vadd.f32 %v1458, %v1528
      %v1541 = vadd.f32 %v1459, %v1531
      %v1542 = vadd.f32 %v1460, %v1533
      %v1543 = vld [vmem:[%s392] sm:$0x3]
      %v1545 = vsel %vm1085, %v1543, 0
      %1547 = vmatpush.bf16.msra.mxu0 0
      %1548 = vmatpush.bf16.msra.mxu0 0
      %1549 = vmatpush.bf16.msra.mxu0 0
      %1550 = vmatpush.bf16.msra.mxu0 0
      %1551 = vmatpush.bf16.msra.mxu0 0
      %1552 = vmatpush.bf16.msra.mxu0 0
      %1553 = vmatpush.bf16.msra.mxu0 0
      %1554 = vmatpush.bf16.msra.mxu0 %v1545
      %1555 = vmatmul.bf16.gmra.mxu0 %v1492
      %v1556 = vpop.f32.mrf.mxu0
      %v1557 = vadd.f32 0.0, %v1556
      %v1558 = vpop.f32.mrf.mxu0
      %v1559 = vadd.f32 0.0, %v1558
      %1560 = vmatmul.bf16.gmra.mxu0 %v1495
      %v1561 = vpop.f32.mrf.mxu0
      %v1562 = vadd.f32 0.0, %v1561
      %v1563 = vpop.f32.mrf.mxu0
      %v1564 = vadd.f32 0.0, %v1563
      %1565 = vmatmul.bf16.gmra.mxu0 %v1498
      %v1566 = vpop.f32.mrf.mxu0
      %v1567 = vadd.f32 0.0, %v1566
      %v1568 = vpop.f32.mrf.mxu0
      %v1569 = vadd.f32 0.0, %v1568
      %1570 = vmatmul.bf16.gmra.mxu0 %v1501
      %v1571 = vpop.f32.mrf.mxu0
      %v1572 = vadd.f32 0.0, %v1571
      %v1573 = vpop.f32.mrf.mxu0
      %v1574 = vadd.f32 0.0, %v1573
      %1575 = vdwg.mxu0
      %v1576 = vld [vmem:[%s744] sm:$0xf]
      %v1577 = vld [vmem:[%s744 + $0x4] sm:$0x1]
      %v1578 = vld [vmem:[%s744 + $0x8] sm:$0xf]
      %v1579 = vld [vmem:[%s744 + $0xc] sm:$0x1]
      %v1580 = vld [vmem:[%s744 + $0x10] sm:$0xf]
      %v1581 = vld [vmem:[%s744 + $0x14] sm:$0x1]
      %v1582 = vld [vmem:[%s744 + $0x18] sm:$0xf]
      %v1583 = vld [vmem:[%s744 + $0x1c] sm:$0x1]
      %v1584 = vld [vmem:[%s744 + $0x20] sm:$0xf]
      %v1585 = vld [vmem:[%s744 + $0x24] sm:$0x1]
      %v1586 = vld [vmem:[%s744 + $0x28] sm:$0xf]
      %v1587 = vld [vmem:[%s744 + $0x2c] sm:$0x1]
      %v1588 = vld [vmem:[%s744 + $0x30] sm:$0xf]
      %v1589 = vld [vmem:[%s744 + $0x34] sm:$0x1]
      %v1590 = vld [vmem:[%s744 + $0x38] sm:$0xf]
      %v1591 = vld [vmem:[%s744 + $0x3c] sm:$0x1]
      %v1593 = vshrl.u32 %v1576, 16
      %v1595 = vrot.slane %v1593, 4
      %v1596 = vshll.u32 %v1576, 16
      %v1598 = vrot.slane %v1596, 5
      %v1599 = vor.u32 %v1595, %v1598
      %v1600 = vrot.slane %v1599, 4
      %v1602 = vshll.u32 %v1577, 16
      %v1604 = vrot.slane %v1602, 5
      %v1605 = vsel %vm1200, %v1600, %v1604
      %v1607 = vshrl.u32 %v1578, 16
      %v1609 = vrot.slane %v1607, 4
      %v1610 = vshll.u32 %v1578, 16
      %v1612 = vrot.slane %v1610, 5
      %v1613 = vor.u32 %v1609, %v1612
      %v1614 = vrot.slane %v1613, 4
      %v1616 = vshll.u32 %v1579, 16
      %v1618 = vrot.slane %v1616, 5
      %v1619 = vsel %vm1200, %v1614, %v1618
      %v1621 = vshrl.u32 %v1580, 16
      %v1623 = vrot.slane %v1621, 4
      %v1624 = vshll.u32 %v1580, 16
      %v1626 = vrot.slane %v1624, 5
      %v1627 = vor.u32 %v1623, %v1626
      %v1628 = vrot.slane %v1627, 4
      %v1630 = vshll.u32 %v1581, 16
      %v1632 = vrot.slane %v1630, 5
      %v1633 = vsel %vm1200, %v1628, %v1632
      %v1635 = vshrl.u32 %v1582, 16
      %v1637 = vrot.slane %v1635, 4
      %v1638 = vshll.u32 %v1582, 16
      %v1640 = vrot.slane %v1638, 5
      %v1641 = vor.u32 %v1637, %v1640
      %v1642 = vrot.slane %v1641, 4
      %v1644 = vshll.u32 %v1583, 16
      %v1646 = vrot.slane %v1644, 5
      %v1647 = vsel %vm1200, %v1642, %v1646
      %v1649 = vshrl.u32 %v1584, 16
      %v1651 = vrot.slane %v1649, 4
      %v1652 = vshll.u32 %v1584, 16
      %v1654 = vrot.slane %v1652, 5
      %v1655 = vor.u32 %v1651, %v1654
      %v1656 = vrot.slane %v1655, 4
      %v1658 = vshll.u32 %v1585, 16
      %v1660 = vrot.slane %v1658, 5
      %v1661 = vsel %vm1200, %v1656, %v1660
      %v1663 = vshrl.u32 %v1586, 16
      %v1665 = vrot.slane %v1663, 4
      %v1666 = vshll.u32 %v1586, 16
      %v1668 = vrot.slane %v1666, 5
      %v1669 = vor.u32 %v1665, %v1668
      %v1670 = vrot.slane %v1669, 4
      %v1672 = vshll.u32 %v1587, 16
      %v1674 = vrot.slane %v1672, 5
      %v1675 = vsel %vm1200, %v1670, %v1674
      %v1677 = vshrl.u32 %v1588, 16
      %v1679 = vrot.slane %v1677, 4
      %v1680 = vshll.u32 %v1588, 16
      %v1682 = vrot.slane %v1680, 5
      %v1683 = vor.u32 %v1679, %v1682
      %v1684 = vrot.slane %v1683, 4
      %v1686 = vshll.u32 %v1589, 16
      %v1688 = vrot.slane %v1686, 5
      %v1689 = vsel %vm1200, %v1684, %v1688
      %v1691 = vshrl.u32 %v1590, 16
      %v1693 = vrot.slane %v1691, 4
      %v1694 = vshll.u32 %v1590, 16
      %v1696 = vrot.slane %v1694, 5
      %v1697 = vor.u32 %v1693, %v1696
      %v1698 = vrot.slane %v1697, 4
      %v1700 = vshll.u32 %v1591, 16
      %v1702 = vrot.slane %v1700, 5
      %v1703 = vsel %vm1200, %v1698, %v1702
      %s1704 = scalar_lea.vmem %s382, 10
      %v1705 = vld [vmem:[%s1704] sm:$0x3]
      %v1706 = vunpack.c.l.b16 %v1605
      %v1707 = vunpack.c.l.b16 %v1619
      %v1708 = vunpack.c.l.b16 %v1633
      %v1709 = vunpack.c.l.b16 %v1647
      %v1710 = vunpack.c.l.b16 %v1661
      %v1711 = vunpack.c.l.b16 %v1675
      %v1712 = vunpack.c.l.b16 %v1689
      %v1713 = vunpack.c.l.b16 %v1703
      %v1714 = vpack.c.b16 %v1707, %v1706
      %v1715 = vpack.c.b16 %v1709, %v1708
      %v1716 = vpack.c.b16 %v1711, %v1710
      %v1717 = vpack.c.b16 %v1713, %v1712
      %v1719 = vsel %vm1072, %v1714, 0
      %v1722 = vsel %vm1072, %v1715, 0
      %v1725 = vsel %vm1072, %v1716, 0
      %v1728 = vsel %vm1072, %v1717, 0
      %v1731 = vsel %vm1085, %v1705, 0
      %1733 = vmatpush.bf16.msra.mxu0 0
      %1734 = vmatpush.bf16.msra.mxu0 0
      %1735 = vmatpush.bf16.msra.mxu0 0
      %1736 = vmatpush.bf16.msra.mxu0 0
      %1737 = vmatpush.bf16.msra.mxu0 0
      %1738 = vmatpush.bf16.msra.mxu0 0
      %1739 = vmatpush.bf16.msra.mxu0 0
      %1740 = vmatpush.bf16.msra.mxu0 %v1731
      %1741 = vmatmul.bf16.gmra.mxu0 %v1719
      %v1742 = vpop.f32.mrf.mxu0
      %v1743 = vadd.f32 0.0, %v1742
      %v1744 = vpop.f32.mrf.mxu0
      %v1745 = vadd.f32 0.0, %v1744
      %1746 = vmatmul.bf16.gmra.mxu0 %v1722
      %v1747 = vpop.f32.mrf.mxu0
      %v1748 = vadd.f32 0.0, %v1747
      %v1749 = vpop.f32.mrf.mxu0
      %v1750 = vadd.f32 0.0, %v1749
      %1751 = vmatmul.bf16.gmra.mxu0 %v1725
      %v1752 = vpop.f32.mrf.mxu0
      %v1753 = vadd.f32 0.0, %v1752
      %v1754 = vpop.f32.mrf.mxu0
      %v1755 = vadd.f32 0.0, %v1754
      %1756 = vmatmul.bf16.gmra.mxu0 %v1728
      %v1757 = vpop.f32.mrf.mxu0
      %v1758 = vadd.f32 0.0, %v1757
      %v1759 = vpop.f32.mrf.mxu0
      %v1760 = vadd.f32 0.0, %v1759
      %1761 = vdwg.mxu0
      %v1762 = vadd.f32 %v1535, %v1743
      %v1763 = vadd.f32 %v1536, %v1745
      %v1764 = vadd.f32 %v1537, %v1748
      %v1765 = vadd.f32 %v1538, %v1750
      %v1766 = vadd.f32 %v1539, %v1753
      %v1767 = vadd.f32 %v1540, %v1755
      %v1768 = vadd.f32 %v1541, %v1758
      %v1769 = vadd.f32 %v1542, %v1760
      %v1770 = vld [vmem:[%s983] sm:$0xf]
      %v1771 = vld [vmem:[%s983 + $0x8] sm:$0xf]
      %v1772 = vld [vmem:[%s983 + $0x10] sm:$0xf]
      %v1773 = vld [vmem:[%s983 + $0x18] sm:$0xf]
      %v1774 = vld [vmem:[%s983 + $0x20] sm:$0xf]
      %v1775 = vld [vmem:[%s983 + $0x28] sm:$0xf]
      %v1776 = vld [vmem:[%s983 + $0x30] sm:$0xf]
      %v1777 = vld [vmem:[%s983 + $0x38] sm:$0xf]
      %s1778 = scalar_lea.vmem %s382, 12
      %v1779 = vld [vmem:[%s1778] sm:$0x3]
      %v1788 = vunpack.c.l.b16 %v1770
      %v1789 = vunpack.c.l.b16 %v1771
      %v1790 = vunpack.c.l.b16 %v1772
      %v1791 = vunpack.c.l.b16 %v1773
      %v1792 = vunpack.c.l.b16 %v1774
      %v1793 = vunpack.c.l.b16 %v1775
      %v1794 = vunpack.c.l.b16 %v1776
      %v1795 = vunpack.c.l.b16 %v1777
      %v1796 = vpack.c.b16 %v1789, %v1788
      %v1797 = vpack.c.b16 %v1791, %v1790
      %v1798 = vpack.c.b16 %v1793, %v1792
      %v1799 = vpack.c.b16 %v1795, %v1794
      %v1801 = vsel %vm1072, %v1796, 0
      %v1804 = vsel %vm1072, %v1797, 0
      %v1807 = vsel %vm1072, %v1798, 0
      %v1810 = vsel %vm1072, %v1799, 0
      %v1813 = vsel %vm1085, %v1779, 0
      %1815 = vmatpush.bf16.msra.mxu0 0
      %1816 = vmatpush.bf16.msra.mxu0 0
      %1817 = vmatpush.bf16.msra.mxu0 0
      %1818 = vmatpush.bf16.msra.mxu0 0
      %1819 = vmatpush.bf16.msra.mxu0 0
      %1820 = vmatpush.bf16.msra.mxu0 0
      %1821 = vmatpush.bf16.msra.mxu0 0
      %1822 = vmatpush.bf16.msra.mxu0 %v1813
      %1823 = vmatmul.bf16.gmra.mxu0 %v1801
      %v1824 = vpop.f32.mrf.mxu0
      %v1825 = vadd.f32 0.0, %v1824
      %v1826 = vpop.f32.mrf.mxu0
      %v1827 = vadd.f32 0.0, %v1826
      %1828 = vmatmul.bf16.gmra.mxu0 %v1804
      %v1829 = vpop.f32.mrf.mxu0
      %v1830 = vadd.f32 0.0, %v1829
      %v1831 = vpop.f32.mrf.mxu0
      %v1832 = vadd.f32 0.0, %v1831
      %1833 = vmatmul.bf16.gmra.mxu0 %v1807
      %v1834 = vpop.f32.mrf.mxu0
      %v1835 = vadd.f32 0.0, %v1834
      %v1836 = vpop.f32.mrf.mxu0
      %v1837 = vadd.f32 0.0, %v1836
      %1838 = vmatmul.bf16.gmra.mxu0 %v1810
      %v1839 = vpop.f32.mrf.mxu0
      %v1840 = vadd.f32 0.0, %v1839
      %v1841 = vpop.f32.mrf.mxu0
      %v1842 = vadd.f32 0.0, %v1841
      %1843 = vdwg.mxu0
      %v1844 = vadd.f32 %v1762, %v1825
      %v1845 = vadd.f32 %v1763, %v1827
      %v1846 = vadd.f32 %v1764, %v1830
      %v1847 = vadd.f32 %v1765, %v1832
      %v1848 = vadd.f32 %v1766, %v1835
      %v1849 = vadd.f32 %v1767, %v1837
      %v1850 = vadd.f32 %v1768, %v1840
      %v1851 = vadd.f32 %v1769, %v1842
      %v1852 = vld [vmem:[%s845] sm:$0xf]
      %v1853 = vld [vmem:[%s845 + $0x8] sm:$0xf]
      %v1854 = vld [vmem:[%s845 + $0x10] sm:$0xf]
      %v1855 = vld [vmem:[%s845 + $0x18] sm:$0xf]
      %v1856 = vld [vmem:[%s845 + $0x20] sm:$0xf]
      %v1857 = vld [vmem:[%s845 + $0x28] sm:$0xf]
      %v1858 = vld [vmem:[%s845 + $0x30] sm:$0xf]
      %v1859 = vld [vmem:[%s845 + $0x38] sm:$0xf]
      %s1860 = scalar_lea.vmem %s382, 14
      %v1861 = vld [vmem:[%s1860] sm:$0x3]
      %v1870 = vunpack.c.l.b16 %v1852
      %v1871 = vunpack.c.l.b16 %v1853
      %v1872 = vunpack.c.l.b16 %v1854
      %v1873 = vunpack.c.l.b16 %v1855
      %v1874 = vunpack.c.l.b16 %v1856
      %v1875 = vunpack.c.l.b16 %v1857
      %v1876 = vunpack.c.l.b16 %v1858
      %v1877 = vunpack.c.l.b16 %v1859
      %v1878 = vpack.c.b16 %v1871, %v1870
      %v1879 = vpack.c.b16 %v1873, %v1872
      %v1880 = vpack.c.b16 %v1875, %v1874
      %v1881 = vpack.c.b16 %v1877, %v1876
      %v1883 = vsel %vm1072, %v1878, 0
      %v1886 = vsel %vm1072, %v1879, 0
      %v1889 = vsel %vm1072, %v1880, 0
      %v1892 = vsel %vm1072, %v1881, 0
      %v1895 = vsel %vm1085, %v1861, 0
      %1897 = vmatpush.bf16.msra.mxu0 0
      %1898 = vmatpush.bf16.msra.mxu0 0
      %1899 = vmatpush.bf16.msra.mxu0 0
      %1900 = vmatpush.bf16.msra.mxu0 0
      %1901 = vmatpush.bf16.msra.mxu0 0
      %1902 = vmatpush.bf16.msra.mxu0 0
      %1903 = vmatpush.bf16.msra.mxu0 0
      %1904 = vmatpush.bf16.msra.mxu0 %v1895
      %1905 = vmatmul.bf16.gmra.mxu0 %v1883
      %v1906 = vpop.f32.mrf.mxu0
      %v1907 = vadd.f32 0.0, %v1906
      %v1908 = vpop.f32.mrf.mxu0
      %v1909 = vadd.f32 0.0, %v1908
      %1910 = vmatmul.bf16.gmra.mxu0 %v1886
      %v1911 = vpop.f32.mrf.mxu0
      %v1912 = vadd.f32 0.0, %v1911
      %v1913 = vpop.f32.mrf.mxu0
      %v1914 = vadd.f32 0.0, %v1913
      %1915 = vmatmul.bf16.gmra.mxu0 %v1889
      %v1916 = vpop.f32.mrf.mxu0
      %v1917 = vadd.f32 0.0, %v1916
      %v1918 = vpop.f32.mrf.mxu0
      %v1919 = vadd.f32 0.0, %v1918
      %1920 = vmatmul.bf16.gmra.mxu0 %v1892
      %v1921 = vpop.f32.mrf.mxu0
      %v1922 = vadd.f32 0.0, %v1921
      %v1923 = vpop.f32.mrf.mxu0
      %v1924 = vadd.f32 0.0, %v1923
      %1925 = vdwg.mxu0
      %v1926 = vadd.f32 %v1844, %v1907
      %v1927 = vadd.f32 %v1845, %v1909
      %v1928 = vadd.f32 %v1846, %v1912
      %v1929 = vadd.f32 %v1847, %v1914
      %v1930 = vadd.f32 %v1848, %v1917
      %v1931 = vadd.f32 %v1849, %v1919
      %v1932 = vadd.f32 %v1850, %v1922
      %v1933 = vadd.f32 %v1851, %v1924
      %v1934 = vld [vmem:[%s983] sm:$0xf]
      %v1935 = vld [vmem:[%s983 + $0x4] sm:$0x1]
      %v1936 = vld [vmem:[%s983 + $0x8] sm:$0xf]
      %v1937 = vld [vmem:[%s983 + $0xc] sm:$0x1]
      %v1938 = vld [vmem:[%s983 + $0x10] sm:$0xf]
      %v1939 = vld [vmem:[%s983 + $0x14] sm:$0x1]
      %v1940 = vld [vmem:[%s983 + $0x18] sm:$0xf]
      %v1941 = vld [vmem:[%s983 + $0x1c] sm:$0x1]
      %v1942 = vld [vmem:[%s983 + $0x20] sm:$0xf]
      %v1943 = vld [vmem:[%s983 + $0x24] sm:$0x1]
      %v1944 = vld [vmem:[%s983 + $0x28] sm:$0xf]
      %v1945 = vld [vmem:[%s983 + $0x2c] sm:$0x1]
      %v1946 = vld [vmem:[%s983 + $0x30] sm:$0xf]
      %v1947 = vld [vmem:[%s983 + $0x34] sm:$0x1]
      %v1948 = vld [vmem:[%s983 + $0x38] sm:$0xf]
      %v1949 = vld [vmem:[%s983 + $0x3c] sm:$0x1]
      %v1951 = vshrl.u32 %v1934, 16
      %v1953 = vrot.slane %v1951, 4
      %v1954 = vshll.u32 %v1934, 16
      %v1956 = vrot.slane %v1954, 5
      %v1957 = vor.u32 %v1953, %v1956
      %v1958 = vrot.slane %v1957, 4
      %v1960 = vshll.u32 %v1935, 16
      %v1962 = vrot.slane %v1960, 5
      %v1963 = vsel %vm1200, %v1958, %v1962
      %v1965 = vshrl.u32 %v1936, 16
      %v1967 = vrot.slane %v1965, 4
      %v1968 = vshll.u32 %v1936, 16
      %v1970 = vrot.slane %v1968, 5
      %v1971 = vor.u32 %v1967, %v1970
      %v1972 = vrot.slane %v1971, 4
      %v1974 = vshll.u32 %v1937, 16
      %v1976 = vrot.slane %v1974, 5
      %v1977 = vsel %vm1200, %v1972, %v1976
      %v1979 = vshrl.u32 %v1938, 16
      %v1981 = vrot.slane %v1979, 4
      %v1982 = vshll.u32 %v1938, 16
      %v1984 = vrot.slane %v1982, 5
      %v1985 = vor.u32 %v1981, %v1984
      %v1986 = vrot.slane %v1985, 4
      %v1988 = vshll.u32 %v1939, 16
      %v1990 = vrot.slane %v1988, 5
      %v1991 = vsel %vm1200, %v1986, %v1990
      %v1993 = vshrl.u32 %v1940, 16
      %v1995 = vrot.slane %v1993, 4
      %v1996 = vshll.u32 %v1940, 16
      %v1998 = vrot.slane %v1996, 5
      %v1999 = vor.u32 %v1995, %v1998
      %v2000 = vrot.slane %v1999, 4
      %v2002 = vshll.u32 %v1941, 16
      %v2004 = vrot.slane %v2002, 5
      %v2005 = vsel %vm1200, %v2000, %v2004
      %v2007 = vshrl.u32 %v1942, 16
      %v2009 = vrot.slane %v2007, 4
      %v2010 = vshll.u32 %v1942, 16
      %v2012 = vrot.slane %v2010, 5
      %v2013 = vor.u32 %v2009, %v2012
      %v2014 = vrot.slane %v2013, 4
      %v2016 = vshll.u32 %v1943, 16
      %v2018 = vrot.slane %v2016, 5
      %v2019 = vsel %vm1200, %v2014, %v2018
      %v2021 = vshrl.u32 %v1944, 16
      %v2023 = vrot.slane %v2021, 4
      %v2024 = vshll.u32 %v1944, 16
      %v2026 = vrot.slane %v2024, 5
      %v2027 = vor.u32 %v2023, %v2026
      %v2028 = vrot.slane %v2027, 4
      %v2030 = vshll.u32 %v1945, 16
      %v2032 = vrot.slane %v2030, 5
      %v2033 = vsel %vm1200, %v2028, %v2032
      %v2035 = vshrl.u32 %v1946, 16
      %v2037 = vrot.slane %v2035, 4
      %v2038 = vshll.u32 %v1946, 16
      %v2040 = vrot.slane %v2038, 5
      %v2041 = vor.u32 %v2037, %v2040
      %v2042 = vrot.slane %v2041, 4
      %v2044 = vshll.u32 %v1947, 16
      %v2046 = vrot.slane %v2044, 5
      %v2047 = vsel %vm1200, %v2042, %v2046
      %v2049 = vshrl.u32 %v1948, 16
      %v2051 = vrot.slane %v2049, 4
      %v2052 = vshll.u32 %v1948, 16
      %v2054 = vrot.slane %v2052, 5
      %v2055 = vor.u32 %v2051, %v2054
      %v2056 = vrot.slane %v2055, 4
      %v2058 = vshll.u32 %v1949, 16
      %v2060 = vrot.slane %v2058, 5
      %v2061 = vsel %vm1200, %v2056, %v2060
      %s2062 = scalar_lea.vmem %s382, 16
      %v2063 = vld [vmem:[%s2062] sm:$0x3]
      %v2064 = vunpack.c.l.b16 %v1963
      %v2065 = vunpack.c.l.b16 %v1977
      %v2066 = vunpack.c.l.b16 %v1991
      %v2067 = vunpack.c.l.b16 %v2005
      %v2068 = vunpack.c.l.b16 %v2019
      %v2069 = vunpack.c.l.b16 %v2033
      %v2070 = vunpack.c.l.b16 %v2047
      %v2071 = vunpack.c.l.b16 %v2061
      %v2072 = vpack.c.b16 %v2065, %v2064
      %v2073 = vpack.c.b16 %v2067, %v2066
      %v2074 = vpack.c.b16 %v2069, %v2068
      %v2075 = vpack.c.b16 %v2071, %v2070
      %v2077 = vsel %vm1072, %v2072, 0
      %v2080 = vsel %vm1072, %v2073, 0
      %v2083 = vsel %vm1072, %v2074, 0
      %v2086 = vsel %vm1072, %v2075, 0
      %v2089 = vsel %vm1085, %v2063, 0
      %2091 = vmatpush.bf16.msra.mxu0 0
      %2092 = vmatpush.bf16.msra.mxu0 0
      %2093 = vmatpush.bf16.msra.mxu0 0
      %2094 = vmatpush.bf16.msra.mxu0 0
      %2095 = vmatpush.bf16.msra.mxu0 0
      %2096 = vmatpush.bf16.msra.mxu0 0
      %2097 = vmatpush.bf16.msra.mxu0 0
      %2098 = vmatpush.bf16.msra.mxu0 %v2089
      %2099 = vmatmul.bf16.gmra.mxu0 %v2077
      %v2100 = vpop.f32.mrf.mxu0
      %v2101 = vadd.f32 0.0, %v2100
      %v2102 = vpop.f32.mrf.mxu0
      %v2103 = vadd.f32 0.0, %v2102
      %2104 = vmatmul.bf16.gmra.mxu0 %v2080
      %v2105 = vpop.f32.mrf.mxu0
      %v2106 = vadd.f32 0.0, %v2105
      %v2107 = vpop.f32.mrf.mxu0
      %v2108 = vadd.f32 0.0, %v2107
      %2109 = vmatmul.bf16.gmra.mxu0 %v2083
      %v2110 = vpop.f32.mrf.mxu0
      %v2111 = vadd.f32 0.0, %v2110
      %v2112 = vpop.f32.mrf.mxu0
      %v2113 = vadd.f32 0.0, %v2112
      %2114 = vmatmul.bf16.gmra.mxu0 %v2086
      %v2115 = vpop.f32.mrf.mxu0
      %v2116 = vadd.f32 0.0, %v2115
      %v2117 = vpop.f32.mrf.mxu0
      %v2118 = vadd.f32 0.0, %v2117
      %2119 = vdwg.mxu0
      %v2120 = vadd.f32 %v1926, %v2101
      %v2121 = vadd.f32 %v1927, %v2103
      %v2122 = vadd.f32 %v1928, %v2106
      %v2123 = vadd.f32 %v1929, %v2108
      %v2124 = vadd.f32 %v1930, %v2111
      %v2125 = vadd.f32 %v1931, %v2113
      %v2126 = vadd.f32 %v1932, %v2116
      %v2127 = vadd.f32 %v1933, %v2118
      %v2128 = vld [vmem:[%s385] sm:$0x1]
      %v2130 = vperm.slane %v2128, 0
      %v2132 = vmul.f32 %v2120, %v2130
      %v2133 = vmul.f32 %v2121, %v2130
      %v2134 = vmul.f32 %v2122, %v2130
      %v2135 = vmul.f32 %v2123, %v2130
      %v2136 = vmul.f32 %v2124, %v2130
      %v2137 = vmul.f32 %v2125, %v2130
      %v2138 = vmul.f32 %v2126, %v2130
      %v2139 = vmul.f32 %v2127, %v2130
      %v2140 = vld [vmem:[%s388] sm:$0x1]
      %v2142 = vperm.slane %v2140, 0
      %v2144 = vadd.f32 %v2132, %v2142
      %v2145 = vadd.f32 %v2133, %v2142
      %v2146 = vadd.f32 %v2134, %v2142
      %v2147 = vadd.f32 %v2135, %v2142
      %v2148 = vadd.f32 %v2136, %v2142
      %v2149 = vadd.f32 %v2137, %v2142
      %v2150 = vadd.f32 %v2138, %v2142
      %v2151 = vadd.f32 %v2139, %v2142
      %v2152 = vmax.f32 %v2144, 0.0
      %v2153 = vmax.f32 %v2145, 0.0
      %v2154 = vmax.f32 %v2146, 0.0
      %v2155 = vmax.f32 %v2147, 0.0
      %v2156 = vmax.f32 %v2148, 0.0
      %v2157 = vmax.f32 %v2149, 0.0
      %v2158 = vmax.f32 %v2150, 0.0
      %v2159 = vmax.f32 %v2151, 0.0
      %v2160 = vpack.c.bf16 %v2152, %v2152
      %v2161 = vpack.c.bf16 %v2153, %v2153
      %v2162 = vpack.c.bf16 %v2154, %v2154
      %v2163 = vpack.c.bf16 %v2155, %v2155
      %v2164 = vpack.c.bf16 %v2156, %v2156
      %v2165 = vpack.c.bf16 %v2157, %v2157
      %v2166 = vpack.c.bf16 %v2158, %v2158
      %v2167 = vpack.c.bf16 %v2159, %v2159
      %vm2168 = vcmask 60416
      %2169 = vst.msk [vmem:[%s400] sm:$0xf] %vm2168, %v2160
      %2170 = vst.msk [vmem:[%s400 + $0x4] sm:$0xf] %vm2168, %v2161
      %2171 = vst.msk [vmem:[%s400 + $0x8] sm:$0xf] %vm2168, %v2162
      %2172 = vst.msk [vmem:[%s400 + $0xc] sm:$0xf] %vm2168, %v2163
      %2173 = vst.msk [vmem:[%s400 + $0x10] sm:$0xf] %vm2168, %v2164
      %2174 = vst.msk [vmem:[%s400 + $0x14] sm:$0xf] %vm2168, %v2165
      %2175 = vst.msk [vmem:[%s400 + $0x18] sm:$0xf] %vm2168, %v2166
      %2176 = vst.msk [vmem:[%s400 + $0x1c] sm:$0xf] %vm2168, %v2167
      %vm2177 = vcmask 64512
      %2178 = vst.msk [vmem:[%s408] sm:$0xff] %vm2177, %v1557
      %2179 = vst.msk [vmem:[%s408 + $0x8] sm:$0xff] %vm2177, %v1559
      %2180 = vst.msk [vmem:[%s408 + $0x10] sm:$0xff] %vm2177, %v1562
      %2181 = vst.msk [vmem:[%s408 + $0x18] sm:$0xff] %vm2177, %v1564
      %2182 = vst.msk [vmem:[%s408 + $0x20] sm:$0xff] %vm2177, %v1567
      %2183 = vst.msk [vmem:[%s408 + $0x28] sm:$0xff] %vm2177, %v1569
      %2184 = vst.msk [vmem:[%s408 + $0x30] sm:$0xff] %vm2177, %v1572
      %2185 = vst.msk [vmem:[%s408 + $0x38] sm:$0xff] %vm2177, %v1574
      %p2186 = scmp.lt.s32.totalorder %s24, 1
      %s2187 = scalar_select %p2186, %s24, 1
      %p2188 = scmp.lt.s32.totalorder %s25, 0
      %s2189 = scalar_select %p2188, %s25, 0
      %s2190 = smul.addr %s2187, 8
      %s2191 = sadd.s32 %s2189, %s2190
      %s2192 = smul.addr %s2191, 4
      %s2193 = scalar_lea.vmem %s7, %s2192
      %p2194 = scmp.lt.s32.totalorder %s24, 1
      %s2195 = scalar_select %p2194, %s24, 1
      %p2196 = scmp.lt.s32.totalorder %s25, 0
      %s2197 = scalar_select %p2196, %s25, 0
      %s2198 = smul.addr %s2195, 8
      %s2199 = sadd.s32 %s2197, %s2198
      %s2200 = smul.addr %s2199, 8
      %s2201 = scalar_lea.vmem %s8, %s2200
      // Predicated region
      $region49: #{basic_block_forward.2} parent=47 // pred_check
        %p2202 = pneg %p224
      $region50: #{basic_block_forward.2} parent=47 // pred_check_branch
        %2204 = sbr.rel (%p2202) target = $region52
      $region51: #{basic_block_forward.2} parent=47 // pred_region
        _
      $region52: #{basic_block_forward.2} parent=47 // pred_fallthru
        _
      // Predicated region
      $region53: #{basic_block_forward.2} parent=47 // pred_check
        %p2205 = pneg %p252
      $region54: #{basic_block_forward.2} parent=47 // pred_check_branch
        %2207 = sbr.rel (%p2205) target = $region56
      $region55: #{basic_block_forward.2} parent=47 // pred_region
        _
      $region56: #{basic_block_forward.2} parent=47 // pred_fallthru
        _
    $region48: #{basic_block_forward.2} parent=5 // pred_fallthru
      _
    %p2208 = scmp.le.s32.totalorder 2, %s15
    // Predicated region
    $region57: #{basic_block_forward.2} parent=5 // pred_check
      %p2209 = pneg %p2208
    $region58: #{basic_block_forward.2} parent=5 // pred_check_branch
      %2211 = sbr.rel (%p2209) target = $region60
    $region59: #{basic_block_forward.2} parent=5 // pred_region
      %s2212 = ssub.s32 %s15, 2
      // Predicated region
      $region61: #{basic_block_forward.2} parent=59 // pred_check
        %p2213 = pneg %p230
      $region62: #{basic_block_forward.2} parent=59 // pred_check_branch
        %2215 = sbr.rel (%p2213) target = $region64
      $region63: #{basic_block_forward.2} parent=59 // pred_region
        %p2216 = scmp.lt.s32.totalorder %s26, 1
        %s2217 = scalar_select %p2216, %s26, 1
        %p2218 = scmp.lt.s32.totalorder %s27, 0
        %s2219 = scalar_select %p2218, %s27, 0
        %s2220 = smul.addr %s2217, 8
        %s2221 = sadd.s32 %s2219, %s2220
        %s2222 = smul.addr %s2221, 4
        %s2223 = scalar_lea.vmem %s7, %s2222
      $region64: #{basic_block_forward.2} parent=59 // pred_fallthru
        _
      // Predicated region
      $region65: #{basic_block_forward.2} parent=59 // pred_check
        %p2224 = pneg %p258
      $region66: #{basic_block_forward.2} parent=59 // pred_check_branch
        %2226 = sbr.rel (%p2224) target = $region68
      $region67: #{basic_block_forward.2} parent=59 // pred_region
        %p2227 = scmp.lt.s32.totalorder %s26, 1
        %s2228 = scalar_select %p2227, %s26, 1
        %p2229 = scmp.lt.s32.totalorder %s27, 0
        %s2230 = scalar_select %p2229, %s27, 0
        %s2231 = smul.addr %s2228, 8
        %s2232 = sadd.s32 %s2230, %s2231
        %s2233 = smul.addr %s2232, 8
        %s2234 = scalar_lea.vmem %s8, %s2233
      $region68: #{basic_block_forward.2} parent=59 // pred_fallthru
        _
    $region60: #{basic_block_forward.2} parent=5 // pred_fallthru
      _
  $region6: #{basic_block_forward.2} parent=0 // loop_footer
    %s19 = sadd.s32 1, %s15
  $region7: #{basic_block_forward.2} parent=0 // loop_footer_branch
    %14 = sbr.rel target = $region3
  $region8: #{basic_block_forward.2} parent=0 // loop_exit
    _

</llo_original>
